<compile_context>
chip_gen: v6e
topology: v6e:2x2x1
jax: 0.10.0
libtpu: 0.0.40
codegen_flags: <defaults>
</compile_context>

<pallas_src>
import functools

import jax
import jax.numpy as jnp
from jax.experimental import pallas as pl
from jax.experimental.pallas import tpu as pltpu

BN_EPS = 1e-5


def _round_up(x, m):
    return (x + m - 1) // m * m


# ---------------------------------------------------------------------------
# BatchNorm statistics: per-channel scale/bias from batch statistics.
# ---------------------------------------------------------------------------
def _bn_stats_kernel(x_ref, g_ref, b_ref, scale_ref, bias_ref, sum_ref, sq_ref,
                     *, count, L, C):
    i = pl.program_id(0)

    @pl.when(i == 0)
    def _():
        sum_ref[...] = jnp.zeros_like(sum_ref)
        sq_ref[...] = jnp.zeros_like(sq_ref)

    x = x_ref[...].astype(jnp.float32)
    sum_ref[...] += jnp.sum(x, axis=0, keepdims=True)
    sq_ref[...] += jnp.sum(x * x, axis=0, keepdims=True)

    @pl.when(i == pl.num_programs(0) - 1)
    def _():
        s = jnp.zeros((1, C), jnp.float32)
        ss = jnp.zeros((1, C), jnp.float32)
        for r in range(L):                       # fold lane-packed groups back
            s = s + sum_ref[:, r * C:(r + 1) * C]
            ss = ss + sq_ref[:, r * C:(r + 1) * C]
        inv_n = 1.0 / count
        mean = s * inv_n
        var = jnp.maximum(ss * inv_n - mean * mean, 0.0)   # biased variance
        scale = g_ref[...] * jax.lax.rsqrt(var + BN_EPS)
        scale_ref[...] = scale
        bias_ref[...] = b_ref[...] - mean * scale


def pallas_bn_stats(x_nhwc, gamma, beta, *, tm_cap=2048):
    """Training-mode BatchNorm2d stats over (N,H,W) -> per-channel scale,bias."""
    N, H, W, C = x_nhwc.shape
    M = N * H * W
    L = max(1, 128 // C) if C <= 128 else 1      # lane-dense packing factor
    if M % L != 0:
        L = 1
    M2 = M // L
    x2 = x_nhwc.reshape(M2, L * C)               # free row-major reshape
    tm = min(tm_cap, _round_up(M2, 8))
    Mp = _round_up(M2, tm)
    if Mp != M2:
        x2 = jnp.pad(x2, ((0, Mp - M2), (0, 0)))  # zero rows: exact for sums
    g2 = gamma.reshape(1, C).astype(jnp.float32)
    b2 = beta.reshape(1, C).astype(jnp.float32)
    itemsize = jnp.dtype(x_nhwc.dtype).itemsize

    scale, bias = pl.pallas_call(
        functools.partial(_bn_stats_kernel, count=float(M), L=L, C=C),
        out_shape=(jax.ShapeDtypeStruct((1, C), jnp.float32),
                   jax.ShapeDtypeStruct((1, C), jnp.float32)),
        grid=(Mp // tm,),
        in_specs=[pl.BlockSpec((tm, L * C), lambda i: (i, 0)),
                  pl.BlockSpec((1, C), lambda i: (0, 0)),
                  pl.BlockSpec((1, C), lambda i: (0, 0))],
        out_specs=(pl.BlockSpec((1, C), lambda i: (0, 0)),
                   pl.BlockSpec((1, C), lambda i: (0, 0))),
        scratch_shapes=[pltpu.VMEM((1, L * C), jnp.float32),
                        pltpu.VMEM((1, L * C), jnp.float32)],
        compiler_params=pltpu.CompilerParams(
            dimension_semantics=("arbitrary",)),
        cost_estimate=pl.CostEstimate(flops=int(3 * M * C),
                                      transcendentals=int(C),
                                      bytes_accessed=int(M * C * itemsize + 8 * C)),
    )(x2, g2, b2)
    return scale, bias


# ---------------------------------------------------------------------------
# Fused  relu(x*scale+bias) -> 3x3 conv (pad=1)  [+ 1x1 shortcut | + residual]
# ---------------------------------------------------------------------------
def _bn_relu_conv3x3_kernel(*refs, stride, Ho, Wo, Cin, Cout, offs,
                            has_sc_w, emit_act, has_res):
    P = stride * stride
    pos = 0
    x_refs = refs[pos:pos + P]; pos += P
    scale_ref = refs[pos]; bias_ref = refs[pos + 1]; w_ref = refs[pos + 2]
    pos += 3
    sc_w_ref = None
    if has_sc_w:
        sc_w_ref = refs[pos]; pos += 1
    res_ref = None
    if has_res:
        res_ref = refs[pos]; pos += 1
    y_ref = refs[pos]; pos += 1
    sc_out_ref = None
    if has_sc_w or emit_act:
        sc_out_ref = refs[pos]; pos += 1
    xpad_ref = refs[pos]
    lhs_ref = refs[pos + 1]

    scale = scale_ref[...].reshape(1, 1, Cin)
    bias = bias_ref[...].reshape(1, 1, Cin)

    # Fused BN-apply + ReLU, written into zero-padded VMEM phase buffers.
    xpad_ref[...] = jnp.zeros_like(xpad_ref)
    for ph in range(P):
        i0, nr, j0, nc = offs[ph]
        act = jnp.maximum(x_refs[ph][...].astype(jnp.float32) * scale + bias, 0.0)
        if emit_act and ph == 0:        # identity shortcut = relu(bn1(x)) itself
            sc_out_ref[...] = act.astype(sc_out_ref.dtype)
        xpad_ref[ph, i0:i0 + nr, j0:j0 + nc, :] = act

    # im2col in VMEM: pack the 9 unit-stride tap slices into a lane-dense
    # (Ho*Wo, 9*Cin) bf16 LHS, then one MXU dot with K = 9*Cin.
    for ki in range(3):
        for kj in range(3):
            p, ao = ki % stride, ki // stride
            q, bo = kj % stride, kj // stride
            t = ki * 3 + kj
            tap = xpad_ref[p * stride + q, ao:ao + Ho, bo:bo + Wo, :]
            lhs_ref[:, t * Cin:(t + 1) * Cin] = (
                tap.reshape(Ho * Wo, Cin).astype(lhs_ref.dtype))

    acc = jnp.dot(lhs_ref[...], w_ref[...], preferred_element_type=jnp.float32)
    if has_res:
        acc = acc + res_ref[...].astype(jnp.float32).reshape(Ho * Wo, Cout)
    y_ref[...] = acc.reshape(Ho, Wo, Cout).astype(y_ref.dtype)

    if has_sc_w:
        # 1x1 projection shortcut reads exactly the centre-tap positions.
        sc_lhs = lhs_ref[:, 4 * Cin:5 * Cin]
        sc = jnp.dot(sc_lhs, sc_w_ref[...], preferred_element_type=jnp.float32)
        sc_out_ref[...] = sc.reshape(Ho, Wo, sc.shape[-1]).astype(sc_out_ref.dtype)


def fused_bn_relu_conv3x3(x, scale, bias, w_flat, stride, *, sc_w=None,
                          residual=None, emit_act=False,
                          out_dtype=jnp.bfloat16):
    """y = conv3x3(relu(x*scale+bias), stride, pad=1) [+ residual].
    Optionally also returns the 1x1-projection shortcut (sc_w) or the
    BN-applied activation itself (emit_act) as a second output."""
    assert stride in (1, 2)
    assert not (emit_act and sc_w is not None)
    assert (not emit_act) or stride == 1
    N, H, W, Cin = x.shape
    K9, Cout = w_flat.shape
    assert K9 == 9 * Cin
    Ho = (H + 2 - 3) // stride + 1
    Wo = (W + 2 - 3) // stride + 1
    P = stride * stride

    # Space-to-batch phase split of the *raw* input (BN is pointwise, so it
    # commutes with the split).  stride=1 -> single phase == the input itself.
    phases, offs, in_specs = [], [], []
    for p in range(stride):
        r0 = (p - 1) % stride
        i0 = 1 if p == 0 else 0
        for q in range(stride):
            c0 = (q - 1) % stride
            j0 = 1 if q == 0 else 0
            ph = x[:, r0::stride, c0::stride, :]
            phases.append(ph)
            offs.append((i0, ph.shape[1], j0, ph.shape[2]))
            in_specs.append(pl.BlockSpec((None, ph.shape[1], ph.shape[2], Cin),
                                         lambda n: (n, 0, 0, 0)))

    inputs = list(phases) + [scale, bias, w_flat]
    in_specs += [pl.BlockSpec((1, Cin), lambda n: (0, 0)),
                 pl.BlockSpec((1, Cin), lambda n: (0, 0)),
                 pl.BlockSpec((9 * Cin, Cout), lambda n: (0, 0))]
    if sc_w is not None:
        inputs.append(sc_w)
        in_specs.append(pl.BlockSpec((Cin, sc_w.shape[1]), lambda n: (0, 0)))
    if residual is not None:
        inputs.append(residual)
        in_specs.append(pl.BlockSpec((None, Ho, Wo, Cout), lambda n: (n, 0, 0, 0)))

    out_shapes = [jax.ShapeDtypeStruct((N, Ho, Wo, Cout), out_dtype)]
    out_specs = [pl.BlockSpec((None, Ho, Wo, Cout), lambda n: (n, 0, 0, 0))]
    if sc_w is not None:
        Csc = sc_w.shape[1]
        out_shapes.append(jax.ShapeDtypeStruct((N, Ho, Wo, Csc), jnp.float32))
        out_specs.append(pl.BlockSpec((None, Ho, Wo, Csc), lambda n: (n, 0, 0, 0)))
    elif emit_act:
        out_shapes.append(jax.ShapeDtypeStruct((N, H, W, Cin), jnp.float32))
        out_specs.append(pl.BlockSpec((None, H, W, Cin), lambda n: (n, 0, 0, 0)))

    kernel = functools.partial(
        _bn_relu_conv3x3_kernel, stride=stride, Ho=Ho, Wo=Wo, Cin=Cin,
        Cout=Cout, offs=tuple(offs), has_sc_w=sc_w is not None,
        emit_act=emit_act, has_res=residual is not None)

    flops = 2 * N * Ho * Wo * 9 * Cin * Cout
    out_bytes = N * Ho * Wo * Cout * jnp.dtype(out_dtype).itemsize
    if sc_w is not None:
        flops += 2 * N * Ho * Wo * Cin * sc_w.shape[1]
        out_bytes += N * Ho * Wo * sc_w.shape[1] * 4
    elif emit_act:
        out_bytes += N * H * W * Cin * 4
    bytes_accessed = int(
        x.size * jnp.dtype(x.dtype).itemsize
        + w_flat.size * jnp.dtype(w_flat.dtype).itemsize + out_bytes
        + (residual.size * jnp.dtype(residual.dtype).itemsize
           if residual is not None else 0))

    single = len(out_shapes) == 1
    return pl.pallas_call(
        kernel,
        out_shape=out_shapes[0] if single else tuple(out_shapes),
        grid=(N,),
        in_specs=in_specs,
        out_specs=out_specs[0] if single else tuple(out_specs),
        scratch_shapes=[pltpu.VMEM((P, Ho + 2, Wo + 2, Cin), jnp.float32),
                        pltpu.VMEM((Ho * Wo, 9 * Cin), jnp.bfloat16)],
        compiler_params=pltpu.CompilerParams(
            dimension_semantics=("parallel",)),
        cost_estimate=pl.CostEstimate(flops=int(flops), transcendentals=0,
                                      bytes_accessed=bytes_accessed),
    )(*inputs)


# ---------------------------------------------------------------------------
# PreActBlock
# ---------------------------------------------------------------------------
def preact_block_forward(params, x_nchw):
    """PreActBlock forward. I/O layout: NCHW (PyTorch); compute: NHWC."""
    x = jnp.transpose(x_nchw, (0, 2, 3, 1)).astype(jnp.float32)
    stride = params["stride"]
    has_sc_conv = "sc_w" in params

    scale1, bias1 = pallas_bn_stats(x, params["bn1_g"], params["bn1_b"])
    # conv1 fuses: BN1-apply + ReLU + pad + 3x3 stride-s conv + shortcut path.
    y1, shortcut = fused_bn_relu_conv3x3(
        x, scale1, bias1, params["conv1_w"], stride,
        sc_w=params.get("sc_w"), emit_act=not has_sc_conv,
        out_dtype=jnp.bfloat16)
    scale2, bias2 = pallas_bn_stats(y1, params["bn2_g"], params["bn2_b"])
    # conv2 fuses: BN2-apply + ReLU + pad + 3x3 conv + residual add.
    out = fused_bn_relu_conv3x3(
        y1, scale2, bias2, params["conv2_w"], 1,
        residual=shortcut, out_dtype=jnp.float32)
    return jnp.transpose(out, (0, 3, 1, 2))


def init_preact_block_params(key, in_planes, planes, stride):
    k1, k2, k3 = jax.random.split(key, 3)

    def conv3_w(k, cout, cin):
        fan_in = cin * 9
        w = jax.random.normal(k, (cout, cin, 3, 3), jnp.float32) * (2.0 / fan_in) ** 0.5
        # Hoisted layout transform: OIHW -> (kh,kw,Cin,Cout) -> (9*Cin, Cout) bf16.
        return jnp.transpose(w, (2, 3, 1, 0)).reshape(9 * cin, cout).astype(jnp.bfloat16)

    params = {
        "stride": stride,
        "bn1_g": jnp.ones((in_planes,), jnp.float32),
        "bn1_b": jnp.zeros((in_planes,), jnp.float32),
        "conv1_w": conv3_w(k1, planes, in_planes),
        "bn2_g": jnp.ones((planes,), jnp.float32),
        "bn2_b": jnp.zeros((planes,), jnp.float32),
        "conv2_w": conv3_w(k2, planes, planes),
    }
    if stride != 1 or in_planes != planes:
        w = (jax.random.normal(k3, (planes, in_planes, 1, 1), jnp.float32)
             * (2.0 / in_planes) ** 0.5)
        params["sc_w"] = (jnp.transpose(w, (2, 3, 1, 0))
                          .reshape(in_planes, planes).astype(jnp.bfloat16))
    return params


# ---------------------------------------------------------------------------
# Pure-JAX (XLA) reference of the PyTorch module, for a correctness check.
# ---------------------------------------------------------------------------
def reference_forward(params, x_nchw):
    x = jnp.transpose(x_nchw, (0, 2, 3, 1)).astype(jnp.float32)
    s = params["stride"]

    def bn_relu(v, g, b):
        m = v.mean(axis=(0, 1, 2), keepdims=True)
        var = v.var(axis=(0, 1, 2), keepdims=True)   # biased, training-mode BN
        return jnp.maximum((v - m) * jax.lax.rsqrt(var + BN_EPS) * g + b, 0.0)

    def conv3(v, w_flat, cin, cout, stride):
        w = w_flat.astype(jnp.float32).reshape(3, 3, cin, cout)   # HWIO
        return jax.lax.conv_general_dilated(
            v, w, (stride, stride), ((1, 1), (1, 1)),
            dimension_numbers=("NHWC", "HWIO", "NHWC"))

    cin = x.shape[-1]
    cout = params["conv1_w"].shape[1]
    out = bn_relu(x, params["bn1_g"], params["bn1_b"])
    if "sc_w" in params:
        wsc = params["sc_w"].astype(jnp.float32).reshape(1, 1, cin, cout)
        shortcut = jax.lax.conv_general_dilated(
            out, wsc, (s, s), ((0, 0), (0, 0)),
            dimension_numbers=("NHWC", "HWIO", "NHWC"))
    else:
        shortcut = out
    out = conv3(out, params["conv1_w"], cin, cout, s)
    out = bn_relu(out, params["bn2_g"], params["bn2_b"])
    out = conv3(out, params["conv2_w"], cout, cout, 1)
    out = out + shortcut
    return jnp.transpose(out, (0, 3, 1, 2))


if __name__ == "__main__":
    key = jax.random.PRNGKey(0)
    kp1, kp2, kx = jax.random.split(key, 3)

    # Block 1: downsampling PreActBlock (stride=2, 16 -> 32, 1x1 projection).
    p_down = init_preact_block_params(kp1, in_planes=16, planes=32, stride=2)
    # Block 2: identity-shortcut PreActBlock (stride=1, 32 -> 32).
    p_id = init_preact_block_params(kp2, in_planes=32, planes=32, stride=1)

    x = jax.random.normal(kx, (2, 16, 16, 16), jnp.float32)   # NCHW [N,C,H,W]

    block1 = jax.jit(functools.partial(preact_block_forward, p_down))
    block2 = jax.jit(functools.partial(preact_block_forward, p_id))

    y = block2(block1(x))                       # -> [2, 32, 8, 8]
    y = jax.block_until_ready(y)
    assert y.shape == (2, 32, 8, 8) and y.dtype == jnp.float32
    assert bool(jnp.all(jnp.isfinite(y)))

    # Numerics check vs. pure-JAX reference (loose tol: bf16 MXU operands /
    # bf16 intermediate activations in the Pallas path).
    y_ref = reference_forward(p_id, reference_forward(p_down, x))
    err = float(jnp.max(jnp.abs(y - y_ref)))
    assert err < 0.35, f"max abs error vs reference too large: {err}"

    print("KERNEL_OK")
</pallas_src>

<mosaic_0001>
module attributes {stable_mosaic.version = 11 : i64} {
  func.func @_bn_stats_kernel(%arg0: i32, %arg1: memref<64x128xf32, #tpu.memory_space<vmem>>, %arg2: memref<1x16xf32, #tpu.memory_space<vmem>>, %arg3: memref<1x16xf32, #tpu.memory_space<vmem>>, %arg4: memref<1x16xf32, #tpu.memory_space<vmem>>, %arg5: memref<1x16xf32, #tpu.memory_space<vmem>>, %arg6: memref<1x128xf32, #tpu.memory_space<vmem>>, %arg7: memref<1x128xf32, #tpu.memory_space<vmem>>) attributes {dimension_semantics = [#tpu.dimension_semantics<arbitrary>], iteration_bounds = array<i64: 1>, scalar_prefetch = 0 : i64, scratch_operands = 2 : i64, tpu.core_type = #tpu.core_type<tc>, window_params = [{transform_indices = @transform_0, window_bounds = array<i64: 64, 128>}, {pipeline_mode = #tpu.pipeline_mode<synchronous>, transform_indices = @transform_1, window_bounds = array<i64: 1, 16>}, {pipeline_mode = #tpu.pipeline_mode<synchronous>, transform_indices = @transform_2, window_bounds = array<i64: 1, 16>}, {pipeline_mode = #tpu.pipeline_mode<synchronous>, transform_indices = @transform_3, window_bounds = array<i64: 1, 16>}, {pipeline_mode = #tpu.pipeline_mode<synchronous>, transform_indices = @transform_4, window_bounds = array<i64: 1, 16>}]} {
    %c0_i32 = arith.constant 0 : i32
    %0 = arith.cmpi eq, %arg0, %c0_i32 : i32
    %1 = arith.extui %0 : i1 to i32
    %c0_i32_0 = arith.constant 0 : i32
    %2 = arith.cmpi ne, %1, %c0_i32_0 : i32
    scf.if %2 {
      %cst_13 = arith.constant 0.000000e+00 : f32
      %18 = vector.broadcast %cst_13 : f32 to vector<1x128xf32>
      %c0_14 = arith.constant 0 : index
      %c0_15 = arith.constant 0 : index
      %19 = vector.load %arg6[%c0_14, %c0_15] : memref<1x128xf32, #tpu.memory_space<vmem>>, vector<1x128xf32>
      tpu.vector_store %arg6[%c0_14, %c0_15], %18 {strides = array<i32>} : memref<1x128xf32, #tpu.memory_space<vmem>>, vector<1x128xf32>,
      %cst_16 = arith.constant 0.000000e+00 : f32
      %20 = vector.broadcast %cst_16 : f32 to vector<1x128xf32>
      %c0_17 = arith.constant 0 : index
      %c0_18 = arith.constant 0 : index
      %21 = vector.load %arg7[%c0_17, %c0_18] : memref<1x128xf32, #tpu.memory_space<vmem>>, vector<1x128xf32>
      tpu.vector_store %arg7[%c0_17, %c0_18], %20 {strides = array<i32>} : memref<1x128xf32, #tpu.memory_space<vmem>>, vector<1x128xf32>,
    } else {
    }
    %c0 = arith.constant 0 : index
    %c0_1 = arith.constant 0 : index
    %3 = vector.load %arg1[%c0, %c0_1] : memref<64x128xf32, #tpu.memory_space<vmem>>, vector<64x128xf32>
    %c0_2 = arith.constant 0 : index
    %c0_3 = arith.constant 0 : index
    %4 = vector.load %arg6[%c0_2, %c0_3] : memref<1x128xf32, #tpu.memory_space<vmem>>, vector<1x128xf32>
    %cst = arith.constant dense<0.000000e+00> : vector<128xf32>
    %5 = vector.multi_reduction <add>, %3, %cst [0] : vector<64x128xf32> to vector<128xf32>
    %6 = vector.shape_cast %5 : vector<128xf32> to vector<1x128xf32>
    %7 = arith.addf %4, %6 : vector<1x128xf32>
    %c0_4 = arith.constant 0 : index
    %c0_5 = arith.constant 0 : index
    %8 = vector.load %arg6[%c0_4, %c0_5] : memref<1x128xf32, #tpu.memory_space<vmem>>, vector<1x128xf32>
    tpu.vector_store %arg6[%c0_4, %c0_5], %7 {strides = array<i32>} : memref<1x128xf32, #tpu.memory_space<vmem>>, vector<1x128xf32>,
    %c0_6 = arith.constant 0 : index
    %c0_7 = arith.constant 0 : index
    %9 = vector.load %arg7[%c0_6, %c0_7] : memref<1x128xf32, #tpu.memory_space<vmem>>, vector<1x128xf32>
    %10 = arith.mulf %3, %3 : vector<64x128xf32>
    %cst_8 = arith.constant dense<0.000000e+00> : vector<128xf32>
    %11 = vector.multi_reduction <add>, %10, %cst_8 [0] : vector<64x128xf32> to vector<128xf32>
    %12 = vector.shape_cast %11 : vector<128xf32> to vector<1x128xf32>
    %13 = arith.addf %9, %12 : vector<1x128xf32>
    %c0_9 = arith.constant 0 : index
    %c0_10 = arith.constant 0 : index
    %14 = vector.load %arg7[%c0_9, %c0_10] : memref<1x128xf32, #tpu.memory_space<vmem>>, vector<1x128xf32>
    tpu.vector_store %arg7[%c0_9, %c0_10], %13 {strides = array<i32>} : memref<1x128xf32, #tpu.memory_space<vmem>>, vector<1x128xf32>,
    %c0_i32_11 = arith.constant 0 : i32
    %15 = arith.cmpi eq, %arg0, %c0_i32_11 : i32
    %16 = arith.extui %15 : i1 to i32
    %c0_i32_12 = arith.constant 0 : i32
    %17 = arith.cmpi ne, %16, %c0_i32_12 : i32
    scf.if %17 {
      %cst_13 = arith.constant 0.000000e+00 : f32
      %18 = vector.broadcast %cst_13 : f32 to vector<1x16xf32>
      %cst_14 = arith.constant 0.000000e+00 : f32
      %19 = vector.broadcast %cst_14 : f32 to vector<1x16xf32>
      %c0_15 = arith.constant 0 : index
      %c0_16 = arith.constant 0 : index
      %20 = vector.load %arg6[%c0_15, %c0_16] : memref<1x128xf32, #tpu.memory_space<vmem>>, vector<1x16xf32>
      %21 = arith.addf %18, %20 : vector<1x16xf32>
      %c0_17 = arith.constant 0 : index
      %c0_18 = arith.constant 0 : index
      %22 = vector.load %arg7[%c0_17, %c0_18] : memref<1x128xf32, #tpu.memory_space<vmem>>, vector<1x16xf32>
      %23 = arith.addf %19, %22 : vector<1x16xf32>
      %c0_19 = arith.constant 0 : index
      %c16 = arith.constant 16 : index
      %24 = vector.load %arg6[%c0_19, %c16] : memref<1x128xf32, #tpu.memory_space<vmem>>, vector<1x16xf32>
      %25 = arith.addf %21, %24 : vector<1x16xf32>
      %c0_20 = arith.constant 0 : index
      %c16_21 = arith.constant 16 : index
      %26 = vector.load %arg7[%c0_20, %c16_21] : memref<1x128xf32, #tpu.memory_space<vmem>>, vector<1x16xf32>
      %27 = arith.addf %23, %26 : vector<1x16xf32>
      %c0_22 = arith.constant 0 : index
      %c32 = arith.constant 32 : index
      %28 = vector.load %arg6[%c0_22, %c32] : memref<1x128xf32, #tpu.memory_space<vmem>>, vector<1x16xf32>
      %29 = arith.addf %25, %28 : vector<1x16xf32>
      %c0_23 = arith.constant 0 : index
      %c32_24 = arith.constant 32 : index
      %30 = vector.load %arg7[%c0_23, %c32_24] : memref<1x128xf32, #tpu.memory_space<vmem>>, vector<1x16xf32>
      %31 = arith.addf %27, %30 : vector<1x16xf32>
      %c0_25 = arith.constant 0 : index
      %c48 = arith.constant 48 : index
      %32 = vector.load %arg6[%c0_25, %c48] : memref<1x128xf32, #tpu.memory_space<vmem>>, vector<1x16xf32>
      %33 = arith.addf %29, %32 : vector<1x16xf32>
      %c0_26 = arith.constant 0 : index
      %c48_27 = arith.constant 48 : index
      %34 = vector.load %arg7[%c0_26, %c48_27] : memref<1x128xf32, #tpu.memory_space<vmem>>, vector<1x16xf32>
      %35 = arith.addf %31, %34 : vector<1x16xf32>
      %c0_28 = arith.constant 0 : index
      %c64 = arith.constant 64 : index
      %36 = vector.load %arg6[%c0_28, %c64] : memref<1x128xf32, #tpu.memory_space<vmem>>, vector<1x16xf32>
      %37 = arith.addf %33, %36 : vector<1x16xf32>
      %c0_29 = arith.constant 0 : index
      %c64_30 = arith.constant 64 : index
      %38 = vector.load %arg7[%c0_29, %c64_30] : memref<1x128xf32, #tpu.memory_space<vmem>>, vector<1x16xf32>
      %39 = arith.addf %35, %38 : vector<1x16xf32>
      %c0_31 = arith.constant 0 : index
      %c80 = arith.constant 80 : index
      %40 = vector.load %arg6[%c0_31, %c80] : memref<1x128xf32, #tpu.memory_space<vmem>>, vector<1x16xf32>
      %41 = arith.addf %37, %40 : vector<1x16xf32>
      %c0_32 = arith.constant 0 : index
      %c80_33 = arith.constant 80 : index
      %42 = vector.load %arg7[%c0_32, %c80_33] : memref<1x128xf32, #tpu.memory_space<vmem>>, vector<1x16xf32>
      %43 = arith.addf %39, %42 : vector<1x16xf32>
      %c0_34 = arith.constant 0 : index
      %c96 = arith.constant 96 : index
      %44 = vector.load %arg6[%c0_34, %c96] : memref<1x128xf32, #tpu.memory_space<vmem>>, vector<1x16xf32>
      %45 = arith.addf %41, %44 : vector<1x16xf32>
      %c0_35 = arith.constant 0 : index
      %c96_36 = arith.constant 96 : index
      %46 = vector.load %arg7[%c0_35, %c96_36] : memref<1x128xf32, #tpu.memory_space<vmem>>, vector<1x16xf32>
      %47 = arith.addf %43, %46 : vector<1x16xf32>
      %c0_37 = arith.constant 0 : index
      %c112 = arith.constant 112 : index
      %48 = vector.load %arg6[%c0_37, %c112] : memref<1x128xf32, #tpu.memory_space<vmem>>, vector<1x16xf32>
      %49 = arith.addf %45, %48 : vector<1x16xf32>
      %c0_38 = arith.constant 0 : index
      %c112_39 = arith.constant 112 : index
      %50 = vector.load %arg7[%c0_38, %c112_39] : memref<1x128xf32, #tpu.memory_space<vmem>>, vector<1x16xf32>
      %51 = arith.addf %47, %50 : vector<1x16xf32>
      %cst_40 = arith.constant 0.001953125 : f32
      %52 = vector.broadcast %cst_40 : f32 to vector<1x16xf32>
      %53 = arith.mulf %49, %52 : vector<1x16xf32>
      %cst_41 = arith.constant 0.001953125 : f32
      %54 = vector.broadcast %cst_41 : f32 to vector<1x16xf32>
      %55 = arith.mulf %51, %54 : vector<1x16xf32>
      %56 = arith.mulf %53, %53 : vector<1x16xf32>
      %57 = arith.subf %55, %56 : vector<1x16xf32>
      %cst_42 = arith.constant 0.000000e+00 : f32
      %58 = vector.broadcast %cst_42 : f32 to vector<1x16xf32>
      %59 = arith.maximumf %57, %58 : vector<1x16xf32>
      %c0_43 = arith.constant 0 : index
      %c0_44 = arith.constant 0 : index
      %60 = vector.load %arg2[%c0_43, %c0_44] : memref<1x16xf32, #tpu.memory_space<vmem>>, vector<1x16xf32>
      %cst_45 = arith.constant 9.99999974E-6 : f32
      %61 = vector.broadcast %cst_45 : f32 to vector<1x16xf32>
      %62 = arith.addf %59, %61 : vector<1x16xf32>
      %63 = math.rsqrt %62 : vector<1x16xf32>
      %64 = arith.mulf %60, %63 : vector<1x16xf32>
      %c0_46 = arith.constant 0 : index
      %c0_47 = arith.constant 0 : index
      %65 = vector.load %arg4[%c0_46, %c0_47] : memref<1x16xf32, #tpu.memory_space<vmem>>, vector<1x16xf32>
      tpu.vector_store %arg4[%c0_46, %c0_47], %64 {strides = array<i32>} : memref<1x16xf32, #tpu.memory_space<vmem>>, vector<1x16xf32>,
      %c0_48 = arith.constant 0 : index
      %c0_49 = arith.constant 0 : index
      %66 = vector.load %arg3[%c0_48, %c0_49] : memref<1x16xf32, #tpu.memory_space<vmem>>, vector<1x16xf32>
      %67 = arith.mulf %53, %64 : vector<1x16xf32>
      %68 = arith.subf %66, %67 : vector<1x16xf32>
      %c0_50 = arith.constant 0 : index
      %c0_51 = arith.constant 0 : index
      %69 = vector.load %arg5[%c0_50, %c0_51] : memref<1x16xf32, #tpu.memory_space<vmem>>, vector<1x16xf32>
      tpu.vector_store %arg5[%c0_50, %c0_51], %68 {strides = array<i32>} : memref<1x16xf32, #tpu.memory_space<vmem>>, vector<1x16xf32>,
    } else {
    }
    return
  }
  func.func @transform_0(%arg0: i32) -> (i32, i32) {
    %c0_i32 = arith.constant 0 : i32
    %c0_i32_0 = arith.constant 0 : i32
    return %arg0, %c0_i32 : i32, i32
  }
  func.func @transform_1(%arg0: i32) -> (i32, i32) {
    %c0_i32 = arith.constant 0 : i32
    %c0_i32_0 = arith.constant 0 : i32
    %c0_i32_1 = arith.constant 0 : i32
    return %c0_i32, %c0_i32_0 : i32, i32
  }
  func.func @transform_2(%arg0: i32) -> (i32, i32) {
    %c0_i32 = arith.constant 0 : i32
    %c0_i32_0 = arith.constant 0 : i32
    %c0_i32_1 = arith.constant 0 : i32
    return %c0_i32, %c0_i32_0 : i32, i32
  }
  func.func @transform_3(%arg0: i32) -> (i32, i32) {
    %c0_i32 = arith.constant 0 : i32
    %c0_i32_0 = arith.constant 0 : i32
    %c0_i32_1 = arith.constant 0 : i32
    return %c0_i32, %c0_i32_0 : i32, i32
  }
  func.func @transform_4(%arg0: i32) -> (i32, i32) {
    %c0_i32 = arith.constant 0 : i32
    %c0_i32_0 = arith.constant 0 : i32
    %c0_i32_1 = arith.constant 0 : i32
    return %c0_i32, %c0_i32_0 : i32, i32
  }
}

module attributes {stable_mosaic.version = 11 : i64} {
  func.func @_bn_relu_conv3x3_kernel(%arg0: i32, %arg1: memref<1x8x8x16xf32, #tpu.memory_space<vmem>>, %arg2: memref<1x8x8x16xf32, #tpu.memory_space<vmem>>, %arg3: memref<1x8x8x16xf32, #tpu.memory_space<vmem>>, %arg4: memref<1x8x8x16xf32, #tpu.memory_space<vmem>>, %arg5: memref<1x16xf32, #tpu.memory_space<vmem>>, %arg6: memref<1x16xf32, #tpu.memory_space<vmem>>, %arg7: memref<144x32xbf16, #tpu.memory_space<vmem>>, %arg8: memref<16x32xbf16, #tpu.memory_space<vmem>>, %arg9: memref<1x8x8x32xbf16, #tpu.memory_space<vmem>>, %arg10: memref<1x8x8x32xf32, #tpu.memory_space<vmem>>, %arg11: memref<4x10x10x16xf32, #tpu.memory_space<vmem>>, %arg12: memref<64x144xbf16, #tpu.memory_space<vmem>>) attributes {dimension_semantics = [#tpu.dimension_semantics<parallel>], iteration_bounds = array<i64: 2>, scalar_prefetch = 0 : i64, scratch_operands = 2 : i64, tpu.core_type = #tpu.core_type<tc>, window_params = [{transform_indices = @transform_0, window_bounds = array<i64: 1, 8, 8, 16>}, {transform_indices = @transform_1, window_bounds = array<i64: 1, 8, 8, 16>}, {transform_indices = @transform_2, window_bounds = array<i64: 1, 8, 8, 16>}, {transform_indices = @transform_3, window_bounds = array<i64: 1, 8, 8, 16>}, {pipeline_mode = #tpu.pipeline_mode<synchronous>, transform_indices = @transform_4, window_bounds = array<i64: 1, 16>}, {pipeline_mode = #tpu.pipeline_mode<synchronous>, transform_indices = @transform_5, window_bounds = array<i64: 1, 16>}, {pipeline_mode = #tpu.pipeline_mode<synchronous>, transform_indices = @transform_6, window_bounds = array<i64: 144, 32>}, {pipeline_mode = #tpu.pipeline_mode<synchronous>, transform_indices = @transform_7, window_bounds = array<i64: 16, 32>}, {transform_indices = @transform_8, window_bounds = array<i64: 1, 8, 8, 32>}, {transform_indices = @transform_9, window_bounds = array<i64: 1, 8, 8, 32>}]} {
    %c0 = arith.constant 0 : index
    %c0_0 = arith.constant 0 : index
    %0 = vector.load %arg5[%c0, %c0_0] : memref<1x16xf32, #tpu.memory_space<vmem>>, vector<1x16xf32>
    %1 = vector.shape_cast %0 : vector<1x16xf32> to vector<1x1x16xf32>
    %c0_1 = arith.constant 0 : index
    %c0_2 = arith.constant 0 : index
    %2 = vector.load %arg6[%c0_1, %c0_2] : memref<1x16xf32, #tpu.memory_space<vmem>>, vector<1x16xf32>
    %3 = vector.shape_cast %2 : vector<1x16xf32> to vector<1x1x16xf32>
    %cst = arith.constant 0.000000e+00 : f32
    %4 = vector.broadcast %cst : f32 to vector<4x10x10x16xf32>
    %c0_3 = arith.constant 0 : index
    %c0_4 = arith.constant 0 : index
    %c0_5 = arith.constant 0 : index
    %c0_6 = arith.constant 0 : index
    %5 = vector.load %arg11[%c0_3, %c0_4, %c0_5, %c0_6] : memref<4x10x10x16xf32, #tpu.memory_space<vmem>>, vector<4x10x10x16xf32>
    tpu.vector_store %arg11[%c0_3, %c0_4, %c0_5, %c0_6], %4 {strides = array<i32>} : memref<4x10x10x16xf32, #tpu.memory_space<vmem>>, vector<4x10x10x16xf32>,
    %c0_7 = arith.constant 0 : index
    %c0_8 = arith.constant 0 : index
    %c0_9 = arith.constant 0 : index
    %c0_10 = arith.constant 0 : index
    %6 = vector.load %arg1[%c0_7, %c0_8, %c0_9, %c0_10] : memref<1x8x8x16xf32, #tpu.memory_space<vmem>>, vector<1x8x8x16xf32>
    %7 = vector.shape_cast %6 : vector<1x8x8x16xf32> to vector<8x8x16xf32>
    %8 = vector.broadcast %1 : vector<1x1x16xf32> to vector<8x8x16xf32>
    %9 = arith.mulf %7, %8 : vector<8x8x16xf32>
    %10 = vector.broadcast %3 : vector<1x1x16xf32> to vector<8x8x16xf32>
    %11 = arith.addf %9, %10 : vector<8x8x16xf32>
    %cst_11 = arith.constant 0.000000e+00 : f32
    %12 = vector.broadcast %cst_11 : f32 to vector<8x8x16xf32>
    %13 = arith.maximumf %11, %12 : vector<8x8x16xf32>
    %c0_12 = arith.constant 0 : index
    %c1 = arith.constant 1 : index
    %c1_13 = arith.constant 1 : index
    %c0_14 = arith.constant 0 : index
    %14 = vector.load %arg11[%c0_12, %c1, %c1_13, %c0_14] : memref<4x10x10x16xf32, #tpu.memory_space<vmem>>, vector<1x8x8x16xf32>
    %15 = vector.shape_cast %14 : vector<1x8x8x16xf32> to vector<8x8x16xf32>
    %16 = vector.shape_cast %13 : vector<8x8x16xf32> to vector<1x8x8x16xf32>
    tpu.vector_store %arg11[%c0_12, %c1, %c1_13, %c0_14], %16 {strides = array<i32>} : memref<4x10x10x16xf32, #tpu.memory_space<vmem>>, vector<1x8x8x16xf32>,
    %c0_15 = arith.constant 0 : index
    %c0_16 = arith.constant 0 : index
    %c0_17 = arith.constant 0 : index
    %c0_18 = arith.constant 0 : index
    %17 = vector.load %arg2[%c0_15, %c0_16, %c0_17, %c0_18] : memref<1x8x8x16xf32, #tpu.memory_space<vmem>>, vector<1x8x8x16xf32>
    %18 = vector.shape_cast %17 : vector<1x8x8x16xf32> to vector<8x8x16xf32>
    %19 = vector.broadcast %1 : vector<1x1x16xf32> to vector<8x8x16xf32>
    %20 = arith.mulf %18, %19 : vector<8x8x16xf32>
    %21 = vector.broadcast %3 : vector<1x1x16xf32> to vector<8x8x16xf32>
    %22 = arith.addf %20, %21 : vector<8x8x16xf32>
    %cst_19 = arith.constant 0.000000e+00 : f32
    %23 = vector.broadcast %cst_19 : f32 to vector<8x8x16xf32>
    %24 = arith.maximumf %22, %23 : vector<8x8x16xf32>
    %c1_20 = arith.constant 1 : index
    %c1_21 = arith.constant 1 : index
    %c0_22 = arith.constant 0 : index
    %c0_23 = arith.constant 0 : index
    %25 = vector.load %arg11[%c1_20, %c1_21, %c0_22, %c0_23] : memref<4x10x10x16xf32, #tpu.memory_space<vmem>>, vector<1x8x8x16xf32>
    %26 = vector.shape_cast %25 : vector<1x8x8x16xf32> to vector<8x8x16xf32>
    %27 = vector.shape_cast %24 : vector<8x8x16xf32> to vector<1x8x8x16xf32>
    tpu.vector_store %arg11[%c1_20, %c1_21, %c0_22, %c0_23], %27 {strides = array<i32>} : memref<4x10x10x16xf32, #tpu.memory_space<vmem>>, vector<1x8x8x16xf32>,
    %c0_24 = arith.constant 0 : index
    %c0_25 = arith.constant 0 : index
    %c0_26 = arith.constant 0 : index
    %c0_27 = arith.constant 0 : index
    %28 = vector.load %arg3[%c0_24, %c0_25, %c0_26, %c0_27] : memref<1x8x8x16xf32, #tpu.memory_space<vmem>>, vector<1x8x8x16xf32>
    %29 = vector.shape_cast %28 : vector<1x8x8x16xf32> to vector<8x8x16xf32>
    %30 = vector.broadcast %1 : vector<1x1x16xf32> to vector<8x8x16xf32>
    %31 = arith.mulf %29, %30 : vector<8x8x16xf32>
    %32 = vector.broadcast %3 : vector<1x1x16xf32> to vector<8x8x16xf32>
    %33 = arith.addf %31, %32 : vector<8x8x16xf32>
    %cst_28 = arith.constant 0.000000e+00 : f32
    %34 = vector.broadcast %cst_28 : f32 to vector<8x8x16xf32>
    %35 = arith.maximumf %33, %34 : vector<8x8x16xf32>
    %c2 = arith.constant 2 : index
    %c0_29 = arith.constant 0 : index
    %c1_30 = arith.constant 1 : index
    %c0_31 = arith.constant 0 : index
    %36 = vector.load %arg11[%c2, %c0_29, %c1_30, %c0_31] : memref<4x10x10x16xf32, #tpu.memory_space<vmem>>, vector<1x8x8x16xf32>
    %37 = vector.shape_cast %36 : vector<1x8x8x16xf32> to vector<8x8x16xf32>
    %38 = vector.shape_cast %35 : vector<8x8x16xf32> to vector<1x8x8x16xf32>
    tpu.vector_store %arg11[%c2, %c0_29, %c1_30, %c0_31], %38 {strides = array<i32>} : memref<4x10x10x16xf32, #tpu.memory_space<vmem>>, vector<1x8x8x16xf32>,
    %c0_32 = arith.constant 0 : index
    %c0_33 = arith.constant 0 : index
    %c0_34 = arith.constant 0 : index
    %c0_35 = arith.constant 0 : index
    %39 = vector.load %arg4[%c0_32, %c0_33, %c0_34, %c0_35] : memref<1x8x8x16xf32, #tpu.memory_space<vmem>>, vector<1x8x8x16xf32>
    %40 = vector.shape_cast %39 : vector<1x8x8x16xf32> to vector<8x8x16xf32>
    %41 = vector.broadcast %1 : vector<1x1x16xf32> to vector<8x8x16xf32>
    %42 = arith.mulf %40, %41 : vector<8x8x16xf32>
    %43 = vector.broadcast %3 : vector<1x1x16xf32> to vector<8x8x16xf32>
    %44 = arith.addf %42, %43 : vector<8x8x16xf32>
    %cst_36 = arith.constant 0.000000e+00 : f32
    %45 = vector.broadcast %cst_36 : f32 to vector<8x8x16xf32>
    %46 = arith.maximumf %44, %45 : vector<8x8x16xf32>
    %c3 = arith.constant 3 : index
    %c0_37 = arith.constant 0 : index
    %c0_38 = arith.constant 0 : index
    %c0_39 = arith.constant 0 : index
    %47 = vector.load %arg11[%c3, %c0_37, %c0_38, %c0_39] : memref<4x10x10x16xf32, #tpu.memory_space<vmem>>, vector<1x8x8x16xf32>
    %48 = vector.shape_cast %47 : vector<1x8x8x16xf32> to vector<8x8x16xf32>
    %49 = vector.shape_cast %46 : vector<8x8x16xf32> to vector<1x8x8x16xf32>
    tpu.vector_store %arg11[%c3, %c0_37, %c0_38, %c0_39], %49 {strides = array<i32>} : memref<4x10x10x16xf32, #tpu.memory_space<vmem>>, vector<1x8x8x16xf32>,
    %c0_40 = arith.constant 0 : index
    %c0_41 = arith.constant 0 : index
    %c0_42 = arith.constant 0 : index
    %c0_43 = arith.constant 0 : index
    %50 = vector.load %arg11[%c0_40, %c0_41, %c0_42, %c0_43] : memref<4x10x10x16xf32, #tpu.memory_space<vmem>>, vector<1x8x8x16xf32>
    %51 = vector.shape_cast %50 : vector<1x8x8x16xf32> to vector<8x8x16xf32>
    %52 = vector.shape_cast %51 : vector<8x8x16xf32> to vector<64x16xf32>
    %53 = arith.truncf %52 : vector<64x16xf32> to vector<64x16xbf16>
    %c0_44 = arith.constant 0 : index
    %c0_45 = arith.constant 0 : index
    %54 = vector.load %arg12[%c0_44, %c0_45] : memref<64x144xbf16, #tpu.memory_space<vmem>>, vector<64x16xbf16>
    tpu.vector_store %arg12[%c0_44, %c0_45], %53 {strides = array<i32>} : memref<64x144xbf16, #tpu.memory_space<vmem>>, vector<64x16xbf16>,
    %c1_46 = arith.constant 1 : index
    %c0_47 = arith.constant 0 : index
    %c0_48 = arith.constant 0 : index
    %c0_49 = arith.constant 0 : index
    %55 = vector.load %arg11[%c1_46, %c0_47, %c0_48, %c0_49] : memref<4x10x10x16xf32, #tpu.memory_space<vmem>>, vector<1x8x8x16xf32>
    %56 = vector.shape_cast %55 : vector<1x8x8x16xf32> to vector<8x8x16xf32>
    %57 = vector.shape_cast %56 : vector<8x8x16xf32> to vector<64x16xf32>
    %58 = arith.truncf %57 : vector<64x16xf32> to vector<64x16xbf16>
    %c0_50 = arith.constant 0 : index
    %c16 = arith.constant 16 : index
    %59 = vector.load %arg12[%c0_50, %c16] : memref<64x144xbf16, #tpu.memory_space<vmem>>, vector<64x16xbf16>
    tpu.vector_store %arg12[%c0_50, %c16], %58 {strides = array<i32>} : memref<64x144xbf16, #tpu.memory_space<vmem>>, vector<64x16xbf16>,
    %c0_51 = arith.constant 0 : index
    %c0_52 = arith.constant 0 : index
    %c1_53 = arith.constant 1 : index
    %c0_54 = arith.constant 0 : index
    %60 = vector.load %arg11[%c0_51, %c0_52, %c1_53, %c0_54] : memref<4x10x10x16xf32, #tpu.memory_space<vmem>>, vector<1x8x8x16xf32>
    %61 = vector.shape_cast %60 : vector<1x8x8x16xf32> to vector<8x8x16xf32>
    %62 = vector.shape_cast %61 : vector<8x8x16xf32> to vector<64x16xf32>
    %63 = arith.truncf %62 : vector<64x16xf32> to vector<64x16xbf16>
    %c0_55 = arith.constant 0 : index
    %c32 = arith.constant 32 : index
    %64 = vector.load %arg12[%c0_55, %c32] : memref<64x144xbf16, #tpu.memory_space<vmem>>, vector<64x16xbf16>
    tpu.vector_store %arg12[%c0_55, %c32], %63 {strides = array<i32>} : memref<64x144xbf16, #tpu.memory_space<vmem>>, vector<64x16xbf16>,
    %c2_56 = arith.constant 2 : index
    %c0_57 = arith.constant 0 : index
    %c0_58 = arith.constant 0 : index
    %c0_59 = arith.constant 0 : index
    %65 = vector.load %arg11[%c2_56, %c0_57, %c0_58, %c0_59] : memref<4x10x10x16xf32, #tpu.memory_space<vmem>>, vector<1x8x8x16xf32>
    %66 = vector.shape_cast %65 : vector<1x8x8x16xf32> to vector<8x8x16xf32>
    %67 = vector.shape_cast %66 : vector<8x8x16xf32> to vector<64x16xf32>
    %68 = arith.truncf %67 : vector<64x16xf32> to vector<64x16xbf16>
    %c0_60 = arith.constant 0 : index
    %c48 = arith.constant 48 : index
    %69 = vector.load %arg12[%c0_60, %c48] : memref<64x144xbf16, #tpu.memory_space<vmem>>, vector<64x16xbf16>
    tpu.vector_store %arg12[%c0_60, %c48], %68 {strides = array<i32>} : memref<64x144xbf16, #tpu.memory_space<vmem>>, vector<64x16xbf16>,
    %c3_61 = arith.constant 3 : index
    %c0_62 = arith.constant 0 : index
    %c0_63 = arith.constant 0 : index
    %c0_64 = arith.constant 0 : index
    %70 = vector.load %arg11[%c3_61, %c0_62, %c0_63, %c0_64] : memref<4x10x10x16xf32, #tpu.memory_space<vmem>>, vector<1x8x8x16xf32>
    %71 = vector.shape_cast %70 : vector<1x8x8x16xf32> to vector<8x8x16xf32>
    %72 = vector.shape_cast %71 : vector<8x8x16xf32> to vector<64x16xf32>
    %73 = arith.truncf %72 : vector<64x16xf32> to vector<64x16xbf16>
    %c0_65 = arith.constant 0 : index
    %c64 = arith.constant 64 : index
    %74 = vector.load %arg12[%c0_65, %c64] : memref<64x144xbf16, #tpu.memory_space<vmem>>, vector<64x16xbf16>
    tpu.vector_store %arg12[%c0_65, %c64], %73 {strides = array<i32>} : memref<64x144xbf16, #tpu.memory_space<vmem>>, vector<64x16xbf16>,
    %c2_66 = arith.constant 2 : index
    %c0_67 = arith.constant 0 : index
    %c1_68 = arith.constant 1 : index
    %c0_69 = arith.constant 0 : index
    %75 = vector.load %arg11[%c2_66, %c0_67, %c1_68, %c0_69] : memref<4x10x10x16xf32, #tpu.memory_space<vmem>>, vector<1x8x8x16xf32>
    %76 = vector.shape_cast %75 : vector<1x8x8x16xf32> to vector<8x8x16xf32>
    %77 = vector.shape_cast %76 : vector<8x8x16xf32> to vector<64x16xf32>
    %78 = arith.truncf %77 : vector<64x16xf32> to vector<64x16xbf16>
    %c0_70 = arith.constant 0 : index
    %c80 = arith.constant 80 : index
    %79 = vector.load %arg12[%c0_70, %c80] : memref<64x144xbf16, #tpu.memory_space<vmem>>, vector<64x16xbf16>
    tpu.vector_store %arg12[%c0_70, %c80], %78 {strides = array<i32>} : memref<64x144xbf16, #tpu.memory_space<vmem>>, vector<64x16xbf16>,
    %c0_71 = arith.constant 0 : index
    %c1_72 = arith.constant 1 : index
    %c0_73 = arith.constant 0 : index
    %c0_74 = arith.constant 0 : index
    %80 = vector.load %arg11[%c0_71, %c1_72, %c0_73, %c0_74] : memref<4x10x10x16xf32, #tpu.memory_space<vmem>>, vector<1x8x8x16xf32>
    %81 = vector.shape_cast %80 : vector<1x8x8x16xf32> to vector<8x8x16xf32>
    %82 = vector.shape_cast %81 : vector<8x8x16xf32> to vector<64x16xf32>
    %83 = arith.truncf %82 : vector<64x16xf32> to vector<64x16xbf16>
    %c0_75 = arith.constant 0 : index
    %c96 = arith.constant 96 : index
    %84 = vector.load %arg12[%c0_75, %c96] : memref<64x144xbf16, #tpu.memory_space<vmem>>, vector<64x16xbf16>
    tpu.vector_store %arg12[%c0_75, %c96], %83 {strides = array<i32>} : memref<64x144xbf16, #tpu.memory_space<vmem>>, vector<64x16xbf16>,
    %c1_76 = arith.constant 1 : index
    %c1_77 = arith.constant 1 : index
    %c0_78 = arith.constant 0 : index
    %c0_79 = arith.constant 0 : index
    %85 = vector.load %arg11[%c1_76, %c1_77, %c0_78, %c0_79] : memref<4x10x10x16xf32, #tpu.memory_space<vmem>>, vector<1x8x8x16xf32>
    %86 = vector.shape_cast %85 : vector<1x8x8x16xf32> to vector<8x8x16xf32>
    %87 = vector.shape_cast %86 : vector<8x8x16xf32> to vector<64x16xf32>
    %88 = arith.truncf %87 : vector<64x16xf32> to vector<64x16xbf16>
    %c0_80 = arith.constant 0 : index
    %c112 = arith.constant 112 : index
    %89 = vector.load %arg12[%c0_80, %c112] : memref<64x144xbf16, #tpu.memory_space<vmem>>, vector<64x16xbf16>
    tpu.vector_store %arg12[%c0_80, %c112], %88 {strides = array<i32>} : memref<64x144xbf16, #tpu.memory_space<vmem>>, vector<64x16xbf16>,
    %c0_81 = arith.constant 0 : index
    %c1_82 = arith.constant 1 : index
    %c1_83 = arith.constant 1 : index
    %c0_84 = arith.constant 0 : index
    %90 = vector.load %arg11[%c0_81, %c1_82, %c1_83, %c0_84] : memref<4x10x10x16xf32, #tpu.memory_space<vmem>>, vector<1x8x8x16xf32>
    %91 = vector.shape_cast %90 : vector<1x8x8x16xf32> to vector<8x8x16xf32>
    %92 = vector.shape_cast %91 : vector<8x8x16xf32> to vector<64x16xf32>
    %93 = arith.truncf %92 : vector<64x16xf32> to vector<64x16xbf16>
    %c0_85 = arith.constant 0 : index
    %c128 = arith.constant 128 : index
    %94 = vector.load %arg12[%c0_85, %c128] : memref<64x144xbf16, #tpu.memory_space<vmem>>, vector<64x16xbf16>
    tpu.vector_store %arg12[%c0_85, %c128], %93 {strides = array<i32>} : memref<64x144xbf16, #tpu.memory_space<vmem>>, vector<64x16xbf16>,
    %c0_86 = arith.constant 0 : index
    %c0_87 = arith.constant 0 : index
    %95 = vector.load %arg12[%c0_86, %c0_87] : memref<64x144xbf16, #tpu.memory_space<vmem>>, vector<64x144xbf16>
    %c0_88 = arith.constant 0 : index
    %c0_89 = arith.constant 0 : index
    %96 = vector.load %arg7[%c0_88, %c0_89] : memref<144x32xbf16, #tpu.memory_space<vmem>>, vector<144x32xbf16>
    %cst_90 = arith.constant dense<0.000000e+00> : vector<64x32xf32>
    %97 = tpu.matmul %95, %96, %cst_90 {dimension_numbers = #tpu.dot_dimension_numbers<[1], [0], [0], [1], [0, 0, 1, 1], [], []>} : vector<64x144xbf16>, vector<144x32xbf16>, vector<64x32xf32> -> vector<64x32xf32>
    %98 = vector.shape_cast %97 : vector<64x32xf32> to vector<8x8x32xf32>
    %99 = arith.truncf %98 : vector<8x8x32xf32> to vector<8x8x32xbf16>
    %c0_91 = arith.constant 0 : index
    %c0_92 = arith.constant 0 : index
    %c0_93 = arith.constant 0 : index
    %c0_94 = arith.constant 0 : index
    %100 = vector.load %arg9[%c0_91, %c0_92, %c0_93, %c0_94] : memref<1x8x8x32xbf16, #tpu.memory_space<vmem>>, vector<1x8x8x32xbf16>
    %101 = vector.shape_cast %100 : vector<1x8x8x32xbf16> to vector<8x8x32xbf16>
    %102 = vector.shape_cast %99 : vector<8x8x32xbf16> to vector<1x8x8x32xbf16>
    tpu.vector_store %arg9[%c0_91, %c0_92, %c0_93, %c0_94], %102 {strides = array<i32>} : memref<1x8x8x32xbf16, #tpu.memory_space<vmem>>, vector<1x8x8x32xbf16>,
    %c0_95 = arith.constant 0 : index
    %c64_96 = arith.constant 64 : index
    %103 = vector.load %arg12[%c0_95, %c64_96] : memref<64x144xbf16, #tpu.memory_space<vmem>>, vector<64x16xbf16>
    %c0_97 = arith.constant 0 : index
    %c0_98 = arith.constant 0 : index
    %104 = vector.load %arg8[%c0_97, %c0_98] : memref<16x32xbf16, #tpu.memory_space<vmem>>, vector<16x32xbf16>
    %cst_99 = arith.constant dense<0.000000e+00> : vector<64x32xf32>
    %105 = tpu.matmul %103, %104, %cst_99 {dimension_numbers = #tpu.dot_dimension_numbers<[1], [0], [0], [1], [0, 0, 1, 1], [], []>} : vector<64x16xbf16>, vector<16x32xbf16>, vector<64x32xf32> -> vector<64x32xf32>
    %106 = vector.shape_cast %105 : vector<64x32xf32> to vector<8x8x32xf32>
    %c0_100 = arith.constant 0 : index
    %c0_101 = arith.constant 0 : index
    %c0_102 = arith.constant 0 : index
    %c0_103 = arith.constant 0 : index
    %107 = vector.load %arg10[%c0_100, %c0_101, %c0_102, %c0_103] : memref<1x8x8x32xf32, #tpu.memory_space<vmem>>, vector<1x8x8x32xf32>
    %108 = vector.shape_cast %107 : vector<1x8x8x32xf32> to vector<8x8x32xf32>
    %109 = vector.shape_cast %106 : vector<8x8x32xf32> to vector<1x8x8x32xf32>
    tpu.vector_store %arg10[%c0_100, %c0_101, %c0_102, %c0_103], %109 {strides = array<i32>} : memref<1x8x8x32xf32, #tpu.memory_space<vmem>>, vector<1x8x8x32xf32>,
    return
  }
  func.func @transform_0(%arg0: i32) -> (i32, i32, i32, i32) {
    %c0_i32 = arith.constant 0 : i32
    %c0_i32_0 = arith.constant 0 : i32
    %c0_i32_1 = arith.constant 0 : i32
    %c0_i32_2 = arith.constant 0 : i32
    return %arg0, %c0_i32, %c0_i32_0, %c0_i32_1 : i32, i32, i32, i32
  }
  func.func @transform_1(%arg0: i32) -> (i32, i32, i32, i32) {
    %c0_i32 = arith.constant 0 : i32
    %c0_i32_0 = arith.constant 0 : i32
    %c0_i32_1 = arith.constant 0 : i32
    %c0_i32_2 = arith.constant 0 : i32
    return %arg0, %c0_i32, %c0_i32_0, %c0_i32_1 : i32, i32, i32, i32
  }
  func.func @transform_2(%arg0: i32) -> (i32, i32, i32, i32) {
    %c0_i32 = arith.constant 0 : i32
    %c0_i32_0 = arith.constant 0 : i32
    %c0_i32_1 = arith.constant 0 : i32
    %c0_i32_2 = arith.constant 0 : i32
    return %arg0, %c0_i32, %c0_i32_0, %c0_i32_1 : i32, i32, i32, i32
  }
  func.func @transform_3(%arg0: i32) -> (i32, i32, i32, i32) {
    %c0_i32 = arith.constant 0 : i32
    %c0_i32_0 = arith.constant 0 : i32
    %c0_i32_1 = arith.constant 0 : i32
    %c0_i32_2 = arith.constant 0 : i32
    return %arg0, %c0_i32, %c0_i32_0, %c0_i32_1 : i32, i32, i32, i32
  }
  func.func @transform_4(%arg0: i32) -> (i32, i32) {
    %c0_i32 = arith.constant 0 : i32
    %c0_i32_0 = arith.constant 0 : i32
    %c0_i32_1 = arith.constant 0 : i32
    return %c0_i32, %c0_i32_0 : i32, i32
  }
  func.func @transform_5(%arg0: i32) -> (i32, i32) {
    %c0_i32 = arith.constant 0 : i32
    %c0_i32_0 = arith.constant 0 : i32
    %c0_i32_1 = arith.constant 0 : i32
    return %c0_i32, %c0_i32_0 : i32, i32
  }
  func.func @transform_6(%arg0: i32) -> (i32, i32) {
    %c0_i32 = arith.constant 0 : i32
    %c0_i32_0 = arith.constant 0 : i32
    %c0_i32_1 = arith.constant 0 : i32
    return %c0_i32, %c0_i32_0 : i32, i32
  }
  func.func @transform_7(%arg0: i32) -> (i32, i32) {
    %c0_i32 = arith.constant 0 : i32
    %c0_i32_0 = arith.constant 0 : i32
    %c0_i32_1 = arith.constant 0 : i32
    return %c0_i32, %c0_i32_0 : i32, i32
  }
  func.func @transform_8(%arg0: i32) -> (i32, i32, i32, i32) {
    %c0_i32 = arith.constant 0 : i32
    %c0_i32_0 = arith.constant 0 : i32
    %c0_i32_1 = arith.constant 0 : i32
    %c0_i32_2 = arith.constant 0 : i32
    return %arg0, %c0_i32, %c0_i32_0, %c0_i32_1 : i32, i32, i32, i32
  }
  func.func @transform_9(%arg0: i32) -> (i32, i32, i32, i32) {
    %c0_i32 = arith.constant 0 : i32
    %c0_i32_0 = arith.constant 0 : i32
    %c0_i32_1 = arith.constant 0 : i32
    %c0_i32_2 = arith.constant 0 : i32
    return %arg0, %c0_i32, %c0_i32_0, %c0_i32_1 : i32, i32, i32, i32
  }
}

module attributes {stable_mosaic.version = 11 : i64} {
  func.func @_bn_stats_kernel(%arg0: i32, %arg1: memref<32x128xbf16, #tpu.memory_space<vmem>>, %arg2: memref<1x32xf32, #tpu.memory_space<vmem>>, %arg3: memref<1x32xf32, #tpu.memory_space<vmem>>, %arg4: memref<1x32xf32, #tpu.memory_space<vmem>>, %arg5: memref<1x32xf32, #tpu.memory_space<vmem>>, %arg6: memref<1x128xf32, #tpu.memory_space<vmem>>, %arg7: memref<1x128xf32, #tpu.memory_space<vmem>>) attributes {dimension_semantics = [#tpu.dimension_semantics<arbitrary>], iteration_bounds = array<i64: 1>, scalar_prefetch = 0 : i64, scratch_operands = 2 : i64, tpu.core_type = #tpu.core_type<tc>, window_params = [{transform_indices = @transform_0, window_bounds = array<i64: 32, 128>}, {pipeline_mode = #tpu.pipeline_mode<synchronous>, transform_indices = @transform_1, window_bounds = array<i64: 1, 32>}, {pipeline_mode = #tpu.pipeline_mode<synchronous>, transform_indices = @transform_2, window_bounds = array<i64: 1, 32>}, {pipeline_mode = #tpu.pipeline_mode<synchronous>, transform_indices = @transform_3, window_bounds = array<i64: 1, 32>}, {pipeline_mode = #tpu.pipeline_mode<synchronous>, transform_indices = @transform_4, window_bounds = array<i64: 1, 32>}]} {
    %c0_i32 = arith.constant 0 : i32
    %0 = arith.cmpi eq, %arg0, %c0_i32 : i32
    %1 = arith.extui %0 : i1 to i32
    %c0_i32_0 = arith.constant 0 : i32
    %2 = arith.cmpi ne, %1, %c0_i32_0 : i32
    scf.if %2 {
      %cst_13 = arith.constant 0.000000e+00 : f32
      %19 = vector.broadcast %cst_13 : f32 to vector<1x128xf32>
      %c0_14 = arith.constant 0 : index
      %c0_15 = arith.constant 0 : index
      %20 = vector.load %arg6[%c0_14, %c0_15] : memref<1x128xf32, #tpu.memory_space<vmem>>, vector<1x128xf32>
      tpu.vector_store %arg6[%c0_14, %c0_15], %19 {strides = array<i32>} : memref<1x128xf32, #tpu.memory_space<vmem>>, vector<1x128xf32>,
      %cst_16 = arith.constant 0.000000e+00 : f32
      %21 = vector.broadcast %cst_16 : f32 to vector<1x128xf32>
      %c0_17 = arith.constant 0 : index
      %c0_18 = arith.constant 0 : index
      %22 = vector.load %arg7[%c0_17, %c0_18] : memref<1x128xf32, #tpu.memory_space<vmem>>, vector<1x128xf32>
      tpu.vector_store %arg7[%c0_17, %c0_18], %21 {strides = array<i32>} : memref<1x128xf32, #tpu.memory_space<vmem>>, vector<1x128xf32>,
    } else {
    }
    %c0 = arith.constant 0 : index
    %c0_1 = arith.constant 0 : index
    %3 = vector.load %arg1[%c0, %c0_1] : memref<32x128xbf16, #tpu.memory_space<vmem>>, vector<32x128xbf16>
    %4 = arith.extf %3 : vector<32x128xbf16> to vector<32x128xf32>
    %c0_2 = arith.constant 0 : index
    %c0_3 = arith.constant 0 : index
    %5 = vector.load %arg6[%c0_2, %c0_3] : memref<1x128xf32, #tpu.memory_space<vmem>>, vector<1x128xf32>
    %cst = arith.constant dense<0.000000e+00> : vector<128xf32>
    %6 = vector.multi_reduction <add>, %4, %cst [0] : vector<32x128xf32> to vector<128xf32>
    %7 = vector.shape_cast %6 : vector<128xf32> to vector<1x128xf32>
    %8 = arith.addf %5, %7 : vector<1x128xf32>
    %c0_4 = arith.constant 0 : index
    %c0_5 = arith.constant 0 : index
    %9 = vector.load %arg6[%c0_4, %c0_5] : memref<1x128xf32, #tpu.memory_space<vmem>>, vector<1x128xf32>
    tpu.vector_store %arg6[%c0_4, %c0_5], %8 {strides = array<i32>} : memref<1x128xf32, #tpu.memory_space<vmem>>, vector<1x128xf32>,
    %c0_6 = arith.constant 0 : index
    %c0_7 = arith.constant 0 : index
    %10 = vector.load %arg7[%c0_6, %c0_7] : memref<1x128xf32, #tpu.memory_space<vmem>>, vector<1x128xf32>
    %11 = arith.mulf %4, %4 : vector<32x128xf32>
    %cst_8 = arith.constant dense<0.000000e+00> : vector<128xf32>
    %12 = vector.multi_reduction <add>, %11, %cst_8 [0] : vector<32x128xf32> to vector<128xf32>
    %13 = vector.shape_cast %12 : vector<128xf32> to vector<1x128xf32>
    %14 = arith.addf %10, %13 : vector<1x128xf32>
    %c0_9 = arith.constant 0 : index
    %c0_10 = arith.constant 0 : index
    %15 = vector.load %arg7[%c0_9, %c0_10] : memref<1x128xf32, #tpu.memory_space<vmem>>, vector<1x128xf32>
    tpu.vector_store %arg7[%c0_9, %c0_10], %14 {strides = array<i32>} : memref<1x128xf32, #tpu.memory_space<vmem>>, vector<1x128xf32>,
    %c0_i32_11 = arith.constant 0 : i32
    %16 = arith.cmpi eq, %arg0, %c0_i32_11 : i32
    %17 = arith.extui %16 : i1 to i32
    %c0_i32_12 = arith.constant 0 : i32
    %18 = arith.cmpi ne, %17, %c0_i32_12 : i32
    scf.if %18 {
      %cst_13 = arith.constant 0.000000e+00 : f32
      %19 = vector.broadcast %cst_13 : f32 to vector<1x32xf32>
      %cst_14 = arith.constant 0.000000e+00 : f32
      %20 = vector.broadcast %cst_14 : f32 to vector<1x32xf32>
      %c0_15 = arith.constant 0 : index
      %c0_16 = arith.constant 0 : index
      %21 = vector.load %arg6[%c0_15, %c0_16] : memref<1x128xf32, #tpu.memory_space<vmem>>, vector<1x32xf32>
      %22 = arith.addf %19, %21 : vector<1x32xf32>
      %c0_17 = arith.constant 0 : index
      %c0_18 = arith.constant 0 : index
      %23 = vector.load %arg7[%c0_17, %c0_18] : memref<1x128xf32, #tpu.memory_space<vmem>>, vector<1x32xf32>
      %24 = arith.addf %20, %23 : vector<1x32xf32>
      %c0_19 = arith.constant 0 : index
      %c32 = arith.constant 32 : index
      %25 = vector.load %arg6[%c0_19, %c32] : memref<1x128xf32, #tpu.memory_space<vmem>>, vector<1x32xf32>
      %26 = arith.addf %22, %25 : vector<1x32xf32>
      %c0_20 = arith.constant 0 : index
      %c32_21 = arith.constant 32 : index
      %27 = vector.load %arg7[%c0_20, %c32_21] : memref<1x128xf32, #tpu.memory_space<vmem>>, vector<1x32xf32>
      %28 = arith.addf %24, %27 : vector<1x32xf32>
      %c0_22 = arith.constant 0 : index
      %c64 = arith.constant 64 : index
      %29 = vector.load %arg6[%c0_22, %c64] : memref<1x128xf32, #tpu.memory_space<vmem>>, vector<1x32xf32>
      %30 = arith.addf %26, %29 : vector<1x32xf32>
      %c0_23 = arith.constant 0 : index
      %c64_24 = arith.constant 64 : index
      %31 = vector.load %arg7[%c0_23, %c64_24] : memref<1x128xf32, #tpu.memory_space<vmem>>, vector<1x32xf32>
      %32 = arith.addf %28, %31 : vector<1x32xf32>
      %c0_25 = arith.constant 0 : index
      %c96 = arith.constant 96 : index
      %33 = vector.load %arg6[%c0_25, %c96] : memref<1x128xf32, #tpu.memory_space<vmem>>, vector<1x32xf32>
      %34 = arith.addf %30, %33 : vector<1x32xf32>
      %c0_26 = arith.constant 0 : index
      %c96_27 = arith.constant 96 : index
      %35 = vector.load %arg7[%c0_26, %c96_27] : memref<1x128xf32, #tpu.memory_space<vmem>>, vector<1x32xf32>
      %36 = arith.addf %32, %35 : vector<1x32xf32>
      %cst_28 = arith.constant 7.812500e-03 : f32
      %37 = vector.broadcast %cst_28 : f32 to vector<1x32xf32>
      %38 = arith.mulf %34, %37 : vector<1x32xf32>
      %cst_29 = arith.constant 7.812500e-03 : f32
      %39 = vector.broadcast %cst_29 : f32 to vector<1x32xf32>
      %40 = arith.mulf %36, %39 : vector<1x32xf32>
      %41 = arith.mulf %38, %38 : vector<1x32xf32>
      %42 = arith.subf %40, %41 : vector<1x32xf32>
      %cst_30 = arith.constant 0.000000e+00 : f32
      %43 = vector.broadcast %cst_30 : f32 to vector<1x32xf32>
      %44 = arith.maximumf %42, %43 : vector<1x32xf32>
      %c0_31 = arith.constant 0 : index
      %c0_32 = arith.constant 0 : index
      %45 = vector.load %arg2[%c0_31, %c0_32] : memref<1x32xf32, #tpu.memory_space<vmem>>, vector<1x32xf32>
      %cst_33 = arith.constant 9.99999974E-6 : f32
      %46 = vector.broadcast %cst_33 : f32 to vector<1x32xf32>
      %47 = arith.addf %44, %46 : vector<1x32xf32>
      %48 = math.rsqrt %47 : vector<1x32xf32>
      %49 = arith.mulf %45, %48 : vector<1x32xf32>
      %c0_34 = arith.constant 0 : index
      %c0_35 = arith.constant 0 : index
      %50 = vector.load %arg4[%c0_34, %c0_35] : memref<1x32xf32, #tpu.memory_space<vmem>>, vector<1x32xf32>
      tpu.vector_store %arg4[%c0_34, %c0_35], %49 {strides = array<i32>} : memref<1x32xf32, #tpu.memory_space<vmem>>, vector<1x32xf32>,
      %c0_36 = arith.constant 0 : index
      %c0_37 = arith.constant 0 : index
      %51 = vector.load %arg3[%c0_36, %c0_37] : memref<1x32xf32, #tpu.memory_space<vmem>>, vector<1x32xf32>
      %52 = arith.mulf %38, %49 : vector<1x32xf32>
      %53 = arith.subf %51, %52 : vector<1x32xf32>
      %c0_38 = arith.constant 0 : index
      %c0_39 = arith.constant 0 : index
      %54 = vector.load %arg5[%c0_38, %c0_39] : memref<1x32xf32, #tpu.memory_space<vmem>>, vector<1x32xf32>
      tpu.vector_store %arg5[%c0_38, %c0_39], %53 {strides = array<i32>} : memref<1x32xf32, #tpu.memory_space<vmem>>, vector<1x32xf32>,
    } else {
    }
    return
  }
  func.func @transform_0(%arg0: i32) -> (i32, i32) {
    %c0_i32 = arith.constant 0 : i32
    %c0_i32_0 = arith.constant 0 : i32
    return %arg0, %c0_i32 : i32, i32
  }
  func.func @transform_1(%arg0: i32) -> (i32, i32) {
    %c0_i32 = arith.constant 0 : i32
    %c0_i32_0 = arith.constant 0 : i32
    %c0_i32_1 = arith.constant 0 : i32
    return %c0_i32, %c0_i32_0 : i32, i32
  }
  func.func @transform_2(%arg0: i32) -> (i32, i32) {
    %c0_i32 = arith.constant 0 : i32
    %c0_i32_0 = arith.constant 0 : i32
    %c0_i32_1 = arith.constant 0 : i32
    return %c0_i32, %c0_i32_0 : i32, i32
  }
  func.func @transform_3(%arg0: i32) -> (i32, i32) {
    %c0_i32 = arith.constant 0 : i32
    %c0_i32_0 = arith.constant 0 : i32
    %c0_i32_1 = arith.constant 0 : i32
    return %c0_i32, %c0_i32_0 : i32, i32
  }
  func.func @transform_4(%arg0: i32) -> (i32, i32) {
    %c0_i32 = arith.constant 0 : i32
    %c0_i32_0 = arith.constant 0 : i32
    %c0_i32_1 = arith.constant 0 : i32
    return %c0_i32, %c0_i32_0 : i32, i32
  }
}

module attributes {stable_mosaic.version = 11 : i64} {
  func.func @_bn_relu_conv3x3_kernel(%arg0: i32, %arg1: memref<1x8x8x32xbf16, #tpu.memory_space<vmem>>, %arg2: memref<1x32xf32, #tpu.memory_space<vmem>>, %arg3: memref<1x32xf32, #tpu.memory_space<vmem>>, %arg4: memref<288x32xbf16, #tpu.memory_space<vmem>>, %arg5: memref<1x8x8x32xf32, #tpu.memory_space<vmem>>, %arg6: memref<1x8x8x32xf32, #tpu.memory_space<vmem>>, %arg7: memref<1x10x10x32xf32, #tpu.memory_space<vmem>>, %arg8: memref<64x288xbf16, #tpu.memory_space<vmem>>) attributes {dimension_semantics = [#tpu.dimension_semantics<parallel>], iteration_bounds = array<i64: 2>, scalar_prefetch = 0 : i64, scratch_operands = 2 : i64, tpu.core_type = #tpu.core_type<tc>, window_params = [{transform_indices = @transform_0, window_bounds = array<i64: 1, 8, 8, 32>}, {pipeline_mode = #tpu.pipeline_mode<synchronous>, transform_indices = @transform_1, window_bounds = array<i64: 1, 32>}, {pipeline_mode = #tpu.pipeline_mode<synchronous>, transform_indices = @transform_2, window_bounds = array<i64: 1, 32>}, {pipeline_mode = #tpu.pipeline_mode<synchronous>, transform_indices = @transform_3, window_bounds = array<i64: 288, 32>}, {transform_indices = @transform_4, window_bounds = array<i64: 1, 8, 8, 32>}, {transform_indices = @transform_5, window_bounds = array<i64: 1, 8, 8, 32>}]} {
    %c0 = arith.constant 0 : index
    %c0_0 = arith.constant 0 : index
    %0 = vector.load %arg2[%c0, %c0_0] : memref<1x32xf32, #tpu.memory_space<vmem>>, vector<1x32xf32>
    %1 = vector.shape_cast %0 : vector<1x32xf32> to vector<1x1x32xf32>
    %c0_1 = arith.constant 0 : index
    %c0_2 = arith.constant 0 : index
    %2 = vector.load %arg3[%c0_1, %c0_2] : memref<1x32xf32, #tpu.memory_space<vmem>>, vector<1x32xf32>
    %3 = vector.shape_cast %2 : vector<1x32xf32> to vector<1x1x32xf32>
    %cst = arith.constant 0.000000e+00 : f32
    %4 = vector.broadcast %cst : f32 to vector<1x10x10x32xf32>
    %c0_3 = arith.constant 0 : index
    %c0_4 = arith.constant 0 : index
    %c0_5 = arith.constant 0 : index
    %c0_6 = arith.constant 0 : index
    %5 = vector.load %arg7[%c0_3, %c0_4, %c0_5, %c0_6] : memref<1x10x10x32xf32, #tpu.memory_space<vmem>>, vector<1x10x10x32xf32>
    tpu.vector_store %arg7[%c0_3, %c0_4, %c0_5, %c0_6], %4 {strides = array<i32>} : memref<1x10x10x32xf32, #tpu.memory_space<vmem>>, vector<1x10x10x32xf32>,
    %c0_7 = arith.constant 0 : index
    %c0_8 = arith.constant 0 : index
    %c0_9 = arith.constant 0 : index
    %c0_10 = arith.constant 0 : index
    %6 = vector.load %arg1[%c0_7, %c0_8, %c0_9, %c0_10] : memref<1x8x8x32xbf16, #tpu.memory_space<vmem>>, vector<1x8x8x32xbf16>
    %7 = vector.shape_cast %6 : vector<1x8x8x32xbf16> to vector<8x8x32xbf16>
    %8 = arith.extf %7 : vector<8x8x32xbf16> to vector<8x8x32xf32>
    %9 = vector.broadcast %1 : vector<1x1x32xf32> to vector<8x8x32xf32>
    %10 = arith.mulf %8, %9 : vector<8x8x32xf32>
    %11 = vector.broadcast %3 : vector<1x1x32xf32> to vector<8x8x32xf32>
    %12 = arith.addf %10, %11 : vector<8x8x32xf32>
    %cst_11 = arith.constant 0.000000e+00 : f32
    %13 = vector.broadcast %cst_11 : f32 to vector<8x8x32xf32>
    %14 = arith.maximumf %12, %13 : vector<8x8x32xf32>
    %c0_12 = arith.constant 0 : index
    %c1 = arith.constant 1 : index
    %c1_13 = arith.constant 1 : index
    %c0_14 = arith.constant 0 : index
    %15 = vector.load %arg7[%c0_12, %c1, %c1_13, %c0_14] : memref<1x10x10x32xf32, #tpu.memory_space<vmem>>, vector<1x8x8x32xf32>
    %16 = vector.shape_cast %15 : vector<1x8x8x32xf32> to vector<8x8x32xf32>
    %17 = vector.shape_cast %14 : vector<8x8x32xf32> to vector<1x8x8x32xf32>
    tpu.vector_store %arg7[%c0_12, %c1, %c1_13, %c0_14], %17 {strides = array<i32>} : memref<1x10x10x32xf32, #tpu.memory_space<vmem>>, vector<1x8x8x32xf32>,
    %c0_15 = arith.constant 0 : index
    %c0_16 = arith.constant 0 : index
    %c0_17 = arith.constant 0 : index
    %c0_18 = arith.constant 0 : index
    %18 = vector.load %arg7[%c0_15, %c0_16, %c0_17, %c0_18] : memref<1x10x10x32xf32, #tpu.memory_space<vmem>>, vector<1x8x8x32xf32>
    %19 = vector.shape_cast %18 : vector<1x8x8x32xf32> to vector<8x8x32xf32>
    %20 = vector.shape_cast %19 : vector<8x8x32xf32> to vector<64x32xf32>
    %21 = arith.truncf %20 : vector<64x32xf32> to vector<64x32xbf16>
    %c0_19 = arith.constant 0 : index
    %c0_20 = arith.constant 0 : index
    %22 = vector.load %arg8[%c0_19, %c0_20] : memref<64x288xbf16, #tpu.memory_space<vmem>>, vector<64x32xbf16>
    tpu.vector_store %arg8[%c0_19, %c0_20], %21 {strides = array<i32>} : memref<64x288xbf16, #tpu.memory_space<vmem>>, vector<64x32xbf16>,
    %c0_21 = arith.constant 0 : index
    %c0_22 = arith.constant 0 : index
    %c1_23 = arith.constant 1 : index
    %c0_24 = arith.constant 0 : index
    %23 = vector.load %arg7[%c0_21, %c0_22, %c1_23, %c0_24] : memref<1x10x10x32xf32, #tpu.memory_space<vmem>>, vector<1x8x8x32xf32>
    %24 = vector.shape_cast %23 : vector<1x8x8x32xf32> to vector<8x8x32xf32>
    %25 = vector.shape_cast %24 : vector<8x8x32xf32> to vector<64x32xf32>
    %26 = arith.truncf %25 : vector<64x32xf32> to vector<64x32xbf16>
    %c0_25 = arith.constant 0 : index
    %c32 = arith.constant 32 : index
    %27 = vector.load %arg8[%c0_25, %c32] : memref<64x288xbf16, #tpu.memory_space<vmem>>, vector<64x32xbf16>
    tpu.vector_store %arg8[%c0_25, %c32], %26 {strides = array<i32>} : memref<64x288xbf16, #tpu.memory_space<vmem>>, vector<64x32xbf16>,
    %c0_26 = arith.constant 0 : index
    %c0_27 = arith.constant 0 : index
    %c2 = arith.constant 2 : index
    %c0_28 = arith.constant 0 : index
    %28 = vector.load %arg7[%c0_26, %c0_27, %c2, %c0_28] : memref<1x10x10x32xf32, #tpu.memory_space<vmem>>, vector<1x8x8x32xf32>
    %29 = vector.shape_cast %28 : vector<1x8x8x32xf32> to vector<8x8x32xf32>
    %30 = vector.shape_cast %29 : vector<8x8x32xf32> to vector<64x32xf32>
    %31 = arith.truncf %30 : vector<64x32xf32> to vector<64x32xbf16>
    %c0_29 = arith.constant 0 : index
    %c64 = arith.constant 64 : index
    %32 = vector.load %arg8[%c0_29, %c64] : memref<64x288xbf16, #tpu.memory_space<vmem>>, vector<64x32xbf16>
    tpu.vector_store %arg8[%c0_29, %c64], %31 {strides = array<i32>} : memref<64x288xbf16, #tpu.memory_space<vmem>>, vector<64x32xbf16>,
    %c0_30 = arith.constant 0 : index
    %c1_31 = arith.constant 1 : index
    %c0_32 = arith.constant 0 : index
    %c0_33 = arith.constant 0 : index
    %33 = vector.load %arg7[%c0_30, %c1_31, %c0_32, %c0_33] : memref<1x10x10x32xf32, #tpu.memory_space<vmem>>, vector<1x8x8x32xf32>
    %34 = vector.shape_cast %33 : vector<1x8x8x32xf32> to vector<8x8x32xf32>
    %35 = vector.shape_cast %34 : vector<8x8x32xf32> to vector<64x32xf32>
    %36 = arith.truncf %35 : vector<64x32xf32> to vector<64x32xbf16>
    %c0_34 = arith.constant 0 : index
    %c96 = arith.constant 96 : index
    %37 = vector.load %arg8[%c0_34, %c96] : memref<64x288xbf16, #tpu.memory_space<vmem>>, vector<64x32xbf16>
    tpu.vector_store %arg8[%c0_34, %c96], %36 {strides = array<i32>} : memref<64x288xbf16, #tpu.memory_space<vmem>>, vector<64x32xbf16>,
    %c0_35 = arith.constant 0 : index
    %c1_36 = arith.constant 1 : index
    %c1_37 = arith.constant 1 : index
    %c0_38 = arith.constant 0 : index
    %38 = vector.load %arg7[%c0_35, %c1_36, %c1_37, %c0_38] : memref<1x10x10x32xf32, #tpu.memory_space<vmem>>, vector<1x8x8x32xf32>
    %39 = vector.shape_cast %38 : vector<1x8x8x32xf32> to vector<8x8x32xf32>
    %40 = vector.shape_cast %39 : vector<8x8x32xf32> to vector<64x32xf32>
    %41 = arith.truncf %40 : vector<64x32xf32> to vector<64x32xbf16>
    %c0_39 = arith.constant 0 : index
    %c128 = arith.constant 128 : index
    %42 = vector.load %arg8[%c0_39, %c128] : memref<64x288xbf16, #tpu.memory_space<vmem>>, vector<64x32xbf16>
    tpu.vector_store %arg8[%c0_39, %c128], %41 {strides = array<i32>} : memref<64x288xbf16, #tpu.memory_space<vmem>>, vector<64x32xbf16>,
    %c0_40 = arith.constant 0 : index
    %c1_41 = arith.constant 1 : index
    %c2_42 = arith.constant 2 : index
    %c0_43 = arith.constant 0 : index
    %43 = vector.load %arg7[%c0_40, %c1_41, %c2_42, %c0_43] : memref<1x10x10x32xf32, #tpu.memory_space<vmem>>, vector<1x8x8x32xf32>
    %44 = vector.shape_cast %43 : vector<1x8x8x32xf32> to vector<8x8x32xf32>
    %45 = vector.shape_cast %44 : vector<8x8x32xf32> to vector<64x32xf32>
    %46 = arith.truncf %45 : vector<64x32xf32> to vector<64x32xbf16>
    %c0_44 = arith.constant 0 : index
    %c160 = arith.constant 160 : index
    %47 = vector.load %arg8[%c0_44, %c160] : memref<64x288xbf16, #tpu.memory_space<vmem>>, vector<64x32xbf16>
    tpu.vector_store %arg8[%c0_44, %c160], %46 {strides = array<i32>} : memref<64x288xbf16, #tpu.memory_space<vmem>>, vector<64x32xbf16>,
    %c0_45 = arith.constant 0 : index
    %c2_46 = arith.constant 2 : index
    %c0_47 = arith.constant 0 : index
    %c0_48 = arith.constant 0 : index
    %48 = vector.load %arg7[%c0_45, %c2_46, %c0_47, %c0_48] : memref<1x10x10x32xf32, #tpu.memory_space<vmem>>, vector<1x8x8x32xf32>
    %49 = vector.shape_cast %48 : vector<1x8x8x32xf32> to vector<8x8x32xf32>
    %50 = vector.shape_cast %49 : vector<8x8x32xf32> to vector<64x32xf32>
    %51 = arith.truncf %50 : vector<64x32xf32> to vector<64x32xbf16>
    %c0_49 = arith.constant 0 : index
    %c192 = arith.constant 192 : index
    %52 = vector.load %arg8[%c0_49, %c192] : memref<64x288xbf16, #tpu.memory_space<vmem>>, vector<64x32xbf16>
    tpu.vector_store %arg8[%c0_49, %c192], %51 {strides = array<i32>} : memref<64x288xbf16, #tpu.memory_space<vmem>>, vector<64x32xbf16>,
    %c0_50 = arith.constant 0 : index
    %c2_51 = arith.constant 2 : index
    %c1_52 = arith.constant 1 : index
    %c0_53 = arith.constant 0 : index
    %53 = vector.load %arg7[%c0_50, %c2_51, %c1_52, %c0_53] : memref<1x10x10x32xf32, #tpu.memory_space<vmem>>, vector<1x8x8x32xf32>
    %54 = vector.shape_cast %53 : vector<1x8x8x32xf32> to vector<8x8x32xf32>
    %55 = vector.shape_cast %54 : vector<8x8x32xf32> to vector<64x32xf32>
    %56 = arith.truncf %55 : vector<64x32xf32> to vector<64x32xbf16>
    %c0_54 = arith.constant 0 : index
    %c224 = arith.constant 224 : index
    %57 = vector.load %arg8[%c0_54, %c224] : memref<64x288xbf16, #tpu.memory_space<vmem>>, vector<64x32xbf16>
    tpu.vector_store %arg8[%c0_54, %c224], %56 {strides = array<i32>} : memref<64x288xbf16, #tpu.memory_space<vmem>>, vector<64x32xbf16>,
    %c0_55 = arith.constant 0 : index
    %c2_56 = arith.constant 2 : index
    %c2_57 = arith.constant 2 : index
    %c0_58 = arith.constant 0 : index
    %58 = vector.load %arg7[%c0_55, %c2_56, %c2_57, %c0_58] : memref<1x10x10x32xf32, #tpu.memory_space<vmem>>, vector<1x8x8x32xf32>
    %59 = vector.shape_cast %58 : vector<1x8x8x32xf32> to vector<8x8x32xf32>
    %60 = vector.shape_cast %59 : vector<8x8x32xf32> to vector<64x32xf32>
    %61 = arith.truncf %60 : vector<64x32xf32> to vector<64x32xbf16>
    %c0_59 = arith.constant 0 : index
    %c256 = arith.constant 256 : index
    %62 = vector.load %arg8[%c0_59, %c256] : memref<64x288xbf16, #tpu.memory_space<vmem>>, vector<64x32xbf16>
    tpu.vector_store %arg8[%c0_59, %c256], %61 {strides = array<i32>} : memref<64x288xbf16, #tpu.memory_space<vmem>>, vector<64x32xbf16>,
    %c0_60 = arith.constant 0 : index
    %c0_61 = arith.constant 0 : index
    %63 = vector.load %arg8[%c0_60, %c0_61] : memref<64x288xbf16, #tpu.memory_space<vmem>>, vector<64x288xbf16>
    %c0_62 = arith.constant 0 : index
    %c0_63 = arith.constant 0 : index
    %64 = vector.load %arg4[%c0_62, %c0_63] : memref<288x32xbf16, #tpu.memory_space<vmem>>, vector<288x32xbf16>
    %cst_64 = arith.constant dense<0.000000e+00> : vector<64x32xf32>
    %65 = tpu.matmul %63, %64, %cst_64 {dimension_numbers = #tpu.dot_dimension_numbers<[1], [0], [0], [1], [0, 0, 1, 1], [], []>} : vector<64x288xbf16>, vector<288x32xbf16>, vector<64x32xf32> -> vector<64x32xf32>
    %c0_65 = arith.constant 0 : index
    %c0_66 = arith.constant 0 : index
    %c0_67 = arith.constant 0 : index
    %c0_68 = arith.constant 0 : index
    %66 = vector.load %arg5[%c0_65, %c0_66, %c0_67, %c0_68] : memref<1x8x8x32xf32, #tpu.memory_space<vmem>>, vector<1x8x8x32xf32>
    %67 = vector.shape_cast %66 : vector<1x8x8x32xf32> to vector<8x8x32xf32>
    %68 = vector.shape_cast %67 : vector<8x8x32xf32> to vector<64x32xf32>
    %69 = arith.addf %65, %68 : vector<64x32xf32>
    %70 = vector.shape_cast %69 : vector<64x32xf32> to vector<8x8x32xf32>
    %c0_69 = arith.constant 0 : index
    %c0_70 = arith.constant 0 : index
    %c0_71 = arith.constant 0 : index
    %c0_72 = arith.constant 0 : index
    %71 = vector.load %arg6[%c0_69, %c0_70, %c0_71, %c0_72] : memref<1x8x8x32xf32, #tpu.memory_space<vmem>>, vector<1x8x8x32xf32>
    %72 = vector.shape_cast %71 : vector<1x8x8x32xf32> to vector<8x8x32xf32>
    %73 = vector.shape_cast %70 : vector<8x8x32xf32> to vector<1x8x8x32xf32>
    tpu.vector_store %arg6[%c0_69, %c0_70, %c0_71, %c0_72], %73 {strides = array<i32>} : memref<1x8x8x32xf32, #tpu.memory_space<vmem>>, vector<1x8x8x32xf32>,
    return
  }
  func.func @transform_0(%arg0: i32) -> (i32, i32, i32, i32) {
    %c0_i32 = arith.constant 0 : i32
    %c0_i32_0 = arith.constant 0 : i32
    %c0_i32_1 = arith.constant 0 : i32
    %c0_i32_2 = arith.constant 0 : i32
    return %arg0, %c0_i32, %c0_i32_0, %c0_i32_1 : i32, i32, i32, i32
  }
  func.func @transform_1(%arg0: i32) -> (i32, i32) {
    %c0_i32 = arith.constant 0 : i32
    %c0_i32_0 = arith.constant 0 : i32
    %c0_i32_1 = arith.constant 0 : i32
    return %c0_i32, %c0_i32_0 : i32, i32
  }
  func.func @transform_2(%arg0: i32) -> (i32, i32) {
    %c0_i32 = arith.constant 0 : i32
    %c0_i32_0 = arith.constant 0 : i32
    %c0_i32_1 = arith.constant 0 : i32
    return %c0_i32, %c0_i32_0 : i32, i32
  }
  func.func @transform_3(%arg0: i32) -> (i32, i32) {
    %c0_i32 = arith.constant 0 : i32
    %c0_i32_0 = arith.constant 0 : i32
    %c0_i32_1 = arith.constant 0 : i32
    return %c0_i32, %c0_i32_0 : i32, i32
  }
  func.func @transform_4(%arg0: i32) -> (i32, i32, i32, i32) {
    %c0_i32 = arith.constant 0 : i32
    %c0_i32_0 = arith.constant 0 : i32
    %c0_i32_1 = arith.constant 0 : i32
    %c0_i32_2 = arith.constant 0 : i32
    return %arg0, %c0_i32, %c0_i32_0, %c0_i32_1 : i32, i32, i32, i32
  }
  func.func @transform_5(%arg0: i32) -> (i32, i32, i32, i32) {
    %c0_i32 = arith.constant 0 : i32
    %c0_i32_0 = arith.constant 0 : i32
    %c0_i32_1 = arith.constant 0 : i32
    %c0_i32_2 = arith.constant 0 : i32
    return %arg0, %c0_i32, %c0_i32_0, %c0_i32_1 : i32, i32, i32, i32
  }
}

</mosaic_0001>

<llo_original>
// kernel: preact_block_forward.4
$region0: #{preact_block_forward.4}
  #allocation0 [shape = 'u32[]', space=smem, size = 0x4, offset = 0x4, fixed_abs, tag = 'smem constant byte address 0x4 - core index']
  #allocation1 [shape = 'u32[144,128]{1,0:T(1,128)}', space=vmem, size = 0x12000, scoped, tag = 'internal scratch']
  #allocation2 [shape = 'f32[1,128]{1,0:T(1,128)}', space=vmem, size = 0x200, scoped, tag = 'scratch operand']
  #allocation3 [shape = 'f32[1,128]{1,0:T(1,128)}', space=vmem, size = 0x200, scoped, tag = 'scratch operand']
  %s0 = inlined_call_operand.vmem [shape: f32[64,128], index: 0, kind: input, shape index: {}]
  %s1 = inlined_call_operand.vmem [shape: f32[1,16], index: 1, kind: input, shape index: {}]
  %s2 = inlined_call_operand.vmem [shape: f32[1,16], index: 2, kind: input, shape index: {}]
  %s3 = inlined_call_operand.vmem [shape: f32[1,16], index: 3, kind: output, shape index: {0}]
  %s4 = inlined_call_operand.vmem [shape: f32[1,16], index: 4, kind: output, shape index: {1}]
  %5 = xla_tuple %s3, %s4
  %s6 = sld [smem:[#allocation0]]
  $region38: #{preact_block_forward.4} parent=0
    _
  %s8 = ssub.s32 1, %s6
  %s9 = scalar_select 0, %s8, %s6
  // Predicated region
  $region2: #{preact_block_forward.4} parent=0 // pred_check
    _
  $region3: #{preact_block_forward.4} parent=0 // pred_check_branch
    %11 = sbr.rel (0) target = $region5
  $region4: #{preact_block_forward.4} parent=0 // pred_region
    _
  $region5: #{preact_block_forward.4} parent=0 // pred_fallthru
    _
  // Predicated region
  $region6: #{preact_block_forward.4} parent=0 // pred_check
    _
  $region7: #{preact_block_forward.4} parent=0 // pred_check_branch
    %13 = sbr.rel (0) target = $region9
  $region8: #{preact_block_forward.4} parent=0 // pred_region
    _
  $region9: #{preact_block_forward.4} parent=0 // pred_fallthru
    _
  // Predicated region
  $region10: #{preact_block_forward.4} parent=0 // pred_check
    _
  $region11: #{preact_block_forward.4} parent=0 // pred_check_branch
    %15 = sbr.rel (0) target = $region13
  $region12: #{preact_block_forward.4} parent=0 // pred_region
    _
  $region13: #{preact_block_forward.4} parent=0 // pred_fallthru
    _
  %p16 = scmp.eq.s32.totalorder 0, 0
  // Predicated region
  $region14: #{preact_block_forward.4} parent=0 // pred_check
    %p17 = pneg %p16
  $region15: #{preact_block_forward.4} parent=0 // pred_check_branch
    %19 = sbr.rel (%p17) target = $region17
  $region16: #{preact_block_forward.4} parent=0 // pred_region
    %20 = vst [vmem:[#allocation2] sm:$0x1] 0.0
    %21 = vst [vmem:[#allocation3] sm:$0x1] 0.0
  $region17: #{preact_block_forward.4} parent=0 // pred_fallthru
    _
  %v22 = vld [vmem:[%s0] sm:$0xff]
  %v23 = vld [vmem:[%s0 + $0x8] sm:$0xff]
  %v24 = vld [vmem:[%s0 + $0x10] sm:$0xff]
  %v25 = vld [vmem:[%s0 + $0x18] sm:$0xff]
  %v26 = vld [vmem:[%s0 + $0x20] sm:$0xff]
  %v27 = vld [vmem:[%s0 + $0x28] sm:$0xff]
  %v28 = vld [vmem:[%s0 + $0x30] sm:$0xff]
  %v29 = vld [vmem:[%s0 + $0x38] sm:$0xff]
  %v30 = vld [vmem:[#allocation2] sm:$0x1]
  %v31 = vadd.f32 %v22, %v23
  %v32 = vadd.f32 %v31, %v24
  %v33 = vadd.f32 %v32, %v25
  %v34 = vadd.f32 %v33, %v26
  %v35 = vadd.f32 %v34, %v27
  %v36 = vadd.f32 %v35, %v28
  %v37 = vadd.f32 %v36, %v29
  %v38 = vrot.slane %v37, 4
  %v39 = vadd.f32 %v37, %v38
  %v40 = vrot.slane %v39, 2
  %v41 = vadd.f32 %v39, %v40
  %v42 = vrot.slane %v41, 1
  %v43 = vadd.f32 %v41, %v42
  %v44 = vadd.f32 %v30, %v43
  %45 = vst [vmem:[#allocation2] sm:$0x1] %v44
  %v46 = vld [vmem:[#allocation3] sm:$0x1]
  %v47 = vmul.f32 %v22, %v22
  %v48 = vmul.f32 %v23, %v23
  %v49 = vmul.f32 %v24, %v24
  %v50 = vmul.f32 %v25, %v25
  %v51 = vmul.f32 %v26, %v26
  %v52 = vmul.f32 %v27, %v27
  %v53 = vmul.f32 %v28, %v28
  %v54 = vmul.f32 %v29, %v29
  %v55 = vadd.f32 %v47, %v48
  %v56 = vadd.f32 %v55, %v49
  %v57 = vadd.f32 %v56, %v50
  %v58 = vadd.f32 %v57, %v51
  %v59 = vadd.f32 %v58, %v52
  %v60 = vadd.f32 %v59, %v53
  %v61 = vadd.f32 %v60, %v54
  %v62 = vrot.slane %v61, 4
  %v63 = vadd.f32 %v61, %v62
  %v64 = vrot.slane %v63, 2
  %v65 = vadd.f32 %v63, %v64
  %v66 = vrot.slane %v65, 1
  %v67 = vadd.f32 %v65, %v66
  %v68 = vadd.f32 %v46, %v67
  %69 = vst [vmem:[#allocation3] sm:$0x1] %v68
  // Predicated region
  $region18: #{preact_block_forward.4} parent=0 // pred_check
    %p70 = pneg %p16
  $region19: #{preact_block_forward.4} parent=0 // pred_check_branch
    %72 = sbr.rel (%p70) target = $region21
  $region20: #{preact_block_forward.4} parent=0 // pred_region
    %v73 = vld [vmem:[#allocation2] sm:$0x1]
    %v74 = vadd.f32 %v73, 0.0
    %v75 = vld [vmem:[#allocation3] sm:$0x1]
    %v76 = vadd.f32 %v75, 0.0
    %78 = vrot.lane.b32.xlu0 %v73, 112
    %v79 = vpop.permute.xlu0 %78
    %v81 = vadd.f32 %v74, %v79
    %83 = vrot.lane.b32.xlu0 %v75, 112
    %v84 = vpop.permute.xlu0 %83
    %v86 = vadd.f32 %v76, %v84
    %87 = vrot.lane.b32.xlu0 %v73, 96
    %v88 = vpop.permute.xlu0 %87
    %v90 = vadd.f32 %v81, %v88
    %91 = vrot.lane.b32.xlu0 %v75, 96
    %v92 = vpop.permute.xlu0 %91
    %v94 = vadd.f32 %v86, %v92
    %95 = vrot.lane.b32.xlu0 %v73, 80
    %v96 = vpop.permute.xlu0 %95
    %v98 = vadd.f32 %v90, %v96
    %99 = vrot.lane.b32.xlu0 %v75, 80
    %v100 = vpop.permute.xlu0 %99
    %v102 = vadd.f32 %v94, %v100
    %103 = vrot.lane.b32.xlu0 %v73, 64
    %v104 = vpop.permute.xlu0 %103
    %v106 = vadd.f32 %v98, %v104
    %107 = vrot.lane.b32.xlu0 %v75, 64
    %v108 = vpop.permute.xlu0 %107
    %v110 = vadd.f32 %v102, %v108
    %111 = vrot.lane.b32.xlu0 %v73, 48
    %v112 = vpop.permute.xlu0 %111
    %v114 = vadd.f32 %v106, %v112
    %115 = vrot.lane.b32.xlu0 %v75, 48
    %v116 = vpop.permute.xlu0 %115
    %v118 = vadd.f32 %v110, %v116
    %119 = vrot.lane.b32.xlu0 %v73, 32
    %v120 = vpop.permute.xlu0 %119
    %v122 = vadd.f32 %v114, %v120
    %123 = vrot.lane.b32.xlu0 %v75, 32
    %v124 = vpop.permute.xlu0 %123
    %v126 = vadd.f32 %v118, %v124
    %127 = vrot.lane.b32.xlu0 %v73, 16
    %v128 = vpop.permute.xlu0 %127
    %v130 = vadd.f32 %v122, %v128
    %131 = vrot.lane.b32.xlu0 %v75, 16
    %v132 = vpop.permute.xlu0 %131
    %v134 = vadd.f32 %v126, %v132
    %v135 = vmul.f32 %v130, 0.001953125
    %v136 = vmul.f32 %v134, 0.001953125
    %v137 = vmul.f32 %v135, %v135
    %v138 = vsub.f32 %v136, %v137
    %v139 = vmax.f32 %v138, 0.0
    %v140 = vld [vmem:[%s1] sm:$0x1]
    %v141 = vadd.f32 %v139, 1e-05
    %v142 = vrsqrt.pop %v141
    %v143 = vmul.f32 %v140, %v142
    %vm144 = vcmask 122880
    %145 = vst.msk [vmem:[%s3] sm:$0x1] %vm144, %v143
    %v146 = vld [vmem:[%s2] sm:$0x1]
    %v147 = vmul.f32 %v135, %v143
    %v148 = vsub.f32 %v146, %v147
    %149 = vst.msk [vmem:[%s4] sm:$0x1] %vm144, %v148
  $region21: #{preact_block_forward.4} parent=0 // pred_fallthru
    _
  // Predicated region
  $region22: #{preact_block_forward.4} parent=0 // pred_check
    _
  $region23: #{preact_block_forward.4} parent=0 // pred_check_branch
    %151 = sbr.rel (0) target = $region25
  $region24: #{preact_block_forward.4} parent=0 // pred_region
    _
  $region25: #{preact_block_forward.4} parent=0 // pred_fallthru
    _
  // Predicated region
  $region26: #{preact_block_forward.4} parent=0 // pred_check
    _
  $region27: #{preact_block_forward.4} parent=0 // pred_check_branch
    %153 = sbr.rel (0) target = $region29
  $region28: #{preact_block_forward.4} parent=0 // pred_region
    _
  $region29: #{preact_block_forward.4} parent=0 // pred_fallthru
    _
  // Predicated region
  $region30: #{preact_block_forward.4} parent=0 // pred_check
    _
  $region31: #{preact_block_forward.4} parent=0 // pred_check_branch
    %155 = sbr.rel (0) target = $region33
  $region32: #{preact_block_forward.4} parent=0 // pred_region
    _
  $region33: #{preact_block_forward.4} parent=0 // pred_fallthru
    _
  // Predicated region
  $region34: #{preact_block_forward.4} parent=0 // pred_check
    _
  $region35: #{preact_block_forward.4} parent=0 // pred_check_branch
    %157 = sbr.rel (0) target = $region37
  $region36: #{preact_block_forward.4} parent=0 // pred_region
    _
  $region37: #{preact_block_forward.4} parent=0 // pred_fallthru
    _

// kernel: preact_block_forward.6
$region0: #{preact_block_forward.6}
  #allocation0 [shape = 'u32[]', space=smem, size = 0x4, offset = 0x4, fixed_abs, tag = 'smem constant byte address 0x4 - core index']
  #allocation1 [shape = 'u32[144,128]{1,0:T(1,128)}', space=vmem, size = 0x12000, scoped, tag = 'internal scratch']
  #allocation2 [shape = 'f32[1,128]{1,0:T(1,128)}', space=vmem, size = 0x200, scoped, tag = 'scratch operand']
  #allocation3 [shape = 'f32[1,128]{1,0:T(1,128)}', space=vmem, size = 0x200, scoped, tag = 'scratch operand']
  %s0 = inlined_call_operand.vmem [shape: bf16[32,128], index: 0, kind: input, shape index: {}]
  %s1 = inlined_call_operand.vmem [shape: f32[1,32], index: 1, kind: input, shape index: {}]
  %s2 = inlined_call_operand.vmem [shape: f32[1,32], index: 2, kind: input, shape index: {}]
  %s3 = inlined_call_operand.vmem [shape: f32[1,32], index: 3, kind: output, shape index: {0}]
  %s4 = inlined_call_operand.vmem [shape: f32[1,32], index: 4, kind: output, shape index: {1}]
  %5 = xla_tuple %s3, %s4
  %s6 = sld [smem:[#allocation0]]
  $region38: #{preact_block_forward.6} parent=0
    _
  %s8 = ssub.s32 1, %s6
  %s9 = scalar_select 0, %s8, %s6
  // Predicated region
  $region2: #{preact_block_forward.6} parent=0 // pred_check
    _
  $region3: #{preact_block_forward.6} parent=0 // pred_check_branch
    %11 = sbr.rel (0) target = $region5
  $region4: #{preact_block_forward.6} parent=0 // pred_region
    _
  $region5: #{preact_block_forward.6} parent=0 // pred_fallthru
    _
  // Predicated region
  $region6: #{preact_block_forward.6} parent=0 // pred_check
    _
  $region7: #{preact_block_forward.6} parent=0 // pred_check_branch
    %13 = sbr.rel (0) target = $region9
  $region8: #{preact_block_forward.6} parent=0 // pred_region
    _
  $region9: #{preact_block_forward.6} parent=0 // pred_fallthru
    _
  // Predicated region
  $region10: #{preact_block_forward.6} parent=0 // pred_check
    _
  $region11: #{preact_block_forward.6} parent=0 // pred_check_branch
    %15 = sbr.rel (0) target = $region13
  $region12: #{preact_block_forward.6} parent=0 // pred_region
    _
  $region13: #{preact_block_forward.6} parent=0 // pred_fallthru
    _
  %p16 = scmp.eq.s32.totalorder 0, 0
  // Predicated region
  $region14: #{preact_block_forward.6} parent=0 // pred_check
    %p17 = pneg %p16
  $region15: #{preact_block_forward.6} parent=0 // pred_check_branch
    %19 = sbr.rel (%p17) target = $region17
  $region16: #{preact_block_forward.6} parent=0 // pred_region
    %20 = vst [vmem:[#allocation2] sm:$0x1] 0.0
    %21 = vst [vmem:[#allocation3] sm:$0x1] 0.0
  $region17: #{preact_block_forward.6} parent=0 // pred_fallthru
    _
  %v22 = vld [vmem:[%s0] sm:$0xf]
  %v23 = vld [vmem:[%s0 + $0x4] sm:$0xf]
  %v24 = vld [vmem:[%s0 + $0x8] sm:$0xf]
  %v25 = vld [vmem:[%s0 + $0xc] sm:$0xf]
  %v26 = vunpack.c.l.bf16 %v22
  %v27 = vunpack.c.l.bf16 %v23
  %v28 = vunpack.c.l.bf16 %v24
  %v29 = vunpack.c.l.bf16 %v25
  %v30 = vld [vmem:[#allocation2] sm:$0x1]
  %v31 = vadd.f32 %v26, %v27
  %v32 = vadd.f32 %v31, %v28
  %v33 = vadd.f32 %v32, %v29
  %v34 = vrot.slane %v33, 4
  %v35 = vadd.f32 %v33, %v34
  %v36 = vrot.slane %v35, 2
  %v37 = vadd.f32 %v35, %v36
  %v38 = vrot.slane %v37, 1
  %v39 = vadd.f32 %v37, %v38
  %v40 = vadd.f32 %v30, %v39
  %41 = vst [vmem:[#allocation2] sm:$0x1] %v40
  %v42 = vld [vmem:[#allocation3] sm:$0x1]
  %v43 = vmul.f32 %v26, %v26
  %v44 = vmul.f32 %v27, %v27
  %v45 = vmul.f32 %v28, %v28
  %v46 = vmul.f32 %v29, %v29
  %v47 = vadd.f32 %v43, %v44
  %v48 = vadd.f32 %v47, %v45
  %v49 = vadd.f32 %v48, %v46
  %v50 = vrot.slane %v49, 4
  %v51 = vadd.f32 %v49, %v50
  %v52 = vrot.slane %v51, 2
  %v53 = vadd.f32 %v51, %v52
  %v54 = vrot.slane %v53, 1
  %v55 = vadd.f32 %v53, %v54
  %v56 = vadd.f32 %v42, %v55
  %57 = vst [vmem:[#allocation3] sm:$0x1] %v56
  // Predicated region
  $region18: #{preact_block_forward.6} parent=0 // pred_check
    %p58 = pneg %p16
  $region19: #{preact_block_forward.6} parent=0 // pred_check_branch
    %60 = sbr.rel (%p58) target = $region21
  $region20: #{preact_block_forward.6} parent=0 // pred_region
    %v61 = vld [vmem:[#allocation2] sm:$0x1]
    %v62 = vadd.f32 %v61, 0.0
    %v63 = vld [vmem:[#allocation3] sm:$0x1]
    %v64 = vadd.f32 %v63, 0.0
    %66 = vrot.lane.b32.xlu0 %v61, 96
    %v67 = vpop.permute.xlu0 %66
    %v69 = vadd.f32 %v62, %v67
    %71 = vrot.lane.b32.xlu0 %v63, 96
    %v72 = vpop.permute.xlu0 %71
    %v74 = vadd.f32 %v64, %v72
    %75 = vrot.lane.b32.xlu0 %v61, 64
    %v76 = vpop.permute.xlu0 %75
    %v78 = vadd.f32 %v69, %v76
    %79 = vrot.lane.b32.xlu0 %v63, 64
    %v80 = vpop.permute.xlu0 %79
    %v82 = vadd.f32 %v74, %v80
    %83 = vrot.lane.b32.xlu0 %v61, 32
    %v84 = vpop.permute.xlu0 %83
    %v86 = vadd.f32 %v78, %v84
    %87 = vrot.lane.b32.xlu0 %v63, 32
    %v88 = vpop.permute.xlu0 %87
    %v90 = vadd.f32 %v82, %v88
    %v91 = vmul.f32 %v86, 0.0078125
    %v92 = vmul.f32 %v90, 0.0078125
    %v93 = vmul.f32 %v91, %v91
    %v94 = vsub.f32 %v92, %v93
    %v95 = vmax.f32 %v94, 0.0
    %v96 = vld [vmem:[%s1] sm:$0x1]
    %v97 = vadd.f32 %v95, 1e-05
    %v98 = vrsqrt.pop %v97
    %v99 = vmul.f32 %v96, %v98
    %vm100 = vcmask 253952
    %101 = vst.msk [vmem:[%s3] sm:$0x1] %vm100, %v99
    %v102 = vld [vmem:[%s2] sm:$0x1]
    %v103 = vmul.f32 %v91, %v99
    %v104 = vsub.f32 %v102, %v103
    %105 = vst.msk [vmem:[%s4] sm:$0x1] %vm100, %v104
  $region21: #{preact_block_forward.6} parent=0 // pred_fallthru
    _
  // Predicated region
  $region22: #{preact_block_forward.6} parent=0 // pred_check
    _
  $region23: #{preact_block_forward.6} parent=0 // pred_check_branch
    %107 = sbr.rel (0) target = $region25
  $region24: #{preact_block_forward.6} parent=0 // pred_region
    _
  $region25: #{preact_block_forward.6} parent=0 // pred_fallthru
    _
  // Predicated region
  $region26: #{preact_block_forward.6} parent=0 // pred_check
    _
  $region27: #{preact_block_forward.6} parent=0 // pred_check_branch
    %109 = sbr.rel (0) target = $region29
  $region28: #{preact_block_forward.6} parent=0 // pred_region
    _
  $region29: #{preact_block_forward.6} parent=0 // pred_fallthru
    _
  // Predicated region
  $region30: #{preact_block_forward.6} parent=0 // pred_check
    _
  $region31: #{preact_block_forward.6} parent=0 // pred_check_branch
    %111 = sbr.rel (0) target = $region33
  $region32: #{preact_block_forward.6} parent=0 // pred_region
    _
  $region33: #{preact_block_forward.6} parent=0 // pred_fallthru
    _
  // Predicated region
  $region34: #{preact_block_forward.6} parent=0 // pred_check
    _
  $region35: #{preact_block_forward.6} parent=0 // pred_check_branch
    %113 = sbr.rel (0) target = $region37
  $region36: #{preact_block_forward.6} parent=0 // pred_region
    _
  $region37: #{preact_block_forward.6} parent=0 // pred_fallthru
    _

// kernel: preact_block_forward.7
$region0: #{preact_block_forward.7}
  #allocation0 [shape = 'u32[]', space=smem, size = 0x4, offset = 0x4, fixed_abs, tag = 'smem constant byte address 0x4 - core index']
  #allocation1 [shape = 'u32[144,128]{1,0:T(1,128)}', space=vmem, size = 0x12000, scoped, tag = 'internal scratch']
  #allocation2 [shape = 'f32[1,10,10,32]{3,2,1,0:T(8,128)}', space=vmem, size = 0x14000, scoped, tag = 'scratch operand']
  #allocation3 [shape = 'bf16[64,288]{1,0:T(8,128)(2,1)}', space=vmem, size = 0xc000, scoped, tag = 'scratch operand']
  %s0 = inlined_call_operand.vmem [shape: bf16[2,8,8,32], index: 0, kind: input, shape index: {}]
  %s1 = inlined_call_operand.vmem [shape: f32[1,32], index: 1, kind: input, shape index: {}]
  %s2 = inlined_call_operand.vmem [shape: f32[1,32], index: 2, kind: input, shape index: {}]
  %s3 = inlined_call_operand.vmem [shape: bf16[288,32], index: 3, kind: input, shape index: {}]
  %s4 = inlined_call_operand.vmem [shape: f32[2,8,8,32], index: 4, kind: input, shape index: {}]
  %s5 = inlined_call_operand.hbm [shape: f32[2,8,8,32], index: 5, kind: output, shape index: {}]
  %s6 = sld [smem:[#allocation0]]
  $region53: #{preact_block_forward.7} parent=0
    _
  %s8 = ssub.s32 1, %s6
  %s9 = scalar_select 0, %s8, %s6
  $region1: #{preact_block_forward.7} parent=0
    #allocation4 [shape = 'u8[65536]{0}', space=vmem, size = 0x10000, scoped, tag = 'output window, operand 0']
    #allocation5 [shape = 's32[2]{0}', space=sflag, size = 0x8, scoped, tag = 'scoped memory for preact_block_forward.7']
    %10 = vsyncpa [#allocation5], 0
    %s11 = scalar_lea.sflag [#allocation5], 1
    %12 = vsyncpa %s11, 0
    loop: start=0, step=1, limit=4
    $region2: #{preact_block_forward.7} parent=1 // loop_pre_header
      _
    $region3: #{preact_block_forward.7} parent=1 // loop_header
      %s14 = sphi 0, %s18
      %p15 = scmp.ge.s32.totalorder %s14, 4
      %s24 = sphi 0, %s26
      %s27 = sphi 0, %s24
      %s28 = sphi 0, %s27
      %s44 = sphi 0, %s28
      %s48 = sphi 0, %s48
      %s50 = sphi 0, %s48
      %s51 = sphi 0, %s50
      %s65 = sphi 0, %s51
      %s69 = sphi 0, %s69
      %s71 = sphi 0, %s69
      %s72 = sphi 0, %s71
      %s86 = sphi 0, %s72
      %s90 = sphi 0, %s90
      %s92 = sphi 0, %s90
      %s93 = sphi 0, %s92
      %s107 = sphi 0, %s93
      %s113 = sphi 0, %s115
      %s116 = sphi 0, %s113
      %s117 = sphi 0, %s116
      %s133 = sphi 0, %s117
      %s139 = sphi 0, %s141
      %s142 = sphi 0, %s139
      %s143 = sphi 0, %s142
      %s159 = sphi 0, %s143
    $region4: #{preact_block_forward.7} parent=1 // loop_header_branch
      %17 = sbr.rel (%p15) target = $region8
    $region5: #{preact_block_forward.7} parent=1 // loop_body
      %s19 = ssub.s32 %s14, 1
      %s20 = ssub.s32 %s14, 2
      %s21 = sadd.s32 %s14, 1
      %s22 = ssub.s32 %s14, %s21
      %p23 = scmp.eq.s32.totalorder %s22, 0
      %s25 = sadd.s32 %s24, 1
      %s26 = scalar_select %p23, %s24, %s25
      %p29 = pneg %p23
      %p30 = scmp.eq.s32.totalorder %s14, 1
      %p31 = por %p29, %p30
      %p32 = scmp.ne.s32.totalorder %s24, %s27
      %p33 = scmp.eq.s32.totalorder %s14, 0
      %p34 = por %p32, %p33
      %p35 = scmp.ne.s32.totalorder %s24, %s27
      %p36 = scmp.eq.s32.totalorder %s19, 1
      %p37 = por %p35, %p36
      %p38 = scmp.ne.s32.totalorder %s27, %s28
      %p39 = scmp.eq.s32.totalorder %s19, 0
      %p40 = por %p38, %p39
      %p41 = scmp.ne.s32.totalorder %s27, %s28
      %p42 = scmp.eq.s32.totalorder %s20, 1
      %p43 = por %p41, %p42
      %p45 = scmp.ne.s32.totalorder %s28, %s44
      %p46 = scmp.eq.s32.totalorder %s20, 0
      %p47 = por %p45, %p46
      %s49 = sadd.s32 %s48, 1
      %p52 = scmp.eq.s32.totalorder %s14, 1
      %p53 = scmp.ne.s32.totalorder %s48, %s50
      %p54 = scmp.eq.s32.totalorder %s14, 0
      %p55 = por %p53, %p54
      %p56 = scmp.ne.s32.totalorder %s48, %s50
      %p57 = scmp.eq.s32.totalorder %s19, 1
      %p58 = por %p56, %p57
      %p59 = scmp.ne.s32.totalorder %s50, %s51
      %p60 = scmp.eq.s32.totalorder %s19, 0
      %p61 = por %p59, %p60
      %p62 = scmp.ne.s32.totalorder %s50, %s51
      %p63 = scmp.eq.s32.totalorder %s20, 1
      %p64 = por %p62, %p63
      %p66 = scmp.ne.s32.totalorder %s51, %s65
      %p67 = scmp.eq.s32.totalorder %s20, 0
      %p68 = por %p66, %p67
      %s70 = sadd.s32 %s69, 1
      %p73 = scmp.eq.s32.totalorder %s14, 1
      %p74 = scmp.ne.s32.totalorder %s69, %s71
      %p75 = scmp.eq.s32.totalorder %s14, 0
      %p76 = por %p74, %p75
      %p77 = scmp.ne.s32.totalorder %s69, %s71
      %p78 = scmp.eq.s32.totalorder %s19, 1
      %p79 = por %p77, %p78
      %p80 = scmp.ne.s32.totalorder %s71, %s72
      %p81 = scmp.eq.s32.totalorder %s19, 0
      %p82 = por %p80, %p81
      %p83 = scmp.ne.s32.totalorder %s71, %s72
      %p84 = scmp.eq.s32.totalorder %s20, 1
      %p85 = por %p83, %p84
      %p87 = scmp.ne.s32.totalorder %s72, %s86
      %p88 = scmp.eq.s32.totalorder %s20, 0
      %p89 = por %p87, %p88
      %s91 = sadd.s32 %s90, 1
      %p94 = scmp.eq.s32.totalorder %s14, 1
      %p95 = scmp.ne.s32.totalorder %s90, %s92
      %p96 = scmp.eq.s32.totalorder %s14, 0
      %p97 = por %p95, %p96
      %p98 = scmp.ne.s32.totalorder %s90, %s92
      %p99 = scmp.eq.s32.totalorder %s19, 1
      %p100 = por %p98, %p99
      %p101 = scmp.ne.s32.totalorder %s92, %s93
      %p102 = scmp.eq.s32.totalorder %s19, 0
      %p103 = por %p101, %p102
      %p104 = scmp.ne.s32.totalorder %s92, %s93
      %p105 = scmp.eq.s32.totalorder %s20, 1
      %p106 = por %p104, %p105
      %p108 = scmp.ne.s32.totalorder %s93, %s107
      %p109 = scmp.eq.s32.totalorder %s20, 0
      %p110 = por %p108, %p109
      %s111 = ssub.s32 %s14, %s21
      %p112 = scmp.eq.s32.totalorder %s111, 0
      %s114 = sadd.s32 %s113, 1
      %s115 = scalar_select %p112, %s113, %s114
      %p118 = pneg %p112
      %p119 = scmp.eq.s32.totalorder %s14, 1
      %p120 = por %p118, %p119
      %p121 = scmp.ne.s32.totalorder %s113, %s116
      %p122 = scmp.eq.s32.totalorder %s14, 0
      %p123 = por %p121, %p122
      %p124 = scmp.ne.s32.totalorder %s113, %s116
      %p125 = scmp.eq.s32.totalorder %s19, 1
      %p126 = por %p124, %p125
      %p127 = scmp.ne.s32.totalorder %s116, %s117
      %p128 = scmp.eq.s32.totalorder %s19, 0
      %p129 = por %p127, %p128
      %p130 = scmp.ne.s32.totalorder %s116, %s117
      %p131 = scmp.eq.s32.totalorder %s20, 1
      %p132 = por %p130, %p131
      %p134 = scmp.ne.s32.totalorder %s117, %s133
      %p135 = scmp.eq.s32.totalorder %s20, 0
      %p136 = por %p134, %p135
      %s137 = ssub.s32 %s14, %s21
      %p138 = scmp.eq.s32.totalorder %s137, 0
      %s140 = sadd.s32 %s139, 1
      %s141 = scalar_select %p138, %s139, %s140
      %p144 = pneg %p138
      %p145 = scmp.eq.s32.totalorder %s14, 1
      %p146 = por %p144, %p145
      %p147 = scmp.ne.s32.totalorder %s139, %s142
      %p148 = scmp.eq.s32.totalorder %s14, 0
      %p149 = por %p147, %p148
      %p150 = scmp.ne.s32.totalorder %s139, %s142
      %p151 = scmp.eq.s32.totalorder %s19, 1
      %p152 = por %p150, %p151
      %p153 = scmp.ne.s32.totalorder %s142, %s143
      %p154 = scmp.eq.s32.totalorder %s19, 0
      %p155 = por %p153, %p154
      %p156 = scmp.ne.s32.totalorder %s142, %s143
      %p157 = scmp.eq.s32.totalorder %s20, 1
      %p158 = por %p156, %p157
      %p160 = scmp.ne.s32.totalorder %s143, %s159
      %p161 = scmp.eq.s32.totalorder %s20, 0
      %p162 = por %p160, %p161
      %p163 = scmp.le.s32.totalorder 1, %s14
      %p164 = scmp.lt.s32.totalorder %s14, 3
      %p165 = pnand %p163, %p164
      %p166 = pneg %p165
      // Predicated region
      $region9: #{preact_block_forward.7} parent=5 // pred_check
        _
      $region10: #{preact_block_forward.7} parent=5 // pred_check_branch
        %168 = sbr.rel (%p165) target = $region12
      $region11: #{preact_block_forward.7} parent=5 // pred_region
        %s169 = ssub.s32 %s14, 1
        // Predicated region
        $region13: #{preact_block_forward.7} parent=11 // pred_check
          %p170 = pneg %p61
        $region14: #{preact_block_forward.7} parent=11 // pred_check_branch
          %172 = sbr.rel (%p170) target = $region16
        $region15: #{preact_block_forward.7} parent=11 // pred_region
          _
        $region16: #{preact_block_forward.7} parent=11 // pred_fallthru
          _
        // Predicated region
        $region17: #{preact_block_forward.7} parent=11 // pred_check
          %p173 = pneg %p82
        $region18: #{preact_block_forward.7} parent=11 // pred_check_branch
          %175 = sbr.rel (%p173) target = $region20
        $region19: #{preact_block_forward.7} parent=11 // pred_region
          _
        $region20: #{preact_block_forward.7} parent=11 // pred_fallthru
          _
        // Predicated region
        $region21: #{preact_block_forward.7} parent=11 // pred_check
          %p176 = pneg %p103
        $region22: #{preact_block_forward.7} parent=11 // pred_check_branch
          %178 = sbr.rel (%p176) target = $region24
        $region23: #{preact_block_forward.7} parent=11 // pred_region
          _
        $region24: #{preact_block_forward.7} parent=11 // pred_fallthru
          _
      $region12: #{preact_block_forward.7} parent=5 // pred_fallthru
        _
      %p179 = scmp.lt.s32.totalorder %s14, 2
      // Predicated region
      $region25: #{preact_block_forward.7} parent=5 // pred_check
        %p180 = pneg %p179
      $region26: #{preact_block_forward.7} parent=5 // pred_check_branch
        %182 = sbr.rel (%p180) target = $region28
      $region27: #{preact_block_forward.7} parent=5 // pred_region
        // Predicated region
        $region29: #{preact_block_forward.7} parent=27 // pred_check
          %p183 = pneg %p34
        $region30: #{preact_block_forward.7} parent=27 // pred_check_branch
          %185 = sbr.rel (%p183) target = $region32
        $region31: #{preact_block_forward.7} parent=27 // pred_region
          %p186 = scmp.lt.s32.totalorder %s14, 1
          %s187 = scalar_select %p186, %s14, 1
          %s188 = smul.addr %s187, 8
          %s189 = smul.addr %s188, 4
          %s190 = scalar_lea.vmem %s0, %s189
        $region32: #{preact_block_forward.7} parent=27 // pred_fallthru
          _
        // Predicated region
        $region33: #{preact_block_forward.7} parent=27 // pred_check
          %p191 = pneg %p123
        $region34: #{preact_block_forward.7} parent=27 // pred_check_branch
          %193 = sbr.rel (%p191) target = $region36
        $region35: #{preact_block_forward.7} parent=27 // pred_region
          %p194 = scmp.lt.s32.totalorder %s14, 1
          %s195 = scalar_select %p194, %s14, 1
          %s196 = smul.addr %s195, 8
          %s197 = smul.addr %s196, 8
          %s198 = scalar_lea.vmem %s4, %s197
        $region36: #{preact_block_forward.7} parent=27 // pred_fallthru
          _
      $region28: #{preact_block_forward.7} parent=5 // pred_fallthru
        _
      %p199 = scmp.le.s32.totalorder 1, %s14
      %p200 = scmp.lt.s32.totalorder %s14, 3
      %p201 = pnand %p199, %p200
      %p202 = pneg %p201
      // Predicated region
      $region37: #{preact_block_forward.7} parent=5 // pred_check
        _
      $region38: #{preact_block_forward.7} parent=5 // pred_check_branch
        %204 = sbr.rel (%p201) target = $region40
      $region39: #{preact_block_forward.7} parent=5 // pred_region
        %s205 = ssub.s32 %s14, 1
        %p206 = scmp.lt.s32.totalorder %s19, 1
        %s207 = scalar_select %p206, %s19, 1
        %s208 = smul.addr %s207, 8
        %s209 = smul.addr %s208, 4
        %s210 = scalar_lea.vmem %s0, %s209
        %p211 = pneg %p40
        %p212 = pneg %p37
        %p213 = pneg %p61
        %p214 = pneg %p58
        %p215 = pneg %p82
        %p216 = pneg %p79
        %p217 = pneg %p103
        %p218 = pneg %p100
        %p219 = scmp.lt.s32.totalorder %s19, 1
        %s220 = scalar_select %p219, %s19, 1
        %s221 = smul.addr %s220, 8
        %s222 = smul.addr %s221, 8
        %s223 = scalar_lea.vmem %s4, %s222
        %p224 = pneg %p129
        %p225 = pneg %p126
        %p226 = pneg %p155
        %p227 = pneg %p152
        %s228 = sand.u32 %s142, 1
        %s229 = scalar_lea.sflag [#allocation5], %s228
        %s230 = sand.u32 %s142, 1
        %s231 = smul.addr %s230, 64
        %s232 = scalar_lea.vmem [#allocation4], %s231
        %p233 = scmp.lt.s32.totalorder %s19, 1
        %s234 = scalar_select %p233, %s19, 1
        %s235 = smul.addr %s234, 8
        %s236 = smul.addr %s235, 4
        %s237 = scalar_lea.vmem %s0, %s236
        %p238 = scmp.lt.s32.totalorder %s19, 1
        %s239 = scalar_select %p238, %s19, 1
        %s240 = smul.addr %s239, 8
        %s241 = smul.addr %s240, 8
        %s242 = scalar_lea.vmem %s4, %s241
        %v244 = vld [vmem:[%s1] sm:$0x1]
        %v245 = vld [vmem:[%s2] sm:$0x1]
        %vm246 = vcmask 261120
        %247 = vst.msk [vmem:[#allocation2] sm:$0xff] %vm246, 0.0
        %vm248 = vcmask 254976
        %249 = vst.msk [vmem:[#allocation2 + $0x8] sm:$0x3] %vm248, 0.0
        %250 = vst.msk [vmem:[#allocation2 + $0x10] sm:$0xff] %vm246, 0.0
        %251 = vst.msk [vmem:[#allocation2 + $0x18] sm:$0x3] %vm248, 0.0
        %252 = vst.msk [vmem:[#allocation2 + $0x20] sm:$0xff] %vm246, 0.0
        %253 = vst.msk [vmem:[#allocation2 + $0x28] sm:$0x3] %vm248, 0.0
        %254 = vst.msk [vmem:[#allocation2 + $0x30] sm:$0xff] %vm246, 0.0
        %255 = vst.msk [vmem:[#allocation2 + $0x38] sm:$0x3] %vm248, 0.0
        %256 = vst.msk [vmem:[#allocation2 + $0x40] sm:$0xff] %vm246, 0.0
        %257 = vst.msk [vmem:[#allocation2 + $0x48] sm:$0x3] %vm248, 0.0
        %258 = vst.msk [vmem:[#allocation2 + $0x50] sm:$0xff] %vm246, 0.0
        %259 = vst.msk [vmem:[#allocation2 + $0x58] sm:$0x3] %vm248, 0.0
        %260 = vst.msk [vmem:[#allocation2 + $0x60] sm:$0xff] %vm246, 0.0
        %261 = vst.msk [vmem:[#allocation2 + $0x68] sm:$0x3] %vm248, 0.0
        %262 = vst.msk [vmem:[#allocation2 + $0x70] sm:$0xff] %vm246, 0.0
        %263 = vst.msk [vmem:[#allocation2 + $0x78] sm:$0x3] %vm248, 0.0
        %264 = vst.msk [vmem:[#allocation2 + $0x80] sm:$0xff] %vm246, 0.0
        %265 = vst.msk [vmem:[#allocation2 + $0x88] sm:$0x3] %vm248, 0.0
        %266 = vst.msk [vmem:[#allocation2 + $0x90] sm:$0xff] %vm246, 0.0
        %267 = vst.msk [vmem:[#allocation2 + $0x98] sm:$0x3] %vm248, 0.0
        %v268 = vld [vmem:[%s237] sm:$0xf]
        %v269 = vld [vmem:[%s237 + $0x4] sm:$0xf]
        %v270 = vld [vmem:[%s237 + $0x8] sm:$0xf]
        %v271 = vld [vmem:[%s237 + $0xc] sm:$0xf]
        %v272 = vld [vmem:[%s237 + $0x10] sm:$0xf]
        %v273 = vld [vmem:[%s237 + $0x14] sm:$0xf]
        %v274 = vld [vmem:[%s237 + $0x18] sm:$0xf]
        %v275 = vld [vmem:[%s237 + $0x1c] sm:$0xf]
        %v276 = vunpack.c.l.bf16 %v268
        %v277 = vunpack.c.l.bf16 %v269
        %v278 = vunpack.c.l.bf16 %v270
        %v279 = vunpack.c.l.bf16 %v271
        %v280 = vunpack.c.l.bf16 %v272
        %v281 = vunpack.c.l.bf16 %v273
        %v282 = vunpack.c.l.bf16 %v274
        %v283 = vunpack.c.l.bf16 %v275
        %v285 = vlaneseq
        %v286 = vshrl.u32 %v285, 7
        %v287 = vsub.s32 0, %v286
        %v288 = vrot.slane %v244, %v287
        %v290 = vmul.f32 %v276, %v288
        %v291 = vmul.f32 %v277, %v288
        %v292 = vmul.f32 %v278, %v288
        %v293 = vmul.f32 %v279, %v288
        %v294 = vmul.f32 %v280, %v288
        %v295 = vmul.f32 %v281, %v288
        %v296 = vmul.f32 %v282, %v288
        %v297 = vmul.f32 %v283, %v288
        %v299 = vlaneseq
        %v300 = vshrl.u32 %v299, 7
        %v301 = vsub.s32 0, %v300
        %v302 = vrot.slane %v245, %v301
        %v304 = vadd.f32 %v290, %v302
        %v305 = vadd.f32 %v291, %v302
        %v306 = vadd.f32 %v292, %v302
        %v307 = vadd.f32 %v293, %v302
        %v308 = vadd.f32 %v294, %v302
        %v309 = vadd.f32 %v295, %v302
        %v310 = vadd.f32 %v296, %v302
        %v311 = vadd.f32 %v297, %v302
        %v312 = vmax.f32 %v304, 0.0
        %v313 = vmax.f32 %v305, 0.0
        %v314 = vmax.f32 %v306, 0.0
        %v315 = vmax.f32 %v307, 0.0
        %v316 = vmax.f32 %v308, 0.0
        %v317 = vmax.f32 %v309, 0.0
        %v318 = vmax.f32 %v310, 0.0
        %v319 = vmax.f32 %v311, 0.0
        %s320 = scalar_lea.vmem [#allocation2], 16
        %321 = vst.msk [vmem:[%s320 + $0x1] sm:$0xff] %vm246, %v312
        %322 = vst.msk [vmem:[%s320 + $0x11] sm:$0xff] %vm246, %v313
        %323 = vst.msk [vmem:[%s320 + $0x21] sm:$0xff] %vm246, %v314
        %324 = vst.msk [vmem:[%s320 + $0x31] sm:$0xff] %vm246, %v315
        %325 = vst.msk [vmem:[%s320 + $0x41] sm:$0xff] %vm246, %v316
        %326 = vst.msk [vmem:[%s320 + $0x51] sm:$0xff] %vm246, %v317
        %327 = vst.msk [vmem:[%s320 + $0x61] sm:$0xff] %vm246, %v318
        %328 = vst.msk [vmem:[%s320 + $0x71] sm:$0xff] %vm246, %v319
        %v329 = vld [vmem:[#allocation2] sm:$0xff]
        %v330 = vld [vmem:[#allocation2 + $0x10] sm:$0xff]
        %v331 = vld [vmem:[#allocation2 + $0x20] sm:$0xff]
        %v332 = vld [vmem:[#allocation2 + $0x30] sm:$0xff]
        %v333 = vld [vmem:[#allocation2 + $0x40] sm:$0xff]
        %v334 = vld [vmem:[#allocation2 + $0x50] sm:$0xff]
        %v335 = vld [vmem:[#allocation2 + $0x60] sm:$0xff]
        %v336 = vld [vmem:[#allocation2 + $0x70] sm:$0xff]
        %v337 = vpack.c.bf16 %v330, %v329
        %v338 = vpack.c.bf16 %v332, %v331
        %v339 = vpack.c.bf16 %v334, %v333
        %v340 = vpack.c.bf16 %v336, %v335
        %v345 = vunpack.c.l.b16 %v337
        %v346 = vunpack.c.h.b16 %v337
        %v347 = vunpack.c.l.b16 %v338
        %v348 = vunpack.c.h.b16 %v338
        %v349 = vunpack.c.l.b16 %v339
        %v350 = vunpack.c.h.b16 %v339
        %v351 = vunpack.c.l.b16 %v340
        %v352 = vunpack.c.h.b16 %v340
        %v353 = vpack.c.b16 %v345, %v345
        %v354 = vpack.c.b16 %v346, %v346
        %v355 = vpack.c.b16 %v347, %v347
        %v356 = vpack.c.b16 %v348, %v348
        %v357 = vpack.c.b16 %v349, %v349
        %v358 = vpack.c.b16 %v350, %v350
        %v359 = vpack.c.b16 %v351, %v351
        %v360 = vpack.c.b16 %v352, %v352
        %vm369 = vcmask 257024
        %370 = vst.msk [vmem:[#allocation3] sm:$0xf] %vm369, %v353
        %371 = vst.msk [vmem:[#allocation3 + $0xc] sm:$0xf] %vm369, %v354
        %372 = vst.msk [vmem:[#allocation3 + $0x18] sm:$0xf] %vm369, %v355
        %373 = vst.msk [vmem:[#allocation3 + $0x24] sm:$0xf] %vm369, %v356
        %374 = vst.msk [vmem:[#allocation3 + $0x30] sm:$0xf] %vm369, %v357
        %375 = vst.msk [vmem:[#allocation3 + $0x3c] sm:$0xf] %vm369, %v358
        %376 = vst.msk [vmem:[#allocation3 + $0x48] sm:$0xf] %vm369, %v359
        %377 = vst.msk [vmem:[#allocation3 + $0x54] sm:$0xf] %vm369, %v360
        %v378 = vld [vmem:[#allocation2 + $0x1] sm:$0xff]
        %v379 = vld [vmem:[#allocation2 + $0x11] sm:$0xff]
        %v380 = vld [vmem:[#allocation2 + $0x21] sm:$0xff]
        %v381 = vld [vmem:[#allocation2 + $0x31] sm:$0xff]
        %v382 = vld [vmem:[#allocation2 + $0x41] sm:$0xff]
        %v383 = vld [vmem:[#allocation2 + $0x51] sm:$0xff]
        %v384 = vld [vmem:[#allocation2 + $0x61] sm:$0xff]
        %v385 = vld [vmem:[#allocation2 + $0x71] sm:$0xff]
        %v386 = vpack.c.bf16 %v379, %v378
        %v387 = vpack.c.bf16 %v381, %v380
        %v388 = vpack.c.bf16 %v383, %v382
        %v389 = vpack.c.bf16 %v385, %v384
        %v394 = vunpack.c.l.b16 %v386
        %v395 = vunpack.c.h.b16 %v386
        %v396 = vunpack.c.l.b16 %v387
        %v397 = vunpack.c.h.b16 %v387
        %v398 = vunpack.c.l.b16 %v388
        %v399 = vunpack.c.h.b16 %v388
        %v400 = vunpack.c.l.b16 %v389
        %v401 = vunpack.c.h.b16 %v389
        %v402 = vpack.c.b16 %v394, %v394
        %v403 = vpack.c.b16 %v395, %v395
        %v404 = vpack.c.b16 %v396, %v396
        %v405 = vpack.c.b16 %v397, %v397
        %v406 = vpack.c.b16 %v398, %v398
        %v407 = vpack.c.b16 %v399, %v399
        %v408 = vpack.c.b16 %v400, %v400
        %v409 = vpack.c.b16 %v401, %v401
        %410 = vrot.lane.b32.xlu0 %v402, 32
        %v411 = vpop.permute.xlu0 %410
        %412 = vrot.lane.b32.xlu0 %v403, 32
        %v413 = vpop.permute.xlu0 %412
        %414 = vrot.lane.b32.xlu0 %v404, 32
        %v415 = vpop.permute.xlu0 %414
        %416 = vrot.lane.b32.xlu0 %v405, 32
        %v417 = vpop.permute.xlu0 %416
        %418 = vrot.lane.b32.xlu0 %v406, 32
        %v419 = vpop.permute.xlu0 %418
        %420 = vrot.lane.b32.xlu0 %v407, 32
        %v421 = vpop.permute.xlu0 %420
        %422 = vrot.lane.b32.xlu0 %v408, 32
        %v423 = vpop.permute.xlu0 %422
        %424 = vrot.lane.b32.xlu0 %v409, 32
        %v425 = vpop.permute.xlu0 %424
        %vm434 = vcmask 519424
        %435 = vst.msk [vmem:[#allocation3] sm:$0xf] %vm434, %v411
        %436 = vst.msk [vmem:[#allocation3 + $0xc] sm:$0xf] %vm434, %v413
        %437 = vst.msk [vmem:[#allocation3 + $0x18] sm:$0xf] %vm434, %v415
        %438 = vst.msk [vmem:[#allocation3 + $0x24] sm:$0xf] %vm434, %v417
        %439 = vst.msk [vmem:[#allocation3 + $0x30] sm:$0xf] %vm434, %v419
        %440 = vst.msk [vmem:[#allocation3 + $0x3c] sm:$0xf] %vm434, %v421
        %441 = vst.msk [vmem:[#allocation3 + $0x48] sm:$0xf] %vm434, %v423
        %442 = vst.msk [vmem:[#allocation3 + $0x54] sm:$0xf] %vm434, %v425
        %v443 = vld [vmem:[#allocation2 + $0x2] sm:$0xff]
        %v444 = vld [vmem:[#allocation2 + $0x12] sm:$0xff]
        %v445 = vld [vmem:[#allocation2 + $0x22] sm:$0xff]
        %v446 = vld [vmem:[#allocation2 + $0x32] sm:$0xff]
        %v447 = vld [vmem:[#allocation2 + $0x42] sm:$0xff]
        %v448 = vld [vmem:[#allocation2 + $0x52] sm:$0xff]
        %v449 = vld [vmem:[#allocation2 + $0x62] sm:$0xff]
        %v450 = vld [vmem:[#allocation2 + $0x72] sm:$0xff]
        %v451 = vpack.c.bf16 %v444, %v443
        %v452 = vpack.c.bf16 %v446, %v445
        %v453 = vpack.c.bf16 %v448, %v447
        %v454 = vpack.c.bf16 %v450, %v449
        %v459 = vunpack.c.l.b16 %v451
        %v460 = vunpack.c.h.b16 %v451
        %v461 = vunpack.c.l.b16 %v452
        %v462 = vunpack.c.h.b16 %v452
        %v463 = vunpack.c.l.b16 %v453
        %v464 = vunpack.c.h.b16 %v453
        %v465 = vunpack.c.l.b16 %v454
        %v466 = vunpack.c.h.b16 %v454
        %v467 = vpack.c.b16 %v459, %v459
        %v468 = vpack.c.b16 %v460, %v460
        %v469 = vpack.c.b16 %v461, %v461
        %v470 = vpack.c.b16 %v462, %v462
        %v471 = vpack.c.b16 %v463, %v463
        %v472 = vpack.c.b16 %v464, %v464
        %v473 = vpack.c.b16 %v465, %v465
        %v474 = vpack.c.b16 %v466, %v466
        %475 = vrot.lane.b32.xlu0 %v467, 64
        %v476 = vpop.permute.xlu0 %475
        %477 = vrot.lane.b32.xlu0 %v468, 64
        %v478 = vpop.permute.xlu0 %477
        %479 = vrot.lane.b32.xlu0 %v469, 64
        %v480 = vpop.permute.xlu0 %479
        %481 = vrot.lane.b32.xlu0 %v470, 64
        %v482 = vpop.permute.xlu0 %481
        %483 = vrot.lane.b32.xlu0 %v471, 64
        %v484 = vpop.permute.xlu0 %483
        %485 = vrot.lane.b32.xlu0 %v472, 64
        %v486 = vpop.permute.xlu0 %485
        %487 = vrot.lane.b32.xlu0 %v473, 64
        %v488 = vpop.permute.xlu0 %487
        %489 = vrot.lane.b32.xlu0 %v474, 64
        %v490 = vpop.permute.xlu0 %489
        %vm499 = vcmask 781824
        %500 = vst.msk [vmem:[#allocation3] sm:$0xf] %vm499, %v476
        %501 = vst.msk [vmem:[#allocation3 + $0xc] sm:$0xf] %vm499, %v478
        %502 = vst.msk [vmem:[#allocation3 + $0x18] sm:$0xf] %vm499, %v480
        %503 = vst.msk [vmem:[#allocation3 + $0x24] sm:$0xf] %vm499, %v482
        %504 = vst.msk [vmem:[#allocation3 + $0x30] sm:$0xf] %vm499, %v484
        %505 = vst.msk [vmem:[#allocation3 + $0x3c] sm:$0xf] %vm499, %v486
        %506 = vst.msk [vmem:[#allocation3 + $0x48] sm:$0xf] %vm499, %v488
        %507 = vst.msk [vmem:[#allocation3 + $0x54] sm:$0xf] %vm499, %v490
        %v508 = vld [vmem:[%s320] sm:$0xff]
        %v509 = vld [vmem:[%s320 + $0x10] sm:$0xff]
        %v510 = vld [vmem:[%s320 + $0x20] sm:$0xff]
        %v511 = vld [vmem:[%s320 + $0x30] sm:$0xff]
        %v512 = vld [vmem:[%s320 + $0x40] sm:$0xff]
        %v513 = vld [vmem:[%s320 + $0x50] sm:$0xff]
        %v514 = vld [vmem:[%s320 + $0x60] sm:$0xff]
        %v515 = vld [vmem:[%s320 + $0x70] sm:$0xff]
        %v516 = vpack.c.bf16 %v509, %v508
        %v517 = vpack.c.bf16 %v511, %v510
        %v518 = vpack.c.bf16 %v513, %v512
        %v519 = vpack.c.bf16 %v515, %v514
        %v524 = vunpack.c.l.b16 %v516
        %v525 = vunpack.c.h.b16 %v516
        %v526 = vunpack.c.l.b16 %v517
        %v527 = vunpack.c.h.b16 %v517
        %v528 = vunpack.c.l.b16 %v518
        %v529 = vunpack.c.h.b16 %v518
        %v530 = vunpack.c.l.b16 %v519
        %v531 = vunpack.c.h.b16 %v519
        %v532 = vpack.c.b16 %v524, %v524
        %v533 = vpack.c.b16 %v525, %v525
        %v534 = vpack.c.b16 %v526, %v526
        %v535 = vpack.c.b16 %v527, %v527
        %v536 = vpack.c.b16 %v528, %v528
        %v537 = vpack.c.b16 %v529, %v529
        %v538 = vpack.c.b16 %v530, %v530
        %v539 = vpack.c.b16 %v531, %v531
        %540 = vrot.lane.b32.xlu0 %v532, 96
        %v541 = vpop.permute.xlu0 %540
        %542 = vrot.lane.b32.xlu0 %v533, 96
        %v543 = vpop.permute.xlu0 %542
        %544 = vrot.lane.b32.xlu0 %v534, 96
        %v545 = vpop.permute.xlu0 %544
        %546 = vrot.lane.b32.xlu0 %v535, 96
        %v547 = vpop.permute.xlu0 %546
        %548 = vrot.lane.b32.xlu0 %v536, 96
        %v549 = vpop.permute.xlu0 %548
        %550 = vrot.lane.b32.xlu0 %v537, 96
        %v551 = vpop.permute.xlu0 %550
        %552 = vrot.lane.b32.xlu0 %v538, 96
        %v553 = vpop.permute.xlu0 %552
        %554 = vrot.lane.b32.xlu0 %v539, 96
        %v555 = vpop.permute.xlu0 %554
        %vm564 = vcmask 1044224
        %565 = vst.msk [vmem:[#allocation3] sm:$0xf] %vm564, %v541
        %566 = vst.msk [vmem:[#allocation3 + $0xc] sm:$0xf] %vm564, %v543
        %567 = vst.msk [vmem:[#allocation3 + $0x18] sm:$0xf] %vm564, %v545
        %568 = vst.msk [vmem:[#allocation3 + $0x24] sm:$0xf] %vm564, %v547
        %569 = vst.msk [vmem:[#allocation3 + $0x30] sm:$0xf] %vm564, %v549
        %570 = vst.msk [vmem:[#allocation3 + $0x3c] sm:$0xf] %vm564, %v551
        %571 = vst.msk [vmem:[#allocation3 + $0x48] sm:$0xf] %vm564, %v553
        %572 = vst.msk [vmem:[#allocation3 + $0x54] sm:$0xf] %vm564, %v555
        %v573 = vld [vmem:[%s320 + $0x1] sm:$0xff]
        %v574 = vld [vmem:[%s320 + $0x11] sm:$0xff]
        %v575 = vld [vmem:[%s320 + $0x21] sm:$0xff]
        %v576 = vld [vmem:[%s320 + $0x31] sm:$0xff]
        %v577 = vld [vmem:[%s320 + $0x41] sm:$0xff]
        %v578 = vld [vmem:[%s320 + $0x51] sm:$0xff]
        %v579 = vld [vmem:[%s320 + $0x61] sm:$0xff]
        %v580 = vld [vmem:[%s320 + $0x71] sm:$0xff]
        %v581 = vpack.c.bf16 %v574, %v573
        %v582 = vpack.c.bf16 %v576, %v575
        %v583 = vpack.c.bf16 %v578, %v577
        %v584 = vpack.c.bf16 %v580, %v579
        %v589 = vunpack.c.l.b16 %v581
        %v590 = vunpack.c.h.b16 %v581
        %v591 = vunpack.c.l.b16 %v582
        %v592 = vunpack.c.h.b16 %v582
        %v593 = vunpack.c.l.b16 %v583
        %v594 = vunpack.c.h.b16 %v583
        %v595 = vunpack.c.l.b16 %v584
        %v596 = vunpack.c.h.b16 %v584
        %v597 = vpack.c.b16 %v589, %v589
        %v598 = vpack.c.b16 %v590, %v590
        %v599 = vpack.c.b16 %v591, %v591
        %v600 = vpack.c.b16 %v592, %v592
        %v601 = vpack.c.b16 %v593, %v593
        %v602 = vpack.c.b16 %v594, %v594
        %v603 = vpack.c.b16 %v595, %v595
        %v604 = vpack.c.b16 %v596, %v596
        %613 = vst.msk [vmem:[#allocation3 + $0x4] sm:$0xf] %vm369, %v597
        %614 = vst.msk [vmem:[#allocation3 + $0x10] sm:$0xf] %vm369, %v598
        %615 = vst.msk [vmem:[#allocation3 + $0x1c] sm:$0xf] %vm369, %v599
        %616 = vst.msk [vmem:[#allocation3 + $0x28] sm:$0xf] %vm369, %v600
        %617 = vst.msk [vmem:[#allocation3 + $0x34] sm:$0xf] %vm369, %v601
        %618 = vst.msk [vmem:[#allocation3 + $0x40] sm:$0xf] %vm369, %v602
        %619 = vst.msk [vmem:[#allocation3 + $0x4c] sm:$0xf] %vm369, %v603
        %620 = vst.msk [vmem:[#allocation3 + $0x58] sm:$0xf] %vm369, %v604
        %v621 = vld [vmem:[%s320 + $0x2] sm:$0xff]
        %v622 = vld [vmem:[%s320 + $0x12] sm:$0xff]
        %v623 = vld [vmem:[%s320 + $0x22] sm:$0xff]
        %v624 = vld [vmem:[%s320 + $0x32] sm:$0xff]
        %v625 = vld [vmem:[%s320 + $0x42] sm:$0xff]
        %v626 = vld [vmem:[%s320 + $0x52] sm:$0xff]
        %v627 = vld [vmem:[%s320 + $0x62] sm:$0xff]
        %v628 = vld [vmem:[%s320 + $0x72] sm:$0xff]
        %v629 = vpack.c.bf16 %v622, %v621
        %v630 = vpack.c.bf16 %v624, %v623
        %v631 = vpack.c.bf16 %v626, %v625
        %v632 = vpack.c.bf16 %v628, %v627
        %v637 = vunpack.c.l.b16 %v629
        %v638 = vunpack.c.h.b16 %v629
        %v639 = vunpack.c.l.b16 %v630
        %v640 = vunpack.c.h.b16 %v630
        %v641 = vunpack.c.l.b16 %v631
        %v642 = vunpack.c.h.b16 %v631
        %v643 = vunpack.c.l.b16 %v632
        %v644 = vunpack.c.h.b16 %v632
        %v645 = vpack.c.b16 %v637, %v637
        %v646 = vpack.c.b16 %v638, %v638
        %v647 = vpack.c.b16 %v639, %v639
        %v648 = vpack.c.b16 %v640, %v640
        %v649 = vpack.c.b16 %v641, %v641
        %v650 = vpack.c.b16 %v642, %v642
        %v651 = vpack.c.b16 %v643, %v643
        %v652 = vpack.c.b16 %v644, %v644
        %653 = vrot.lane.b32.xlu0 %v645, 32
        %v654 = vpop.permute.xlu0 %653
        %655 = vrot.lane.b32.xlu0 %v646, 32
        %v656 = vpop.permute.xlu0 %655
        %657 = vrot.lane.b32.xlu0 %v647, 32
        %v658 = vpop.permute.xlu0 %657
        %659 = vrot.lane.b32.xlu0 %v648, 32
        %v660 = vpop.permute.xlu0 %659
        %661 = vrot.lane.b32.xlu0 %v649, 32
        %v662 = vpop.permute.xlu0 %661
        %663 = vrot.lane.b32.xlu0 %v650, 32
        %v664 = vpop.permute.xlu0 %663
        %665 = vrot.lane.b32.xlu0 %v651, 32
        %v666 = vpop.permute.xlu0 %665
        %667 = vrot.lane.b32.xlu0 %v652, 32
        %v668 = vpop.permute.xlu0 %667
        %677 = vst.msk [vmem:[#allocation3 + $0x4] sm:$0xf] %vm434, %v654
        %678 = vst.msk [vmem:[#allocation3 + $0x10] sm:$0xf] %vm434, %v656
        %679 = vst.msk [vmem:[#allocation3 + $0x1c] sm:$0xf] %vm434, %v658
        %680 = vst.msk [vmem:[#allocation3 + $0x28] sm:$0xf] %vm434, %v660
        %681 = vst.msk [vmem:[#allocation3 + $0x34] sm:$0xf] %vm434, %v662
        %682 = vst.msk [vmem:[#allocation3 + $0x40] sm:$0xf] %vm434, %v664
        %683 = vst.msk [vmem:[#allocation3 + $0x4c] sm:$0xf] %vm434, %v666
        %684 = vst.msk [vmem:[#allocation3 + $0x58] sm:$0xf] %vm434, %v668
        %s685 = scalar_lea.vmem [#allocation2], 32
        %v686 = vld [vmem:[%s685] sm:$0xff]
        %v687 = vld [vmem:[%s685 + $0x10] sm:$0xff]
        %v688 = vld [vmem:[%s685 + $0x20] sm:$0xff]
        %v689 = vld [vmem:[%s685 + $0x30] sm:$0xff]
        %v690 = vld [vmem:[%s685 + $0x40] sm:$0xff]
        %v691 = vld [vmem:[%s685 + $0x50] sm:$0xff]
        %v692 = vld [vmem:[%s685 + $0x60] sm:$0xff]
        %v693 = vld [vmem:[%s685 + $0x70] sm:$0xff]
        %v694 = vpack.c.bf16 %v687, %v686
        %v695 = vpack.c.bf16 %v689, %v688
        %v696 = vpack.c.bf16 %v691, %v690
        %v697 = vpack.c.bf16 %v693, %v692
        %v702 = vunpack.c.l.b16 %v694
        %v703 = vunpack.c.h.b16 %v694
        %v704 = vunpack.c.l.b16 %v695
        %v705 = vunpack.c.h.b16 %v695
        %v706 = vunpack.c.l.b16 %v696
        %v707 = vunpack.c.h.b16 %v696
        %v708 = vunpack.c.l.b16 %v697
        %v709 = vunpack.c.h.b16 %v697
        %v710 = vpack.c.b16 %v702, %v702
        %v711 = vpack.c.b16 %v703, %v703
        %v712 = vpack.c.b16 %v704, %v704
        %v713 = vpack.c.b16 %v705, %v705
        %v714 = vpack.c.b16 %v706, %v706
        %v715 = vpack.c.b16 %v707, %v707
        %v716 = vpack.c.b16 %v708, %v708
        %v717 = vpack.c.b16 %v709, %v709
        %718 = vrot.lane.b32.xlu0 %v710, 64
        %v719 = vpop.permute.xlu0 %718
        %720 = vrot.lane.b32.xlu0 %v711, 64
        %v721 = vpop.permute.xlu0 %720
        %722 = vrot.lane.b32.xlu0 %v712, 64
        %v723 = vpop.permute.xlu0 %722
        %724 = vrot.lane.b32.xlu0 %v713, 64
        %v725 = vpop.permute.xlu0 %724
        %726 = vrot.lane.b32.xlu0 %v714, 64
        %v727 = vpop.permute.xlu0 %726
        %728 = vrot.lane.b32.xlu0 %v715, 64
        %v729 = vpop.permute.xlu0 %728
        %730 = vrot.lane.b32.xlu0 %v716, 64
        %v731 = vpop.permute.xlu0 %730
        %732 = vrot.lane.b32.xlu0 %v717, 64
        %v733 = vpop.permute.xlu0 %732
        %742 = vst.msk [vmem:[#allocation3 + $0x4] sm:$0xf] %vm499, %v719
        %743 = vst.msk [vmem:[#allocation3 + $0x10] sm:$0xf] %vm499, %v721
        %744 = vst.msk [vmem:[#allocation3 + $0x1c] sm:$0xf] %vm499, %v723
        %745 = vst.msk [vmem:[#allocation3 + $0x28] sm:$0xf] %vm499, %v725
        %746 = vst.msk [vmem:[#allocation3 + $0x34] sm:$0xf] %vm499, %v727
        %747 = vst.msk [vmem:[#allocation3 + $0x40] sm:$0xf] %vm499, %v729
        %748 = vst.msk [vmem:[#allocation3 + $0x4c] sm:$0xf] %vm499, %v731
        %749 = vst.msk [vmem:[#allocation3 + $0x58] sm:$0xf] %vm499, %v733
        %v750 = vld [vmem:[%s685 + $0x1] sm:$0xff]
        %v751 = vld [vmem:[%s685 + $0x11] sm:$0xff]
        %v752 = vld [vmem:[%s685 + $0x21] sm:$0xff]
        %v753 = vld [vmem:[%s685 + $0x31] sm:$0xff]
        %v754 = vld [vmem:[%s685 + $0x41] sm:$0xff]
        %v755 = vld [vmem:[%s685 + $0x51] sm:$0xff]
        %v756 = vld [vmem:[%s685 + $0x61] sm:$0xff]
        %v757 = vld [vmem:[%s685 + $0x71] sm:$0xff]
        %v758 = vpack.c.bf16 %v751, %v750
        %v759 = vpack.c.bf16 %v753, %v752
        %v760 = vpack.c.bf16 %v755, %v754
        %v761 = vpack.c.bf16 %v757, %v756
        %v766 = vunpack.c.l.b16 %v758
        %v767 = vunpack.c.h.b16 %v758
        %v768 = vunpack.c.l.b16 %v759
        %v769 = vunpack.c.h.b16 %v759
        %v770 = vunpack.c.l.b16 %v760
        %v771 = vunpack.c.h.b16 %v760
        %v772 = vunpack.c.l.b16 %v761
        %v773 = vunpack.c.h.b16 %v761
        %v774 = vpack.c.b16 %v766, %v766
        %v775 = vpack.c.b16 %v767, %v767
        %v776 = vpack.c.b16 %v768, %v768
        %v777 = vpack.c.b16 %v769, %v769
        %v778 = vpack.c.b16 %v770, %v770
        %v779 = vpack.c.b16 %v771, %v771
        %v780 = vpack.c.b16 %v772, %v772
        %v781 = vpack.c.b16 %v773, %v773
        %782 = vrot.lane.b32.xlu0 %v774, 96
        %v783 = vpop.permute.xlu0 %782
        %784 = vrot.lane.b32.xlu0 %v775, 96
        %v785 = vpop.permute.xlu0 %784
        %786 = vrot.lane.b32.xlu0 %v776, 96
        %v787 = vpop.permute.xlu0 %786
        %788 = vrot.lane.b32.xlu0 %v777, 96
        %v789 = vpop.permute.xlu0 %788
        %790 = vrot.lane.b32.xlu0 %v778, 96
        %v791 = vpop.permute.xlu0 %790
        %792 = vrot.lane.b32.xlu0 %v779, 96
        %v793 = vpop.permute.xlu0 %792
        %794 = vrot.lane.b32.xlu0 %v780, 96
        %v795 = vpop.permute.xlu0 %794
        %796 = vrot.lane.b32.xlu0 %v781, 96
        %v797 = vpop.permute.xlu0 %796
        %806 = vst.msk [vmem:[#allocation3 + $0x4] sm:$0xf] %vm564, %v783
        %807 = vst.msk [vmem:[#allocation3 + $0x10] sm:$0xf] %vm564, %v785
        %808 = vst.msk [vmem:[#allocation3 + $0x1c] sm:$0xf] %vm564, %v787
        %809 = vst.msk [vmem:[#allocation3 + $0x28] sm:$0xf] %vm564, %v789
        %810 = vst.msk [vmem:[#allocation3 + $0x34] sm:$0xf] %vm564, %v791
        %811 = vst.msk [vmem:[#allocation3 + $0x40] sm:$0xf] %vm564, %v793
        %812 = vst.msk [vmem:[#allocation3 + $0x4c] sm:$0xf] %vm564, %v795
        %813 = vst.msk [vmem:[#allocation3 + $0x58] sm:$0xf] %vm564, %v797
        %v814 = vld [vmem:[%s685 + $0x2] sm:$0xff]
        %v815 = vld [vmem:[%s685 + $0x12] sm:$0xff]
        %v816 = vld [vmem:[%s685 + $0x22] sm:$0xff]
        %v817 = vld [vmem:[%s685 + $0x32] sm:$0xff]
        %v818 = vld [vmem:[%s685 + $0x42] sm:$0xff]
        %v819 = vld [vmem:[%s685 + $0x52] sm:$0xff]
        %v820 = vld [vmem:[%s685 + $0x62] sm:$0xff]
        %v821 = vld [vmem:[%s685 + $0x72] sm:$0xff]
        %v822 = vpack.c.bf16 %v815, %v814
        %v823 = vpack.c.bf16 %v817, %v816
        %v824 = vpack.c.bf16 %v819, %v818
        %v825 = vpack.c.bf16 %v821, %v820
        %v830 = vunpack.c.l.b16 %v822
        %v831 = vunpack.c.h.b16 %v822
        %v832 = vunpack.c.l.b16 %v823
        %v833 = vunpack.c.h.b16 %v823
        %v834 = vunpack.c.l.b16 %v824
        %v835 = vunpack.c.h.b16 %v824
        %v836 = vunpack.c.l.b16 %v825
        %v837 = vunpack.c.h.b16 %v825
        %v838 = vpack.c.b16 %v830, %v830
        %v839 = vpack.c.b16 %v831, %v831
        %v840 = vpack.c.b16 %v832, %v832
        %v841 = vpack.c.b16 %v833, %v833
        %v842 = vpack.c.b16 %v834, %v834
        %v843 = vpack.c.b16 %v835, %v835
        %v844 = vpack.c.b16 %v836, %v836
        %v845 = vpack.c.b16 %v837, %v837
        %854 = vst.msk [vmem:[#allocation3 + $0x8] sm:$0xf] %vm369, %v838
        %855 = vst.msk [vmem:[#allocation3 + $0x14] sm:$0xf] %vm369, %v839
        %856 = vst.msk [vmem:[#allocation3 + $0x20] sm:$0xf] %vm369, %v840
        %857 = vst.msk [vmem:[#allocation3 + $0x2c] sm:$0xf] %vm369, %v841
        %858 = vst.msk [vmem:[#allocation3 + $0x38] sm:$0xf] %vm369, %v842
        %859 = vst.msk [vmem:[#allocation3 + $0x44] sm:$0xf] %vm369, %v843
        %860 = vst.msk [vmem:[#allocation3 + $0x50] sm:$0xf] %vm369, %v844
        %861 = vst.msk [vmem:[#allocation3 + $0x5c] sm:$0xf] %vm369, %v845
        %v862 = vld [vmem:[#allocation3] sm:$0xff]
        %v863 = vld [vmem:[#allocation3 + $0x8] sm:$0xf]
        %v864 = vld [vmem:[#allocation3 + $0xc] sm:$0xff]
        %v865 = vld [vmem:[#allocation3 + $0x14] sm:$0xf]
        %v866 = vld [vmem:[#allocation3 + $0x18] sm:$0xff]
        %v867 = vld [vmem:[#allocation3 + $0x20] sm:$0xf]
        %v868 = vld [vmem:[#allocation3 + $0x24] sm:$0xff]
        %v869 = vld [vmem:[#allocation3 + $0x2c] sm:$0xf]
        %v870 = vld [vmem:[#allocation3 + $0x30] sm:$0xff]
        %v871 = vld [vmem:[#allocation3 + $0x38] sm:$0xf]
        %v872 = vld [vmem:[#allocation3 + $0x3c] sm:$0xff]
        %v873 = vld [vmem:[#allocation3 + $0x44] sm:$0xf]
        %v874 = vld [vmem:[#allocation3 + $0x48] sm:$0xff]
        %v875 = vld [vmem:[#allocation3 + $0x50] sm:$0xf]
        %v876 = vld [vmem:[#allocation3 + $0x54] sm:$0xff]
        %v877 = vld [vmem:[#allocation3 + $0x5c] sm:$0xf]
        %v878 = vld [vmem:[%s3] sm:$0xf]
        %v879 = vld [vmem:[%s3 + $0x4] sm:$0xf]
        %v880 = vld [vmem:[%s3 + $0x8] sm:$0xf]
        %v881 = vld [vmem:[%s3 + $0xc] sm:$0xf]
        %v882 = vld [vmem:[%s3 + $0x10] sm:$0xf]
        %v883 = vld [vmem:[%s3 + $0x14] sm:$0xf]
        %v884 = vld [vmem:[%s3 + $0x18] sm:$0xf]
        %v885 = vld [vmem:[%s3 + $0x1c] sm:$0xf]
        %v886 = vld [vmem:[%s3 + $0x20] sm:$0xf]
        %v887 = vld [vmem:[%s3 + $0x24] sm:$0xf]
        %v888 = vld [vmem:[%s3 + $0x28] sm:$0xf]
        %v889 = vld [vmem:[%s3 + $0x2c] sm:$0xf]
        %v890 = vld [vmem:[%s3 + $0x30] sm:$0xf]
        %v891 = vld [vmem:[%s3 + $0x34] sm:$0xf]
        %v892 = vld [vmem:[%s3 + $0x38] sm:$0xf]
        %v893 = vld [vmem:[%s3 + $0x3c] sm:$0xf]
        %v894 = vld [vmem:[%s3 + $0x40] sm:$0xf]
        %v895 = vld [vmem:[%s3 + $0x44] sm:$0xf]
        %v896 = vld [vmem:[%s3 + $0x48] sm:$0xf]
        %v897 = vld [vmem:[%s3 + $0x4c] sm:$0xf]
        %v898 = vld [vmem:[%s3 + $0x50] sm:$0xf]
        %v899 = vld [vmem:[%s3 + $0x54] sm:$0xf]
        %v900 = vld [vmem:[%s3 + $0x58] sm:$0xf]
        %v901 = vld [vmem:[%s3 + $0x5c] sm:$0xf]
        %v902 = vld [vmem:[%s3 + $0x60] sm:$0xf]
        %v903 = vld [vmem:[%s3 + $0x64] sm:$0xf]
        %v904 = vld [vmem:[%s3 + $0x68] sm:$0xf]
        %v905 = vld [vmem:[%s3 + $0x6c] sm:$0xf]
        %v906 = vld [vmem:[%s3 + $0x70] sm:$0xf]
        %v907 = vld [vmem:[%s3 + $0x74] sm:$0xf]
        %v908 = vld [vmem:[%s3 + $0x78] sm:$0xf]
        %v909 = vld [vmem:[%s3 + $0x7c] sm:$0xf]
        %v910 = vld [vmem:[%s3 + $0x80] sm:$0xf]
        %v911 = vld [vmem:[%s3 + $0x84] sm:$0xf]
        %v912 = vld [vmem:[%s3 + $0x88] sm:$0xf]
        %v913 = vld [vmem:[%s3 + $0x8c] sm:$0xf]
        %v914 = vld [vmem:[%s242] sm:$0xff]
        %v915 = vld [vmem:[%s242 + $0x8] sm:$0xff]
        %v916 = vld [vmem:[%s242 + $0x10] sm:$0xff]
        %v917 = vld [vmem:[%s242 + $0x18] sm:$0xff]
        %v918 = vld [vmem:[%s242 + $0x20] sm:$0xff]
        %v919 = vld [vmem:[%s242 + $0x28] sm:$0xff]
        %v920 = vld [vmem:[%s242 + $0x30] sm:$0xff]
        %v921 = vld [vmem:[%s242 + $0x38] sm:$0xff]
        %v938 = vunpack.c.l.b16 %v862
        %v939 = vunpack.c.h.b16 %v862
        %v940 = vunpack.c.l.b16 %v863
        %v941 = vunpack.c.l.b16 %v864
        %v942 = vunpack.c.h.b16 %v864
        %v943 = vunpack.c.l.b16 %v865
        %v944 = vunpack.c.l.b16 %v866
        %v945 = vunpack.c.h.b16 %v866
        %v946 = vunpack.c.l.b16 %v867
        %v947 = vunpack.c.l.b16 %v868
        %v948 = vunpack.c.h.b16 %v868
        %v949 = vunpack.c.l.b16 %v869
        %v950 = vunpack.c.l.b16 %v870
        %v951 = vunpack.c.h.b16 %v870
        %v952 = vunpack.c.l.b16 %v871
        %v953 = vunpack.c.l.b16 %v872
        %v954 = vunpack.c.h.b16 %v872
        %v955 = vunpack.c.l.b16 %v873
        %v956 = vunpack.c.l.b16 %v874
        %v957 = vunpack.c.h.b16 %v874
        %v958 = vunpack.c.l.b16 %v875
        %v959 = vunpack.c.l.b16 %v876
        %v960 = vunpack.c.h.b16 %v876
        %v961 = vunpack.c.l.b16 %v877
        %v962 = vpack.c.b16 %v941, %v938
        %v963 = vpack.c.b16 %v942, %v939
        %v964 = vpack.c.b16 %v943, %v940
        %v965 = vpack.c.b16 %v947, %v944
        %v966 = vpack.c.b16 %v948, %v945
        %v967 = vpack.c.b16 %v949, %v946
        %v968 = vpack.c.b16 %v953, %v950
        %v969 = vpack.c.b16 %v954, %v951
        %v970 = vpack.c.b16 %v955, %v952
        %v971 = vpack.c.b16 %v959, %v956
        %v972 = vpack.c.b16 %v960, %v957
        %v973 = vpack.c.b16 %v961, %v958
        %v1018 = vunpack.c.l.b16 %v878
        %v1019 = vunpack.c.l.b16 %v879
        %v1020 = vunpack.c.l.b16 %v880
        %v1021 = vunpack.c.l.b16 %v881
        %v1022 = vunpack.c.l.b16 %v882
        %v1023 = vunpack.c.l.b16 %v883
        %v1024 = vunpack.c.l.b16 %v884
        %v1025 = vunpack.c.l.b16 %v885
        %v1026 = vunpack.c.l.b16 %v886
        %v1027 = vunpack.c.l.b16 %v887
        %v1028 = vunpack.c.l.b16 %v888
        %v1029 = vunpack.c.l.b16 %v889
        %v1030 = vunpack.c.l.b16 %v890
        %v1031 = vunpack.c.l.b16 %v891
        %v1032 = vunpack.c.l.b16 %v892
        %v1033 = vunpack.c.l.b16 %v893
        %v1034 = vunpack.c.l.b16 %v894
        %v1035 = vunpack.c.l.b16 %v895
        %v1036 = vunpack.c.l.b16 %v896
        %v1037 = vunpack.c.l.b16 %v897
        %v1038 = vunpack.c.l.b16 %v898
        %v1039 = vunpack.c.l.b16 %v899
        %v1040 = vunpack.c.l.b16 %v900
        %v1041 = vunpack.c.l.b16 %v901
        %v1042 = vunpack.c.l.b16 %v902
        %v1043 = vunpack.c.l.b16 %v903
        %v1044 = vunpack.c.l.b16 %v904
        %v1045 = vunpack.c.l.b16 %v905
        %v1046 = vunpack.c.l.b16 %v906
        %v1047 = vunpack.c.l.b16 %v907
        %v1048 = vunpack.c.l.b16 %v908
        %v1049 = vunpack.c.l.b16 %v909
        %v1050 = vunpack.c.l.b16 %v910
        %v1051 = vunpack.c.l.b16 %v911
        %v1052 = vunpack.c.l.b16 %v912
        %v1053 = vunpack.c.l.b16 %v913
        %v1054 = vpack.c.b16 %v1019, %v1018
        %v1055 = vpack.c.b16 %v1021, %v1020
        %v1056 = vpack.c.b16 %v1023, %v1022
        %v1057 = vpack.c.b16 %v1025, %v1024
        %v1058 = vpack.c.b16 %v1027, %v1026
        %v1059 = vpack.c.b16 %v1029, %v1028
        %v1060 = vpack.c.b16 %v1031, %v1030
        %v1061 = vpack.c.b16 %v1033, %v1032
        %v1062 = vpack.c.b16 %v1035, %v1034
        %v1063 = vpack.c.b16 %v1037, %v1036
        %v1064 = vpack.c.b16 %v1039, %v1038
        %v1065 = vpack.c.b16 %v1041, %v1040
        %v1066 = vpack.c.b16 %v1043, %v1042
        %v1067 = vpack.c.b16 %v1045, %v1044
        %v1068 = vpack.c.b16 %v1047, %v1046
        %v1069 = vpack.c.b16 %v1049, %v1048
        %v1070 = vpack.c.b16 %v1051, %v1050
        %v1071 = vpack.c.b16 %v1053, %v1052
        %v1091 = vsel %vm246, %v964, 0
        %v1094 = vsel %vm246, %v967, 0
        %v1097 = vsel %vm246, %v970, 0
        %v1100 = vsel %vm246, %v973, 0
        %1102 = vmatprep.subr.bf16.mxu0 0
        %1103 = vmatpush1.bf16.msra.mxu0 %v1061
        %1104 = vmatprep.subr.bf16.mxu0 0
        %1105 = vmatpush1.bf16.msra.mxu0 %v1060
        %1106 = vmatprep.subr.bf16.mxu0 0
        %1107 = vmatpush1.bf16.msra.mxu0 %v1059
        %1108 = vmatprep.subr.bf16.mxu0 0
        %1109 = vmatpush1.bf16.msra.mxu0 %v1058
        %1110 = vmatprep.subr.bf16.mxu0 0
        %1111 = vmatpush1.bf16.msra.mxu0 %v1057
        %1112 = vmatprep.subr.bf16.mxu0 0
        %1113 = vmatpush1.bf16.msra.mxu0 %v1056
        %1114 = vmatprep.subr.bf16.mxu0 0
        %1115 = vmatpush1.bf16.msra.mxu0 %v1055
        %1116 = vmatprep.subr.bf16.mxu0 0
        %1117 = vmatpush1.bf16.msra.mxu0 %v1054
        %1118 = vmatprep.subr.bf16.mxu0 0
        %1119 = vmatpush2.bf16.msra.mxu0 %v1069
        %1120 = vmatprep.subr.bf16.mxu0 0
        %1121 = vmatpush2.bf16.msra.mxu0 %v1068
        %1122 = vmatprep.subr.bf16.mxu0 0
        %1123 = vmatpush2.bf16.msra.mxu0 %v1067
        %1124 = vmatprep.subr.bf16.mxu0 0
        %1125 = vmatpush2.bf16.msra.mxu0 %v1066
        %1126 = vmatprep.subr.bf16.mxu0 0
        %1127 = vmatpush2.bf16.msra.mxu0 %v1065
        %1128 = vmatprep.subr.bf16.mxu0 0
        %1129 = vmatpush2.bf16.msra.mxu0 %v1064
        %1130 = vmatprep.subr.bf16.mxu0 0
        %1131 = vmatpush2.bf16.msra.mxu0 %v1063
        %1132 = vmatprep.subr.bf16.mxu0 0
        %1133 = vmatpush2.bf16.msra.mxu0 %v1062
        %1134 = vmatprep.mubr.bf16.mxu0 %v963
        %1135 = vmatmul.mubr.bf16.gmra.mxu0 %v962
        %v1136 = vpop.f32.mrf.mxu0
        %v1137 = vadd.f32 %v914, %v1136
        %v1138 = vpop.f32.mrf.mxu0
        %v1139 = vpop.f32.mrf.mxu0
        %v1140 = vadd.f32 %v915, %v1139
        %v1141 = vpop.f32.mrf.mxu0
        %1142 = vmatprep.mubr.bf16.mxu0 %v966
        %1143 = vmatmul.mubr.bf16.gmra.mxu0 %v965
        %v1144 = vpop.f32.mrf.mxu0
        %v1145 = vadd.f32 %v916, %v1144
        %v1146 = vpop.f32.mrf.mxu0
        %v1147 = vpop.f32.mrf.mxu0
        %v1148 = vadd.f32 %v917, %v1147
        %v1149 = vpop.f32.mrf.mxu0
        %1150 = vmatprep.mubr.bf16.mxu0 %v969
        %1151 = vmatmul.mubr.bf16.gmra.mxu0 %v968
        %v1152 = vpop.f32.mrf.mxu0
        %v1153 = vadd.f32 %v918, %v1152
        %v1154 = vpop.f32.mrf.mxu0
        %v1155 = vpop.f32.mrf.mxu0
        %v1156 = vadd.f32 %v919, %v1155
        %v1157 = vpop.f32.mrf.mxu0
        %1158 = vmatprep.mubr.bf16.mxu0 %v972
        %1159 = vmatmul.mubr.bf16.gmra.mxu0 %v971
        %v1160 = vpop.f32.mrf.mxu0
        %v1161 = vadd.f32 %v920, %v1160
        %v1162 = vpop.f32.mrf.mxu0
        %v1163 = vpop.f32.mrf.mxu0
        %v1164 = vadd.f32 %v921, %v1163
        %v1165 = vpop.f32.mrf.mxu0
        %1166 = vdwg.mxu0
        %1167 = vmatprep.subr.bf16.mxu0 0
        %1168 = vmatpush1.bf16.msra.mxu0 0
        %1169 = vmatprep.subr.bf16.mxu0 0
        %1170 = vmatpush1.bf16.msra.mxu0 0
        %1171 = vmatprep.subr.bf16.mxu0 0
        %1172 = vmatpush1.bf16.msra.mxu0 0
        %1173 = vmatprep.subr.bf16.mxu0 0
        %1174 = vmatpush1.bf16.msra.mxu0 0
        %1175 = vmatprep.subr.bf16.mxu0 0
        %1176 = vmatpush1.bf16.msra.mxu0 0
        %1177 = vmatprep.subr.bf16.mxu0 0
        %1178 = vmatpush1.bf16.msra.mxu0 0
        %1179 = vmatprep.subr.bf16.mxu0 0
        %1180 = vmatpush1.bf16.msra.mxu0 %v1071
        %1181 = vmatprep.subr.bf16.mxu0 0
        %1182 = vmatpush1.bf16.msra.mxu0 %v1070
        %1183 = vmatprep.subr.bf16.mxu0 0
        %1184 = vmatpush2.bf16.msra.mxu0 0
        %1185 = vmatprep.subr.bf16.mxu0 0
        %1186 = vmatpush2.bf16.msra.mxu0 0
        %1187 = vmatprep.subr.bf16.mxu0 0
        %1188 = vmatpush2.bf16.msra.mxu0 0
        %1189 = vmatprep.subr.bf16.mxu0 0
        %1190 = vmatpush2.bf16.msra.mxu0 0
        %1191 = vmatprep.subr.bf16.mxu0 0
        %1192 = vmatpush2.bf16.msra.mxu0 0
        %1193 = vmatprep.subr.bf16.mxu0 0
        %1194 = vmatpush2.bf16.msra.mxu0 0
        %1195 = vmatprep.subr.bf16.mxu0 0
        %1196 = vmatpush2.bf16.msra.mxu0 0
        %1197 = vmatprep.subr.bf16.mxu0 0
        %1198 = vmatpush2.bf16.msra.mxu0 0
        %1199 = vmatprep.mubr.bf16.mxu0 0
        %1200 = vmatmul.mubr.bf16.gmra.mxu0 %v1091
        %v1201 = vpop.f32.mrf.mxu0
        %v1202 = vadd.f32 %v1137, %v1201
        %v1203 = vpop.f32.mrf.mxu0
        %v1204 = vpop.f32.mrf.mxu0
        %v1205 = vadd.f32 %v1140, %v1204
        %v1206 = vpop.f32.mrf.mxu0
        %1207 = vmatprep.mubr.bf16.mxu0 0
        %1208 = vmatmul.mubr.bf16.gmra.mxu0 %v1094
        %v1209 = vpop.f32.mrf.mxu0
        %v1210 = vadd.f32 %v1145, %v1209
        %v1211 = vpop.f32.mrf.mxu0
        %v1212 = vpop.f32.mrf.mxu0
        %v1213 = vadd.f32 %v1148, %v1212
        %v1214 = vpop.f32.mrf.mxu0
        %1215 = vmatprep.mubr.bf16.mxu0 0
        %1216 = vmatmul.mubr.bf16.gmra.mxu0 %v1097
        %v1217 = vpop.f32.mrf.mxu0
        %v1218 = vadd.f32 %v1153, %v1217
        %v1219 = vpop.f32.mrf.mxu0
        %v1220 = vpop.f32.mrf.mxu0
        %v1221 = vadd.f32 %v1156, %v1220
        %v1222 = vpop.f32.mrf.mxu0
        %1223 = vmatprep.mubr.bf16.mxu0 0
        %1224 = vmatmul.mubr.bf16.gmra.mxu0 %v1100
        %v1225 = vpop.f32.mrf.mxu0
        %v1226 = vadd.f32 %v1161, %v1225
        %v1227 = vpop.f32.mrf.mxu0
        %v1228 = vpop.f32.mrf.mxu0
        %v1229 = vadd.f32 %v1164, %v1228
        %v1230 = vpop.f32.mrf.mxu0
        %1231 = vdwg.mxu0
        %1232 = vst.msk [vmem:[%s232] sm:$0xff] %vm246, %v1202
        %1233 = vst.msk [vmem:[%s232 + $0x8] sm:$0xff] %vm246, %v1205
        %1234 = vst.msk [vmem:[%s232 + $0x10] sm:$0xff] %vm246, %v1210
        %1235 = vst.msk [vmem:[%s232 + $0x18] sm:$0xff] %vm246, %v1213
        %1236 = vst.msk [vmem:[%s232 + $0x20] sm:$0xff] %vm246, %v1218
        %1237 = vst.msk [vmem:[%s232 + $0x28] sm:$0xff] %vm246, %v1221
        %1238 = vst.msk [vmem:[%s232 + $0x30] sm:$0xff] %vm246, %v1226
        %1239 = vst.msk [vmem:[%s232 + $0x38] sm:$0xff] %vm246, %v1229
        %s1240 = sand.u32 %s142, 1
        %s1241 = scalar_lea.sflag [#allocation5], %s1240
        %s1242 = sand.u32 %s142, 1
        %s1243 = smul.addr %s1242, 64
        %s1244 = scalar_lea.vmem [#allocation4], %s1243
        // Predicated region
        $region41: #{preact_block_forward.7} parent=39 // pred_check
          %p1245 = pneg %p152
        $region42: #{preact_block_forward.7} parent=39 // pred_check_branch
          %1247 = sbr.rel (%p1245) target = $region44
        $region43: #{preact_block_forward.7} parent=39 // pred_region
          %s1249 = ssub.s32 1024, 1024
          %1250 = vsyncadd %s1241, %s1249
          %s1251 = smul.addr %s19, 8
          %s1252 = smul.addr %s1251, 128
          %s1253 = scalar_lea.hbm %s5, %s1252
          %s1254 = sshll.u32 %s1244, 4
          %s1255 = int_to_ptr.vmem [resolvable:$true] %s1254
          %1260 = dma.vmem_to_hbm [thread:$0]  %s1255, 1024, %s1253, %s1241, 128, 128, 8
        $region44: #{preact_block_forward.7} parent=39 // pred_fallthru
          _
      $region40: #{preact_block_forward.7} parent=5 // pred_fallthru
        _
      %p1261 = scmp.le.s32.totalorder 2, %s14
      // Predicated region
      $region45: #{preact_block_forward.7} parent=5 // pred_check
        %p1262 = pneg %p1261
      $region46: #{preact_block_forward.7} parent=5 // pred_check_branch
        %1264 = sbr.rel (%p1262) target = $region48
      $region47: #{preact_block_forward.7} parent=5 // pred_region
        %s1265 = ssub.s32 %s14, 2
        // Predicated region
        $region49: #{preact_block_forward.7} parent=47 // pred_check
          %p1266 = pneg %p158
        $region50: #{preact_block_forward.7} parent=47 // pred_check_branch
          %1268 = sbr.rel (%p1266) target = $region52
        $region51: #{preact_block_forward.7} parent=47 // pred_region
          %s1269 = sand.u32 %s143, 1
          %s1270 = scalar_lea.sflag [#allocation5], %s1269
          %s1271 = sand.u32 %s143, 1
          %s1272 = smul.addr %s1271, 64
          %s1273 = scalar_lea.vmem [#allocation4], %s1272
          %1274 = dma.done %s1270, 1024
        $region52: #{preact_block_forward.7} parent=47 // pred_fallthru
          _
      $region48: #{preact_block_forward.7} parent=5 // pred_fallthru
        _
    $region6: #{preact_block_forward.7} parent=1 // loop_footer
      %s18 = sadd.s32 1, %s14
    $region7: #{preact_block_forward.7} parent=1 // loop_footer_branch
      %13 = sbr.rel target = $region3
    $region8: #{preact_block_forward.7} parent=1 // loop_exit
      _
    %1275 = vsyncpa [#allocation5], 1
    %s1276 = scalar_lea.sflag [#allocation5], 1
    %1277 = vsyncpa %s1276, 1

// kernel: preact_block_forward.5
$region0: #{preact_block_forward.5}
  #allocation0 [shape = 'u32[]', space=smem, size = 0x4, offset = 0x4, fixed_abs, tag = 'smem constant byte address 0x4 - core index']
  #allocation1 [shape = 'u32[144,128]{1,0:T(1,128)}', space=vmem, size = 0x12000, scoped, tag = 'internal scratch']
  #allocation2 [shape = 'f32[4,10,10,16]{3,2,1,0:T(8,128)}', space=vmem, size = 0x50000, scoped, tag = 'scratch operand']
  #allocation3 [shape = 'bf16[64,144]{1,0:T(8,128)(2,1)}', space=vmem, size = 0x8000, scoped, tag = 'scratch operand']
  %s0 = inlined_call_operand.vmem [shape: f32[2,8,8,16], index: 0, kind: input, shape index: {}]
  %s1 = inlined_call_operand.vmem [shape: f32[2,8,8,16], index: 1, kind: input, shape index: {}]
  %s2 = inlined_call_operand.vmem [shape: f32[2,8,8,16], index: 2, kind: input, shape index: {}]
  %s3 = inlined_call_operand.vmem [shape: f32[2,8,8,16], index: 3, kind: input, shape index: {}]
  %s4 = inlined_call_operand.vmem [shape: f32[1,16], index: 4, kind: input, shape index: {}]
  %s5 = inlined_call_operand.vmem [shape: f32[1,16], index: 5, kind: input, shape index: {}]
  %s6 = inlined_call_operand.vmem [shape: bf16[144,32], index: 6, kind: input, shape index: {}]
  %s7 = inlined_call_operand.vmem [shape: bf16[16,32], index: 7, kind: input, shape index: {}]
  %s8 = inlined_call_operand.vmem [shape: bf16[2,8,8,32], index: 8, kind: output, shape index: {0}]
  %s9 = inlined_call_operand.vmem [shape: f32[2,8,8,32], index: 9, kind: output, shape index: {1}]
  %10 = xla_tuple %s8, %s9
  %s11 = sld [smem:[#allocation0]]
  $region73: #{preact_block_forward.5} parent=0
    _
  %s13 = ssub.s32 1, %s11
  %s14 = scalar_select 0, %s13, %s11
  loop: start=0, step=1, limit=4
  $region2: #{preact_block_forward.5} parent=0 // loop_pre_header
    _
  $region3: #{preact_block_forward.5} parent=0 // loop_header
    %s16 = sphi 0, %s20
    %p17 = scmp.ge.s32.totalorder %s16, 4
    %s26 = sphi 0, %s28
    %s29 = sphi 0, %s26
    %s30 = sphi 0, %s29
    %s46 = sphi 0, %s30
    %s52 = sphi 0, %s54
    %s55 = sphi 0, %s52
    %s56 = sphi 0, %s55
    %s72 = sphi 0, %s56
    %s78 = sphi 0, %s80
    %s81 = sphi 0, %s78
    %s82 = sphi 0, %s81
    %s98 = sphi 0, %s82
    %s104 = sphi 0, %s106
    %s107 = sphi 0, %s104
    %s108 = sphi 0, %s107
    %s124 = sphi 0, %s108
    %s128 = sphi 0, %s128
    %s130 = sphi 0, %s128
    %s131 = sphi 0, %s130
    %s145 = sphi 0, %s131
    %s149 = sphi 0, %s149
    %s151 = sphi 0, %s149
    %s152 = sphi 0, %s151
    %s166 = sphi 0, %s152
    %s170 = sphi 0, %s170
    %s172 = sphi 0, %s170
    %s173 = sphi 0, %s172
    %s187 = sphi 0, %s173
    %s191 = sphi 0, %s191
    %s193 = sphi 0, %s191
    %s194 = sphi 0, %s193
    %s208 = sphi 0, %s194
    %s214 = sphi 0, %s216
    %s217 = sphi 0, %s214
    %s218 = sphi 0, %s217
    %s234 = sphi 0, %s218
    %s240 = sphi 0, %s242
    %s243 = sphi 0, %s240
    %s244 = sphi 0, %s243
    %s260 = sphi 0, %s244
  $region4: #{preact_block_forward.5} parent=0 // loop_header_branch
    %19 = sbr.rel (%p17) target = $region8
  $region5: #{preact_block_forward.5} parent=0 // loop_body
    %s21 = ssub.s32 %s16, 1
    %s22 = ssub.s32 %s16, 2
    %s23 = sadd.s32 %s16, 1
    %s24 = ssub.s32 %s16, %s23
    %p25 = scmp.eq.s32.totalorder %s24, 0
    %s27 = sadd.s32 %s26, 1
    %s28 = scalar_select %p25, %s26, %s27
    %p31 = pneg %p25
    %p32 = scmp.eq.s32.totalorder %s16, 1
    %p33 = por %p31, %p32
    %p34 = scmp.ne.s32.totalorder %s26, %s29
    %p35 = scmp.eq.s32.totalorder %s16, 0
    %p36 = por %p34, %p35
    %p37 = scmp.ne.s32.totalorder %s26, %s29
    %p38 = scmp.eq.s32.totalorder %s21, 1
    %p39 = por %p37, %p38
    %p40 = scmp.ne.s32.totalorder %s29, %s30
    %p41 = scmp.eq.s32.totalorder %s21, 0
    %p42 = por %p40, %p41
    %p43 = scmp.ne.s32.totalorder %s29, %s30
    %p44 = scmp.eq.s32.totalorder %s22, 1
    %p45 = por %p43, %p44
    %p47 = scmp.ne.s32.totalorder %s30, %s46
    %p48 = scmp.eq.s32.totalorder %s22, 0
    %p49 = por %p47, %p48
    %s50 = ssub.s32 %s16, %s23
    %p51 = scmp.eq.s32.totalorder %s50, 0
    %s53 = sadd.s32 %s52, 1
    %s54 = scalar_select %p51, %s52, %s53
    %p57 = pneg %p51
    %p58 = scmp.eq.s32.totalorder %s16, 1
    %p59 = por %p57, %p58
    %p60 = scmp.ne.s32.totalorder %s52, %s55
    %p61 = scmp.eq.s32.totalorder %s16, 0
    %p62 = por %p60, %p61
    %p63 = scmp.ne.s32.totalorder %s52, %s55
    %p64 = scmp.eq.s32.totalorder %s21, 1
    %p65 = por %p63, %p64
    %p66 = scmp.ne.s32.totalorder %s55, %s56
    %p67 = scmp.eq.s32.totalorder %s21, 0
    %p68 = por %p66, %p67
    %p69 = scmp.ne.s32.totalorder %s55, %s56
    %p70 = scmp.eq.s32.totalorder %s22, 1
    %p71 = por %p69, %p70
    %p73 = scmp.ne.s32.totalorder %s56, %s72
    %p74 = scmp.eq.s32.totalorder %s22, 0
    %p75 = por %p73, %p74
    %s76 = ssub.s32 %s16, %s23
    %p77 = scmp.eq.s32.totalorder %s76, 0
    %s79 = sadd.s32 %s78, 1
    %s80 = scalar_select %p77, %s78, %s79
    %p83 = pneg %p77
    %p84 = scmp.eq.s32.totalorder %s16, 1
    %p85 = por %p83, %p84
    %p86 = scmp.ne.s32.totalorder %s78, %s81
    %p87 = scmp.eq.s32.totalorder %s16, 0
    %p88 = por %p86, %p87
    %p89 = scmp.ne.s32.totalorder %s78, %s81
    %p90 = scmp.eq.s32.totalorder %s21, 1
    %p91 = por %p89, %p90
    %p92 = scmp.ne.s32.totalorder %s81, %s82
    %p93 = scmp.eq.s32.totalorder %s21, 0
    %p94 = por %p92, %p93
    %p95 = scmp.ne.s32.totalorder %s81, %s82
    %p96 = scmp.eq.s32.totalorder %s22, 1
    %p97 = por %p95, %p96
    %p99 = scmp.ne.s32.totalorder %s82, %s98
    %p100 = scmp.eq.s32.totalorder %s22, 0
    %p101 = por %p99, %p100
    %s102 = ssub.s32 %s16, %s23
    %p103 = scmp.eq.s32.totalorder %s102, 0
    %s105 = sadd.s32 %s104, 1
    %s106 = scalar_select %p103, %s104, %s105
    %p109 = pneg %p103
    %p110 = scmp.eq.s32.totalorder %s16, 1
    %p111 = por %p109, %p110
    %p112 = scmp.ne.s32.totalorder %s104, %s107
    %p113 = scmp.eq.s32.totalorder %s16, 0
    %p114 = por %p112, %p113
    %p115 = scmp.ne.s32.totalorder %s104, %s107
    %p116 = scmp.eq.s32.totalorder %s21, 1
    %p117 = por %p115, %p116
    %p118 = scmp.ne.s32.totalorder %s107, %s108
    %p119 = scmp.eq.s32.totalorder %s21, 0
    %p120 = por %p118, %p119
    %p121 = scmp.ne.s32.totalorder %s107, %s108
    %p122 = scmp.eq.s32.totalorder %s22, 1
    %p123 = por %p121, %p122
    %p125 = scmp.ne.s32.totalorder %s108, %s124
    %p126 = scmp.eq.s32.totalorder %s22, 0
    %p127 = por %p125, %p126
    %s129 = sadd.s32 %s128, 1
    %p132 = scmp.eq.s32.totalorder %s16, 1
    %p133 = scmp.ne.s32.totalorder %s128, %s130
    %p134 = scmp.eq.s32.totalorder %s16, 0
    %p135 = por %p133, %p134
    %p136 = scmp.ne.s32.totalorder %s128, %s130
    %p137 = scmp.eq.s32.totalorder %s21, 1
    %p138 = por %p136, %p137
    %p139 = scmp.ne.s32.totalorder %s130, %s131
    %p140 = scmp.eq.s32.totalorder %s21, 0
    %p141 = por %p139, %p140
    %p142 = scmp.ne.s32.totalorder %s130, %s131
    %p143 = scmp.eq.s32.totalorder %s22, 1
    %p144 = por %p142, %p143
    %p146 = scmp.ne.s32.totalorder %s131, %s145
    %p147 = scmp.eq.s32.totalorder %s22, 0
    %p148 = por %p146, %p147
    %s150 = sadd.s32 %s149, 1
    %p153 = scmp.eq.s32.totalorder %s16, 1
    %p154 = scmp.ne.s32.totalorder %s149, %s151
    %p155 = scmp.eq.s32.totalorder %s16, 0
    %p156 = por %p154, %p155
    %p157 = scmp.ne.s32.totalorder %s149, %s151
    %p158 = scmp.eq.s32.totalorder %s21, 1
    %p159 = por %p157, %p158
    %p160 = scmp.ne.s32.totalorder %s151, %s152
    %p161 = scmp.eq.s32.totalorder %s21, 0
    %p162 = por %p160, %p161
    %p163 = scmp.ne.s32.totalorder %s151, %s152
    %p164 = scmp.eq.s32.totalorder %s22, 1
    %p165 = por %p163, %p164
    %p167 = scmp.ne.s32.totalorder %s152, %s166
    %p168 = scmp.eq.s32.totalorder %s22, 0
    %p169 = por %p167, %p168
    %s171 = sadd.s32 %s170, 1
    %p174 = scmp.eq.s32.totalorder %s16, 1
    %p175 = scmp.ne.s32.totalorder %s170, %s172
    %p176 = scmp.eq.s32.totalorder %s16, 0
    %p177 = por %p175, %p176
    %p178 = scmp.ne.s32.totalorder %s170, %s172
    %p179 = scmp.eq.s32.totalorder %s21, 1
    %p180 = por %p178, %p179
    %p181 = scmp.ne.s32.totalorder %s172, %s173
    %p182 = scmp.eq.s32.totalorder %s21, 0
    %p183 = por %p181, %p182
    %p184 = scmp.ne.s32.totalorder %s172, %s173
    %p185 = scmp.eq.s32.totalorder %s22, 1
    %p186 = por %p184, %p185
    %p188 = scmp.ne.s32.totalorder %s173, %s187
    %p189 = scmp.eq.s32.totalorder %s22, 0
    %p190 = por %p188, %p189
    %s192 = sadd.s32 %s191, 1
    %p195 = scmp.eq.s32.totalorder %s16, 1
    %p196 = scmp.ne.s32.totalorder %s191, %s193
    %p197 = scmp.eq.s32.totalorder %s16, 0
    %p198 = por %p196, %p197
    %p199 = scmp.ne.s32.totalorder %s191, %s193
    %p200 = scmp.eq.s32.totalorder %s21, 1
    %p201 = por %p199, %p200
    %p202 = scmp.ne.s32.totalorder %s193, %s194
    %p203 = scmp.eq.s32.totalorder %s21, 0
    %p204 = por %p202, %p203
    %p205 = scmp.ne.s32.totalorder %s193, %s194
    %p206 = scmp.eq.s32.totalorder %s22, 1
    %p207 = por %p205, %p206
    %p209 = scmp.ne.s32.totalorder %s194, %s208
    %p210 = scmp.eq.s32.totalorder %s22, 0
    %p211 = por %p209, %p210
    %s212 = ssub.s32 %s16, %s23
    %p213 = scmp.eq.s32.totalorder %s212, 0
    %s215 = sadd.s32 %s214, 1
    %s216 = scalar_select %p213, %s214, %s215
    %p219 = pneg %p213
    %p220 = scmp.eq.s32.totalorder %s16, 1
    %p221 = por %p219, %p220
    %p222 = scmp.ne.s32.totalorder %s214, %s217
    %p223 = scmp.eq.s32.totalorder %s16, 0
    %p224 = por %p222, %p223
    %p225 = scmp.ne.s32.totalorder %s214, %s217
    %p226 = scmp.eq.s32.totalorder %s21, 1
    %p227 = por %p225, %p226
    %p228 = scmp.ne.s32.totalorder %s217, %s218
    %p229 = scmp.eq.s32.totalorder %s21, 0
    %p230 = por %p228, %p229
    %p231 = scmp.ne.s32.totalorder %s217, %s218
    %p232 = scmp.eq.s32.totalorder %s22, 1
    %p233 = por %p231, %p232
    %p235 = scmp.ne.s32.totalorder %s218, %s234
    %p236 = scmp.eq.s32.totalorder %s22, 0
    %p237 = por %p235, %p236
    %s238 = ssub.s32 %s16, %s23
    %p239 = scmp.eq.s32.totalorder %s238, 0
    %s241 = sadd.s32 %s240, 1
    %s242 = scalar_select %p239, %s240, %s241
    %p245 = pneg %p239
    %p246 = scmp.eq.s32.totalorder %s16, 1
    %p247 = por %p245, %p246
    %p248 = scmp.ne.s32.totalorder %s240, %s243
    %p249 = scmp.eq.s32.totalorder %s16, 0
    %p250 = por %p248, %p249
    %p251 = scmp.ne.s32.totalorder %s240, %s243
    %p252 = scmp.eq.s32.totalorder %s21, 1
    %p253 = por %p251, %p252
    %p254 = scmp.ne.s32.totalorder %s243, %s244
    %p255 = scmp.eq.s32.totalorder %s21, 0
    %p256 = por %p254, %p255
    %p257 = scmp.ne.s32.totalorder %s243, %s244
    %p258 = scmp.eq.s32.totalorder %s22, 1
    %p259 = por %p257, %p258
    %p261 = scmp.ne.s32.totalorder %s244, %s260
    %p262 = scmp.eq.s32.totalorder %s22, 0
    %p263 = por %p261, %p262
    %p264 = scmp.le.s32.totalorder 1, %s16
    %p265 = scmp.lt.s32.totalorder %s16, 3
    %p266 = pnand %p264, %p265
    %p267 = pneg %p266
    // Predicated region
    $region9: #{preact_block_forward.5} parent=5 // pred_check
      _
    $region10: #{preact_block_forward.5} parent=5 // pred_check_branch
      %269 = sbr.rel (%p266) target = $region12
    $region11: #{preact_block_forward.5} parent=5 // pred_region
      %s270 = ssub.s32 %s16, 1
      // Predicated region
      $region13: #{preact_block_forward.5} parent=11 // pred_check
        %p271 = pneg %p141
      $region14: #{preact_block_forward.5} parent=11 // pred_check_branch
        %273 = sbr.rel (%p271) target = $region16
      $region15: #{preact_block_forward.5} parent=11 // pred_region
        _
      $region16: #{preact_block_forward.5} parent=11 // pred_fallthru
        _
      // Predicated region
      $region17: #{preact_block_forward.5} parent=11 // pred_check
        %p274 = pneg %p162
      $region18: #{preact_block_forward.5} parent=11 // pred_check_branch
        %276 = sbr.rel (%p274) target = $region20
      $region19: #{preact_block_forward.5} parent=11 // pred_region
        _
      $region20: #{preact_block_forward.5} parent=11 // pred_fallthru
        _
      // Predicated region
      $region21: #{preact_block_forward.5} parent=11 // pred_check
        %p277 = pneg %p183
      $region22: #{preact_block_forward.5} parent=11 // pred_check_branch
        %279 = sbr.rel (%p277) target = $region24
      $region23: #{preact_block_forward.5} parent=11 // pred_region
        _
      $region24: #{preact_block_forward.5} parent=11 // pred_fallthru
        _
      // Predicated region
      $region25: #{preact_block_forward.5} parent=11 // pred_check
        %p280 = pneg %p204
      $region26: #{preact_block_forward.5} parent=11 // pred_check_branch
        %282 = sbr.rel (%p280) target = $region28
      $region27: #{preact_block_forward.5} parent=11 // pred_region
        _
      $region28: #{preact_block_forward.5} parent=11 // pred_fallthru
        _
    $region12: #{preact_block_forward.5} parent=5 // pred_fallthru
      _
    %p283 = scmp.lt.s32.totalorder %s16, 2
    // Predicated region
    $region29: #{preact_block_forward.5} parent=5 // pred_check
      %p284 = pneg %p283
    $region30: #{preact_block_forward.5} parent=5 // pred_check_branch
      %286 = sbr.rel (%p284) target = $region32
    $region31: #{preact_block_forward.5} parent=5 // pred_region
      // Predicated region
      $region33: #{preact_block_forward.5} parent=31 // pred_check
        %p287 = pneg %p36
      $region34: #{preact_block_forward.5} parent=31 // pred_check_branch
        %289 = sbr.rel (%p287) target = $region36
      $region35: #{preact_block_forward.5} parent=31 // pred_region
        %p290 = scmp.lt.s32.totalorder %s16, 1
        %s291 = scalar_select %p290, %s16, 1
        %s292 = smul.addr %s291, 8
        %s293 = smul.addr %s292, 8
        %s294 = scalar_lea.vmem %s0, %s293
      $region36: #{preact_block_forward.5} parent=31 // pred_fallthru
        _
      // Predicated region
      $region37: #{preact_block_forward.5} parent=31 // pred_check
        %p295 = pneg %p62
      $region38: #{preact_block_forward.5} parent=31 // pred_check_branch
        %297 = sbr.rel (%p295) target = $region40
      $region39: #{preact_block_forward.5} parent=31 // pred_region
        %p298 = scmp.lt.s32.totalorder %s16, 1
        %s299 = scalar_select %p298, %s16, 1
        %s300 = smul.addr %s299, 8
        %s301 = smul.addr %s300, 8
        %s302 = scalar_lea.vmem %s1, %s301
      $region40: #{preact_block_forward.5} parent=31 // pred_fallthru
        _
      // Predicated region
      $region41: #{preact_block_forward.5} parent=31 // pred_check
        %p303 = pneg %p88
      $region42: #{preact_block_forward.5} parent=31 // pred_check_branch
        %305 = sbr.rel (%p303) target = $region44
      $region43: #{preact_block_forward.5} parent=31 // pred_region
        %p306 = scmp.lt.s32.totalorder %s16, 1
        %s307 = scalar_select %p306, %s16, 1
        %s308 = smul.addr %s307, 8
        %s309 = smul.addr %s308, 8
        %s310 = scalar_lea.vmem %s2, %s309
      $region44: #{preact_block_forward.5} parent=31 // pred_fallthru
        _
      // Predicated region
      $region45: #{preact_block_forward.5} parent=31 // pred_check
        %p311 = pneg %p114
      $region46: #{preact_block_forward.5} parent=31 // pred_check_branch
        %313 = sbr.rel (%p311) target = $region48
      $region47: #{preact_block_forward.5} parent=31 // pred_region
        %p314 = scmp.lt.s32.totalorder %s16, 1
        %s315 = scalar_select %p314, %s16, 1
        %s316 = smul.addr %s315, 8
        %s317 = smul.addr %s316, 8
        %s318 = scalar_lea.vmem %s3, %s317
      $region48: #{preact_block_forward.5} parent=31 // pred_fallthru
        _
    $region32: #{preact_block_forward.5} parent=5 // pred_fallthru
      _
    %p319 = scmp.le.s32.totalorder 1, %s16
    %p320 = scmp.lt.s32.totalorder %s16, 3
    %p321 = pnand %p319, %p320
    %p322 = pneg %p321
    // Predicated region
    $region49: #{preact_block_forward.5} parent=5 // pred_check
      _
    $region50: #{preact_block_forward.5} parent=5 // pred_check_branch
      %324 = sbr.rel (%p321) target = $region52
    $region51: #{preact_block_forward.5} parent=5 // pred_region
      %s325 = ssub.s32 %s16, 1
      %p326 = scmp.lt.s32.totalorder %s21, 1
      %s327 = scalar_select %p326, %s21, 1
      %s328 = smul.addr %s327, 8
      %s329 = smul.addr %s328, 8
      %s330 = scalar_lea.vmem %s0, %s329
      %p331 = pneg %p42
      %p332 = pneg %p39
      %p333 = scmp.lt.s32.totalorder %s21, 1
      %s334 = scalar_select %p333, %s21, 1
      %s335 = smul.addr %s334, 8
      %s336 = smul.addr %s335, 8
      %s337 = scalar_lea.vmem %s1, %s336
      %p338 = pneg %p68
      %p339 = pneg %p65
      %p340 = scmp.lt.s32.totalorder %s21, 1
      %s341 = scalar_select %p340, %s21, 1
      %s342 = smul.addr %s341, 8
      %s343 = smul.addr %s342, 8
      %s344 = scalar_lea.vmem %s2, %s343
      %p345 = pneg %p94
      %p346 = pneg %p91
      %p347 = scmp.lt.s32.totalorder %s21, 1
      %s348 = scalar_select %p347, %s21, 1
      %s349 = smul.addr %s348, 8
      %s350 = smul.addr %s349, 8
      %s351 = scalar_lea.vmem %s3, %s350
      %p352 = pneg %p120
      %p353 = pneg %p117
      %p354 = pneg %p141
      %p355 = pneg %p138
      %p356 = pneg %p162
      %p357 = pneg %p159
      %p358 = pneg %p183
      %p359 = pneg %p180
      %p360 = pneg %p204
      %p361 = pneg %p201
      %p362 = pneg %p230
      %p363 = pneg %p227
      %p364 = scmp.lt.s32.totalorder %s21, 1
      %s365 = scalar_select %p364, %s21, 1
      %s366 = smul.addr %s365, 8
      %s367 = smul.addr %s366, 4
      %s368 = scalar_lea.vmem %s8, %s367
      %p369 = pneg %p256
      %p370 = pneg %p253
      %p371 = scmp.lt.s32.totalorder %s21, 1
      %s372 = scalar_select %p371, %s21, 1
      %s373 = smul.addr %s372, 8
      %s374 = smul.addr %s373, 8
      %s375 = scalar_lea.vmem %s9, %s374
      %p376 = scmp.lt.s32.totalorder %s21, 1
      %s377 = scalar_select %p376, %s21, 1
      %s378 = smul.addr %s377, 8
      %s379 = smul.addr %s378, 8
      %s380 = scalar_lea.vmem %s0, %s379
      %p381 = scmp.lt.s32.totalorder %s21, 1
      %s382 = scalar_select %p381, %s21, 1
      %s383 = smul.addr %s382, 8
      %s384 = smul.addr %s383, 8
      %s385 = scalar_lea.vmem %s1, %s384
      %p386 = scmp.lt.s32.totalorder %s21, 1
      %s387 = scalar_select %p386, %s21, 1
      %s388 = smul.addr %s387, 8
      %s389 = smul.addr %s388, 8
      %s390 = scalar_lea.vmem %s2, %s389
      %p391 = scmp.lt.s32.totalorder %s21, 1
      %s392 = scalar_select %p391, %s21, 1
      %s393 = smul.addr %s392, 8
      %s394 = smul.addr %s393, 8
      %s395 = scalar_lea.vmem %s3, %s394
      %p396 = scmp.lt.s32.totalorder %s21, 1
      %s397 = scalar_select %p396, %s21, 1
      %s398 = smul.addr %s397, 8
      %s399 = smul.addr %s398, 4
      %s400 = scalar_lea.vmem %s8, %s399
      %p401 = scmp.lt.s32.totalorder %s21, 1
      %s402 = scalar_select %p401, %s21, 1
      %s403 = smul.addr %s402, 8
      %s404 = smul.addr %s403, 8
      %s405 = scalar_lea.vmem %s9, %s404
      %v407 = vld [vmem:[%s4] sm:$0x1]
      %v408 = vld [vmem:[%s5] sm:$0x1]
      %vm409 = vcmask 130048
      %410 = vst.msk [vmem:[#allocation2] sm:$0xff] %vm409, 0.0
      %vm411 = vcmask 123904
      %412 = vst.msk [vmem:[#allocation2 + $0x8] sm:$0x3] %vm411, 0.0
      %413 = vst.msk [vmem:[#allocation2 + $0x10] sm:$0xff] %vm409, 0.0
      %414 = vst.msk [vmem:[#allocation2 + $0x18] sm:$0x3] %vm411, 0.0
      %415 = vst.msk [vmem:[#allocation2 + $0x20] sm:$0xff] %vm409, 0.0
      %416 = vst.msk [vmem:[#allocation2 + $0x28] sm:$0x3] %vm411, 0.0
      %417 = vst.msk [vmem:[#allocation2 + $0x30] sm:$0xff] %vm409, 0.0
      %418 = vst.msk [vmem:[#allocation2 + $0x38] sm:$0x3] %vm411, 0.0
      %419 = vst.msk [vmem:[#allocation2 + $0x40] sm:$0xff] %vm409, 0.0
      %420 = vst.msk [vmem:[#allocation2 + $0x48] sm:$0x3] %vm411, 0.0
      %421 = vst.msk [vmem:[#allocation2 + $0x50] sm:$0xff] %vm409, 0.0
      %422 = vst.msk [vmem:[#allocation2 + $0x58] sm:$0x3] %vm411, 0.0
      %423 = vst.msk [vmem:[#allocation2 + $0x60] sm:$0xff] %vm409, 0.0
      %424 = vst.msk [vmem:[#allocation2 + $0x68] sm:$0x3] %vm411, 0.0
      %425 = vst.msk [vmem:[#allocation2 + $0x70] sm:$0xff] %vm409, 0.0
      %426 = vst.msk [vmem:[#allocation2 + $0x78] sm:$0x3] %vm411, 0.0
      %427 = vst.msk [vmem:[#allocation2 + $0x80] sm:$0xff] %vm409, 0.0
      %428 = vst.msk [vmem:[#allocation2 + $0x88] sm:$0x3] %vm411, 0.0
      %429 = vst.msk [vmem:[#allocation2 + $0x90] sm:$0xff] %vm409, 0.0
      %430 = vst.msk [vmem:[#allocation2 + $0x98] sm:$0x3] %vm411, 0.0
      %431 = vst.msk [vmem:[#allocation2 + $0xa0] sm:$0xff] %vm409, 0.0
      %432 = vst.msk [vmem:[#allocation2 + $0xa8] sm:$0x3] %vm411, 0.0
      %433 = vst.msk [vmem:[#allocation2 + $0xb0] sm:$0xff] %vm409, 0.0
      %434 = vst.msk [vmem:[#allocation2 + $0xb8] sm:$0x3] %vm411, 0.0
      %435 = vst.msk [vmem:[#allocation2 + $0xc0] sm:$0xff] %vm409, 0.0
      %436 = vst.msk [vmem:[#allocation2 + $0xc8] sm:$0x3] %vm411, 0.0
      %437 = vst.msk [vmem:[#allocation2 + $0xd0] sm:$0xff] %vm409, 0.0
      %438 = vst.msk [vmem:[#allocation2 + $0xd8] sm:$0x3] %vm411, 0.0
      %439 = vst.msk [vmem:[#allocation2 + $0xe0] sm:$0xff] %vm409, 0.0
      %440 = vst.msk [vmem:[#allocation2 + $0xe8] sm:$0x3] %vm411, 0.0
      %441 = vst.msk [vmem:[#allocation2 + $0xf0] sm:$0xff] %vm409, 0.0
      %442 = vst.msk [vmem:[#allocation2 + $0xf8] sm:$0x3] %vm411, 0.0
      %443 = vst.msk [vmem:[#allocation2 + $0x100] sm:$0xff] %vm409, 0.0
      %444 = vst.msk [vmem:[#allocation2 + $0x108] sm:$0x3] %vm411, 0.0
      %445 = vst.msk [vmem:[#allocation2 + $0x110] sm:$0xff] %vm409, 0.0
      %446 = vst.msk [vmem:[#allocation2 + $0x118] sm:$0x3] %vm411, 0.0
      %447 = vst.msk [vmem:[#allocation2 + $0x120] sm:$0xff] %vm409, 0.0
      %448 = vst.msk [vmem:[#allocation2 + $0x128] sm:$0x3] %vm411, 0.0
      %449 = vst.msk [vmem:[#allocation2 + $0x130] sm:$0xff] %vm409, 0.0
      %450 = vst.msk [vmem:[#allocation2 + $0x138] sm:$0x3] %vm411, 0.0
      %451 = vst.msk [vmem:[#allocation2 + $0x140] sm:$0xff] %vm409, 0.0
      %452 = vst.msk [vmem:[#allocation2 + $0x148] sm:$0x3] %vm411, 0.0
      %453 = vst.msk [vmem:[#allocation2 + $0x150] sm:$0xff] %vm409, 0.0
      %454 = vst.msk [vmem:[#allocation2 + $0x158] sm:$0x3] %vm411, 0.0
      %455 = vst.msk [vmem:[#allocation2 + $0x160] sm:$0xff] %vm409, 0.0
      %456 = vst.msk [vmem:[#allocation2 + $0x168] sm:$0x3] %vm411, 0.0
      %457 = vst.msk [vmem:[#allocation2 + $0x170] sm:$0xff] %vm409, 0.0
      %458 = vst.msk [vmem:[#allocation2 + $0x178] sm:$0x3] %vm411, 0.0
      %459 = vst.msk [vmem:[#allocation2 + $0x180] sm:$0xff] %vm409, 0.0
      %460 = vst.msk [vmem:[#allocation2 + $0x188] sm:$0x3] %vm411, 0.0
      %461 = vst.msk [vmem:[#allocation2 + $0x190] sm:$0xff] %vm409, 0.0
      %462 = vst.msk [vmem:[#allocation2 + $0x198] sm:$0x3] %vm411, 0.0
      %463 = vst.msk [vmem:[#allocation2 + $0x1a0] sm:$0xff] %vm409, 0.0
      %464 = vst.msk [vmem:[#allocation2 + $0x1a8] sm:$0x3] %vm411, 0.0
      %465 = vst.msk [vmem:[#allocation2 + $0x1b0] sm:$0xff] %vm409, 0.0
      %466 = vst.msk [vmem:[#allocation2 + $0x1b8] sm:$0x3] %vm411, 0.0
      %467 = vst.msk [vmem:[#allocation2 + $0x1c0] sm:$0xff] %vm409, 0.0
      %468 = vst.msk [vmem:[#allocation2 + $0x1c8] sm:$0x3] %vm411, 0.0
      %469 = vst.msk [vmem:[#allocation2 + $0x1d0] sm:$0xff] %vm409, 0.0
      %470 = vst.msk [vmem:[#allocation2 + $0x1d8] sm:$0x3] %vm411, 0.0
      %471 = vst.msk [vmem:[#allocation2 + $0x1e0] sm:$0xff] %vm409, 0.0
      %472 = vst.msk [vmem:[#allocation2 + $0x1e8] sm:$0x3] %vm411, 0.0
      %473 = vst.msk [vmem:[#allocation2 + $0x1f0] sm:$0xff] %vm409, 0.0
      %474 = vst.msk [vmem:[#allocation2 + $0x1f8] sm:$0x3] %vm411, 0.0
      %475 = vst.msk [vmem:[#allocation2 + $0x200] sm:$0xff] %vm409, 0.0
      %476 = vst.msk [vmem:[#allocation2 + $0x208] sm:$0x3] %vm411, 0.0
      %477 = vst.msk [vmem:[#allocation2 + $0x210] sm:$0xff] %vm409, 0.0
      %478 = vst.msk [vmem:[#allocation2 + $0x218] sm:$0x3] %vm411, 0.0
      %479 = vst.msk [vmem:[#allocation2 + $0x220] sm:$0xff] %vm409, 0.0
      %480 = vst.msk [vmem:[#allocation2 + $0x228] sm:$0x3] %vm411, 0.0
      %481 = vst.msk [vmem:[#allocation2 + $0x230] sm:$0xff] %vm409, 0.0
      %482 = vst.msk [vmem:[#allocation2 + $0x238] sm:$0x3] %vm411, 0.0
      %483 = vst.msk [vmem:[#allocation2 + $0x240] sm:$0xff] %vm409, 0.0
      %484 = vst.msk [vmem:[#allocation2 + $0x248] sm:$0x3] %vm411, 0.0
      %485 = vst.msk [vmem:[#allocation2 + $0x250] sm:$0xff] %vm409, 0.0
      %486 = vst.msk [vmem:[#allocation2 + $0x258] sm:$0x3] %vm411, 0.0
      %487 = vst.msk [vmem:[#allocation2 + $0x260] sm:$0xff] %vm409, 0.0
      %488 = vst.msk [vmem:[#allocation2 + $0x268] sm:$0x3] %vm411, 0.0
      %489 = vst.msk [vmem:[#allocation2 + $0x270] sm:$0xff] %vm409, 0.0
      %490 = vst.msk [vmem:[#allocation2 + $0x278] sm:$0x3] %vm411, 0.0
      %v491 = vld [vmem:[%s380] sm:$0xff]
      %v492 = vld [vmem:[%s380 + $0x8] sm:$0xff]
      %v493 = vld [vmem:[%s380 + $0x10] sm:$0xff]
      %v494 = vld [vmem:[%s380 + $0x18] sm:$0xff]
      %v495 = vld [vmem:[%s380 + $0x20] sm:$0xff]
      %v496 = vld [vmem:[%s380 + $0x28] sm:$0xff]
      %v497 = vld [vmem:[%s380 + $0x30] sm:$0xff]
      %v498 = vld [vmem:[%s380 + $0x38] sm:$0xff]
      %v500 = vlaneseq
      %v501 = vshrl.u32 %v500, 7
      %v502 = vsub.s32 0, %v501
      %v503 = vrot.slane %v407, %v502
      %v505 = vmul.f32 %v491, %v503
      %v506 = vmul.f32 %v492, %v503
      %v507 = vmul.f32 %v493, %v503
      %v508 = vmul.f32 %v494, %v503
      %v509 = vmul.f32 %v495, %v503
      %v510 = vmul.f32 %v496, %v503
      %v511 = vmul.f32 %v497, %v503
      %v512 = vmul.f32 %v498, %v503
      %v514 = vlaneseq
      %v515 = vshrl.u32 %v514, 7
      %v516 = vsub.s32 0, %v515
      %v517 = vrot.slane %v408, %v516
      %v519 = vadd.f32 %v505, %v517
      %v520 = vadd.f32 %v506, %v517
      %v521 = vadd.f32 %v507, %v517
      %v522 = vadd.f32 %v508, %v517
      %v523 = vadd.f32 %v509, %v517
      %v524 = vadd.f32 %v510, %v517
      %v525 = vadd.f32 %v511, %v517
      %v526 = vadd.f32 %v512, %v517
      %v527 = vmax.f32 %v519, 0.0
      %v528 = vmax.f32 %v520, 0.0
      %v529 = vmax.f32 %v521, 0.0
      %v530 = vmax.f32 %v522, 0.0
      %v531 = vmax.f32 %v523, 0.0
      %v532 = vmax.f32 %v524, 0.0
      %v533 = vmax.f32 %v525, 0.0
      %v534 = vmax.f32 %v526, 0.0
      %s535 = scalar_lea.vmem [#allocation2], 16
      %536 = vst.msk [vmem:[%s535 + $0x1] sm:$0xff] %vm409, %v527
      %537 = vst.msk [vmem:[%s535 + $0x11] sm:$0xff] %vm409, %v528
      %538 = vst.msk [vmem:[%s535 + $0x21] sm:$0xff] %vm409, %v529
      %539 = vst.msk [vmem:[%s535 + $0x31] sm:$0xff] %vm409, %v530
      %540 = vst.msk [vmem:[%s535 + $0x41] sm:$0xff] %vm409, %v531
      %541 = vst.msk [vmem:[%s535 + $0x51] sm:$0xff] %vm409, %v532
      %542 = vst.msk [vmem:[%s535 + $0x61] sm:$0xff] %vm409, %v533
      %543 = vst.msk [vmem:[%s535 + $0x71] sm:$0xff] %vm409, %v534
      %v544 = vld [vmem:[%s385] sm:$0xff]
      %v545 = vld [vmem:[%s385 + $0x8] sm:$0xff]
      %v546 = vld [vmem:[%s385 + $0x10] sm:$0xff]
      %v547 = vld [vmem:[%s385 + $0x18] sm:$0xff]
      %v548 = vld [vmem:[%s385 + $0x20] sm:$0xff]
      %v549 = vld [vmem:[%s385 + $0x28] sm:$0xff]
      %v550 = vld [vmem:[%s385 + $0x30] sm:$0xff]
      %v551 = vld [vmem:[%s385 + $0x38] sm:$0xff]
      %v552 = vmul.f32 %v544, %v503
      %v553 = vmul.f32 %v545, %v503
      %v554 = vmul.f32 %v546, %v503
      %v555 = vmul.f32 %v547, %v503
      %v556 = vmul.f32 %v548, %v503
      %v557 = vmul.f32 %v549, %v503
      %v558 = vmul.f32 %v550, %v503
      %v559 = vmul.f32 %v551, %v503
      %v560 = vadd.f32 %v552, %v517
      %v561 = vadd.f32 %v553, %v517
      %v562 = vadd.f32 %v554, %v517
      %v563 = vadd.f32 %v555, %v517
      %v564 = vadd.f32 %v556, %v517
      %v565 = vadd.f32 %v557, %v517
      %v566 = vadd.f32 %v558, %v517
      %v567 = vadd.f32 %v559, %v517
      %v568 = vmax.f32 %v560, 0.0
      %v569 = vmax.f32 %v561, 0.0
      %v570 = vmax.f32 %v562, 0.0
      %v571 = vmax.f32 %v563, 0.0
      %v572 = vmax.f32 %v564, 0.0
      %v573 = vmax.f32 %v565, 0.0
      %v574 = vmax.f32 %v566, 0.0
      %v575 = vmax.f32 %v567, 0.0
      %s576 = scalar_lea.vmem [#allocation2], 176
      %577 = vst.msk [vmem:[%s576] sm:$0xff] %vm409, %v568
      %578 = vst.msk [vmem:[%s576 + $0x10] sm:$0xff] %vm409, %v569
      %579 = vst.msk [vmem:[%s576 + $0x20] sm:$0xff] %vm409, %v570
      %580 = vst.msk [vmem:[%s576 + $0x30] sm:$0xff] %vm409, %v571
      %581 = vst.msk [vmem:[%s576 + $0x40] sm:$0xff] %vm409, %v572
      %582 = vst.msk [vmem:[%s576 + $0x50] sm:$0xff] %vm409, %v573
      %583 = vst.msk [vmem:[%s576 + $0x60] sm:$0xff] %vm409, %v574
      %584 = vst.msk [vmem:[%s576 + $0x70] sm:$0xff] %vm409, %v575
      %v585 = vld [vmem:[%s390] sm:$0xff]
      %v586 = vld [vmem:[%s390 + $0x8] sm:$0xff]
      %v587 = vld [vmem:[%s390 + $0x10] sm:$0xff]
      %v588 = vld [vmem:[%s390 + $0x18] sm:$0xff]
      %v589 = vld [vmem:[%s390 + $0x20] sm:$0xff]
      %v590 = vld [vmem:[%s390 + $0x28] sm:$0xff]
      %v591 = vld [vmem:[%s390 + $0x30] sm:$0xff]
      %v592 = vld [vmem:[%s390 + $0x38] sm:$0xff]
      %v593 = vmul.f32 %v585, %v503
      %v594 = vmul.f32 %v586, %v503
      %v595 = vmul.f32 %v587, %v503
      %v596 = vmul.f32 %v588, %v503
      %v597 = vmul.f32 %v589, %v503
      %v598 = vmul.f32 %v590, %v503
      %v599 = vmul.f32 %v591, %v503
      %v600 = vmul.f32 %v592, %v503
      %v601 = vadd.f32 %v593, %v517
      %v602 = vadd.f32 %v594, %v517
      %v603 = vadd.f32 %v595, %v517
      %v604 = vadd.f32 %v596, %v517
      %v605 = vadd.f32 %v597, %v517
      %v606 = vadd.f32 %v598, %v517
      %v607 = vadd.f32 %v599, %v517
      %v608 = vadd.f32 %v600, %v517
      %v609 = vmax.f32 %v601, 0.0
      %v610 = vmax.f32 %v602, 0.0
      %v611 = vmax.f32 %v603, 0.0
      %v612 = vmax.f32 %v604, 0.0
      %v613 = vmax.f32 %v605, 0.0
      %v614 = vmax.f32 %v606, 0.0
      %v615 = vmax.f32 %v607, 0.0
      %v616 = vmax.f32 %v608, 0.0
      %s617 = scalar_lea.vmem [#allocation2], 320
      %618 = vst.msk [vmem:[%s617 + $0x1] sm:$0xff] %vm409, %v609
      %619 = vst.msk [vmem:[%s617 + $0x11] sm:$0xff] %vm409, %v610
      %620 = vst.msk [vmem:[%s617 + $0x21] sm:$0xff] %vm409, %v611
      %621 = vst.msk [vmem:[%s617 + $0x31] sm:$0xff] %vm409, %v612
      %622 = vst.msk [vmem:[%s617 + $0x41] sm:$0xff] %vm409, %v613
      %623 = vst.msk [vmem:[%s617 + $0x51] sm:$0xff] %vm409, %v614
      %624 = vst.msk [vmem:[%s617 + $0x61] sm:$0xff] %vm409, %v615
      %625 = vst.msk [vmem:[%s617 + $0x71] sm:$0xff] %vm409, %v616
      %v626 = vld [vmem:[%s395] sm:$0xff]
      %v627 = vld [vmem:[%s395 + $0x8] sm:$0xff]
      %v628 = vld [vmem:[%s395 + $0x10] sm:$0xff]
      %v629 = vld [vmem:[%s395 + $0x18] sm:$0xff]
      %v630 = vld [vmem:[%s395 + $0x20] sm:$0xff]
      %v631 = vld [vmem:[%s395 + $0x28] sm:$0xff]
      %v632 = vld [vmem:[%s395 + $0x30] sm:$0xff]
      %v633 = vld [vmem:[%s395 + $0x38] sm:$0xff]
      %v634 = vmul.f32 %v626, %v503
      %v635 = vmul.f32 %v627, %v503
      %v636 = vmul.f32 %v628, %v503
      %v637 = vmul.f32 %v629, %v503
      %v638 = vmul.f32 %v630, %v503
      %v639 = vmul.f32 %v631, %v503
      %v640 = vmul.f32 %v632, %v503
      %v641 = vmul.f32 %v633, %v503
      %v642 = vadd.f32 %v634, %v517
      %v643 = vadd.f32 %v635, %v517
      %v644 = vadd.f32 %v636, %v517
      %v645 = vadd.f32 %v637, %v517
      %v646 = vadd.f32 %v638, %v517
      %v647 = vadd.f32 %v639, %v517
      %v648 = vadd.f32 %v640, %v517
      %v649 = vadd.f32 %v641, %v517
      %v650 = vmax.f32 %v642, 0.0
      %v651 = vmax.f32 %v643, 0.0
      %v652 = vmax.f32 %v644, 0.0
      %v653 = vmax.f32 %v645, 0.0
      %v654 = vmax.f32 %v646, 0.0
      %v655 = vmax.f32 %v647, 0.0
      %v656 = vmax.f32 %v648, 0.0
      %v657 = vmax.f32 %v649, 0.0
      %s658 = scalar_lea.vmem [#allocation2], 480
      %659 = vst.msk [vmem:[%s658] sm:$0xff] %vm409, %v650
      %660 = vst.msk [vmem:[%s658 + $0x10] sm:$0xff] %vm409, %v651
      %661 = vst.msk [vmem:[%s658 + $0x20] sm:$0xff] %vm409, %v652
      %662 = vst.msk [vmem:[%s658 + $0x30] sm:$0xff] %vm409, %v653
      %663 = vst.msk [vmem:[%s658 + $0x40] sm:$0xff] %vm409, %v654
      %664 = vst.msk [vmem:[%s658 + $0x50] sm:$0xff] %vm409, %v655
      %665 = vst.msk [vmem:[%s658 + $0x60] sm:$0xff] %vm409, %v656
      %666 = vst.msk [vmem:[%s658 + $0x70] sm:$0xff] %vm409, %v657
      %v667 = vld [vmem:[#allocation2] sm:$0xff]
      %v668 = vld [vmem:[#allocation2 + $0x10] sm:$0xff]
      %v669 = vld [vmem:[#allocation2 + $0x20] sm:$0xff]
      %v670 = vld [vmem:[#allocation2 + $0x30] sm:$0xff]
      %v671 = vld [vmem:[#allocation2 + $0x40] sm:$0xff]
      %v672 = vld [vmem:[#allocation2 + $0x50] sm:$0xff]
      %v673 = vld [vmem:[#allocation2 + $0x60] sm:$0xff]
      %v674 = vld [vmem:[#allocation2 + $0x70] sm:$0xff]
      %v675 = vpack.c.bf16 %v668, %v667
      %v676 = vpack.c.bf16 %v670, %v669
      %v677 = vpack.c.bf16 %v672, %v671
      %v678 = vpack.c.bf16 %v674, %v673
      %v683 = vunpack.c.l.b16 %v675
      %v684 = vunpack.c.h.b16 %v675
      %v685 = vunpack.c.l.b16 %v676
      %v686 = vunpack.c.h.b16 %v676
      %v687 = vunpack.c.l.b16 %v677
      %v688 = vunpack.c.h.b16 %v677
      %v689 = vunpack.c.l.b16 %v678
      %v690 = vunpack.c.h.b16 %v678
      %v691 = vpack.c.b16 %v683, %v683
      %v692 = vpack.c.b16 %v684, %v684
      %v693 = vpack.c.b16 %v685, %v685
      %v694 = vpack.c.b16 %v686, %v686
      %v695 = vpack.c.b16 %v687, %v687
      %v696 = vpack.c.b16 %v688, %v688
      %v697 = vpack.c.b16 %v689, %v689
      %v698 = vpack.c.b16 %v690, %v690
      %vm707 = vcmask 125952
      %708 = vst.msk [vmem:[#allocation3] sm:$0xf] %vm707, %v691
      %709 = vst.msk [vmem:[#allocation3 + $0x8] sm:$0xf] %vm707, %v692
      %710 = vst.msk [vmem:[#allocation3 + $0x10] sm:$0xf] %vm707, %v693
      %711 = vst.msk [vmem:[#allocation3 + $0x18] sm:$0xf] %vm707, %v694
      %712 = vst.msk [vmem:[#allocation3 + $0x20] sm:$0xf] %vm707, %v695
      %713 = vst.msk [vmem:[#allocation3 + $0x28] sm:$0xf] %vm707, %v696
      %714 = vst.msk [vmem:[#allocation3 + $0x30] sm:$0xf] %vm707, %v697
      %715 = vst.msk [vmem:[#allocation3 + $0x38] sm:$0xf] %vm707, %v698
      %s716 = scalar_lea.vmem [#allocation2], 160
      %v717 = vld [vmem:[%s716] sm:$0xff]
      %v718 = vld [vmem:[%s716 + $0x10] sm:$0xff]
      %v719 = vld [vmem:[%s716 + $0x20] sm:$0xff]
      %v720 = vld [vmem:[%s716 + $0x30] sm:$0xff]
      %v721 = vld [vmem:[%s716 + $0x40] sm:$0xff]
      %v722 = vld [vmem:[%s716 + $0x50] sm:$0xff]
      %v723 = vld [vmem:[%s716 + $0x60] sm:$0xff]
      %v724 = vld [vmem:[%s716 + $0x70] sm:$0xff]
      %v725 = vpack.c.bf16 %v718, %v717
      %v726 = vpack.c.bf16 %v720, %v719
      %v727 = vpack.c.bf16 %v722, %v721
      %v728 = vpack.c.bf16 %v724, %v723
      %v733 = vunpack.c.l.b16 %v725
      %v734 = vunpack.c.h.b16 %v725
      %v735 = vunpack.c.l.b16 %v726
      %v736 = vunpack.c.h.b16 %v726
      %v737 = vunpack.c.l.b16 %v727
      %v738 = vunpack.c.h.b16 %v727
      %v739 = vunpack.c.l.b16 %v728
      %v740 = vunpack.c.h.b16 %v728
      %v741 = vpack.c.b16 %v733, %v733
      %v742 = vpack.c.b16 %v734, %v734
      %v743 = vpack.c.b16 %v735, %v735
      %v744 = vpack.c.b16 %v736, %v736
      %v745 = vpack.c.b16 %v737, %v737
      %v746 = vpack.c.b16 %v738, %v738
      %v747 = vpack.c.b16 %v739, %v739
      %v748 = vpack.c.b16 %v740, %v740
      %749 = vrot.lane.b32.xlu0 %v741, 16
      %v750 = vpop.permute.xlu0 %749
      %751 = vrot.lane.b32.xlu0 %v742, 16
      %v752 = vpop.permute.xlu0 %751
      %753 = vrot.lane.b32.xlu0 %v743, 16
      %v754 = vpop.permute.xlu0 %753
      %755 = vrot.lane.b32.xlu0 %v744, 16
      %v756 = vpop.permute.xlu0 %755
      %757 = vrot.lane.b32.xlu0 %v745, 16
      %v758 = vpop.permute.xlu0 %757
      %759 = vrot.lane.b32.xlu0 %v746, 16
      %v760 = vpop.permute.xlu0 %759
      %761 = vrot.lane.b32.xlu0 %v747, 16
      %v762 = vpop.permute.xlu0 %761
      %763 = vrot.lane.b32.xlu0 %v748, 16
      %v764 = vpop.permute.xlu0 %763
      %vm773 = vcmask 257152
      %774 = vst.msk [vmem:[#allocation3] sm:$0xf] %vm773, %v750
      %775 = vst.msk [vmem:[#allocation3 + $0x8] sm:$0xf] %vm773, %v752
      %776 = vst.msk [vmem:[#allocation3 + $0x10] sm:$0xf] %vm773, %v754
      %777 = vst.msk [vmem:[#allocation3 + $0x18] sm:$0xf] %vm773, %v756
      %778 = vst.msk [vmem:[#allocation3 + $0x20] sm:$0xf] %vm773, %v758
      %779 = vst.msk [vmem:[#allocation3 + $0x28] sm:$0xf] %vm773, %v760
      %780 = vst.msk [vmem:[#allocation3 + $0x30] sm:$0xf] %vm773, %v762
      %781 = vst.msk [vmem:[#allocation3 + $0x38] sm:$0xf] %vm773, %v764
      %v782 = vld [vmem:[#allocation2 + $0x1] sm:$0xff]
      %v783 = vld [vmem:[#allocation2 + $0x11] sm:$0xff]
      %v784 = vld [vmem:[#allocation2 + $0x21] sm:$0xff]
      %v785 = vld [vmem:[#allocation2 + $0x31] sm:$0xff]
      %v786 = vld [vmem:[#allocation2 + $0x41] sm:$0xff]
      %v787 = vld [vmem:[#allocation2 + $0x51] sm:$0xff]
      %v788 = vld [vmem:[#allocation2 + $0x61] sm:$0xff]
      %v789 = vld [vmem:[#allocation2 + $0x71] sm:$0xff]
      %v790 = vpack.c.bf16 %v783, %v782
      %v791 = vpack.c.bf16 %v785, %v784
      %v792 = vpack.c.bf16 %v787, %v786
      %v793 = vpack.c.bf16 %v789, %v788
      %v798 = vunpack.c.l.b16 %v790
      %v799 = vunpack.c.h.b16 %v790
      %v800 = vunpack.c.l.b16 %v791
      %v801 = vunpack.c.h.b16 %v791
      %v802 = vunpack.c.l.b16 %v792
      %v803 = vunpack.c.h.b16 %v792
      %v804 = vunpack.c.l.b16 %v793
      %v805 = vunpack.c.h.b16 %v793
      %v806 = vpack.c.b16 %v798, %v798
      %v807 = vpack.c.b16 %v799, %v799
      %v808 = vpack.c.b16 %v800, %v800
      %v809 = vpack.c.b16 %v801, %v801
      %v810 = vpack.c.b16 %v802, %v802
      %v811 = vpack.c.b16 %v803, %v803
      %v812 = vpack.c.b16 %v804, %v804
      %v813 = vpack.c.b16 %v805, %v805
      %814 = vrot.lane.b32.xlu0 %v806, 32
      %v815 = vpop.permute.xlu0 %814
      %816 = vrot.lane.b32.xlu0 %v807, 32
      %v817 = vpop.permute.xlu0 %816
      %818 = vrot.lane.b32.xlu0 %v808, 32
      %v819 = vpop.permute.xlu0 %818
      %820 = vrot.lane.b32.xlu0 %v809, 32
      %v821 = vpop.permute.xlu0 %820
      %822 = vrot.lane.b32.xlu0 %v810, 32
      %v823 = vpop.permute.xlu0 %822
      %824 = vrot.lane.b32.xlu0 %v811, 32
      %v825 = vpop.permute.xlu0 %824
      %826 = vrot.lane.b32.xlu0 %v812, 32
      %v827 = vpop.permute.xlu0 %826
      %828 = vrot.lane.b32.xlu0 %v813, 32
      %v829 = vpop.permute.xlu0 %828
      %vm838 = vcmask 388352
      %839 = vst.msk [vmem:[#allocation3] sm:$0xf] %vm838, %v815
      %840 = vst.msk [vmem:[#allocation3 + $0x8] sm:$0xf] %vm838, %v817
      %841 = vst.msk [vmem:[#allocation3 + $0x10] sm:$0xf] %vm838, %v819
      %842 = vst.msk [vmem:[#allocation3 + $0x18] sm:$0xf] %vm838, %v821
      %843 = vst.msk [vmem:[#allocation3 + $0x20] sm:$0xf] %vm838, %v823
      %844 = vst.msk [vmem:[#allocation3 + $0x28] sm:$0xf] %vm838, %v825
      %845 = vst.msk [vmem:[#allocation3 + $0x30] sm:$0xf] %vm838, %v827
      %846 = vst.msk [vmem:[#allocation3 + $0x38] sm:$0xf] %vm838, %v829
      %v847 = vld [vmem:[%s617] sm:$0xff]
      %v848 = vld [vmem:[%s617 + $0x10] sm:$0xff]
      %v849 = vld [vmem:[%s617 + $0x20] sm:$0xff]
      %v850 = vld [vmem:[%s617 + $0x30] sm:$0xff]
      %v851 = vld [vmem:[%s617 + $0x40] sm:$0xff]
      %v852 = vld [vmem:[%s617 + $0x50] sm:$0xff]
      %v853 = vld [vmem:[%s617 + $0x60] sm:$0xff]
      %v854 = vld [vmem:[%s617 + $0x70] sm:$0xff]
      %v855 = vpack.c.bf16 %v848, %v847
      %v856 = vpack.c.bf16 %v850, %v849
      %v857 = vpack.c.bf16 %v852, %v851
      %v858 = vpack.c.bf16 %v854, %v853
      %v863 = vunpack.c.l.b16 %v855
      %v864 = vunpack.c.h.b16 %v855
      %v865 = vunpack.c.l.b16 %v856
      %v866 = vunpack.c.h.b16 %v856
      %v867 = vunpack.c.l.b16 %v857
      %v868 = vunpack.c.h.b16 %v857
      %v869 = vunpack.c.l.b16 %v858
      %v870 = vunpack.c.h.b16 %v858
      %v871 = vpack.c.b16 %v863, %v863
      %v872 = vpack.c.b16 %v864, %v864
      %v873 = vpack.c.b16 %v865, %v865
      %v874 = vpack.c.b16 %v866, %v866
      %v875 = vpack.c.b16 %v867, %v867
      %v876 = vpack.c.b16 %v868, %v868
      %v877 = vpack.c.b16 %v869, %v869
      %v878 = vpack.c.b16 %v870, %v870
      %879 = vrot.lane.b32.xlu0 %v871, 48
      %v880 = vpop.permute.xlu0 %879
      %881 = vrot.lane.b32.xlu0 %v872, 48
      %v882 = vpop.permute.xlu0 %881
      %883 = vrot.lane.b32.xlu0 %v873, 48
      %v884 = vpop.permute.xlu0 %883
      %885 = vrot.lane.b32.xlu0 %v874, 48
      %v886 = vpop.permute.xlu0 %885
      %887 = vrot.lane.b32.xlu0 %v875, 48
      %v888 = vpop.permute.xlu0 %887
      %889 = vrot.lane.b32.xlu0 %v876, 48
      %v890 = vpop.permute.xlu0 %889
      %891 = vrot.lane.b32.xlu0 %v877, 48
      %v892 = vpop.permute.xlu0 %891
      %893 = vrot.lane.b32.xlu0 %v878, 48
      %v894 = vpop.permute.xlu0 %893
      %vm903 = vcmask 519552
      %904 = vst.msk [vmem:[#allocation3] sm:$0xf] %vm903, %v880
      %905 = vst.msk [vmem:[#allocation3 + $0x8] sm:$0xf] %vm903, %v882
      %906 = vst.msk [vmem:[#allocation3 + $0x10] sm:$0xf] %vm903, %v884
      %907 = vst.msk [vmem:[#allocation3 + $0x18] sm:$0xf] %vm903, %v886
      %908 = vst.msk [vmem:[#allocation3 + $0x20] sm:$0xf] %vm903, %v888
      %909 = vst.msk [vmem:[#allocation3 + $0x28] sm:$0xf] %vm903, %v890
      %910 = vst.msk [vmem:[#allocation3 + $0x30] sm:$0xf] %vm903, %v892
      %911 = vst.msk [vmem:[#allocation3 + $0x38] sm:$0xf] %vm903, %v894
      %v912 = vld [vmem:[%s658] sm:$0xff]
      %v913 = vld [vmem:[%s658 + $0x10] sm:$0xff]
      %v914 = vld [vmem:[%s658 + $0x20] sm:$0xff]
      %v915 = vld [vmem:[%s658 + $0x30] sm:$0xff]
      %v916 = vld [vmem:[%s658 + $0x40] sm:$0xff]
      %v917 = vld [vmem:[%s658 + $0x50] sm:$0xff]
      %v918 = vld [vmem:[%s658 + $0x60] sm:$0xff]
      %v919 = vld [vmem:[%s658 + $0x70] sm:$0xff]
      %v920 = vpack.c.bf16 %v913, %v912
      %v921 = vpack.c.bf16 %v915, %v914
      %v922 = vpack.c.bf16 %v917, %v916
      %v923 = vpack.c.bf16 %v919, %v918
      %v928 = vunpack.c.l.b16 %v920
      %v929 = vunpack.c.h.b16 %v920
      %v930 = vunpack.c.l.b16 %v921
      %v931 = vunpack.c.h.b16 %v921
      %v932 = vunpack.c.l.b16 %v922
      %v933 = vunpack.c.h.b16 %v922
      %v934 = vunpack.c.l.b16 %v923
      %v935 = vunpack.c.h.b16 %v923
      %v936 = vpack.c.b16 %v928, %v928
      %v937 = vpack.c.b16 %v929, %v929
      %v938 = vpack.c.b16 %v930, %v930
      %v939 = vpack.c.b16 %v931, %v931
      %v940 = vpack.c.b16 %v932, %v932
      %v941 = vpack.c.b16 %v933, %v933
      %v942 = vpack.c.b16 %v934, %v934
      %v943 = vpack.c.b16 %v935, %v935
      %944 = vrot.lane.b32.xlu0 %v936, 64
      %v945 = vpop.permute.xlu0 %944
      %946 = vrot.lane.b32.xlu0 %v937, 64
      %v947 = vpop.permute.xlu0 %946
      %948 = vrot.lane.b32.xlu0 %v938, 64
      %v949 = vpop.permute.xlu0 %948
      %950 = vrot.lane.b32.xlu0 %v939, 64
      %v951 = vpop.permute.xlu0 %950
      %952 = vrot.lane.b32.xlu0 %v940, 64
      %v953 = vpop.permute.xlu0 %952
      %954 = vrot.lane.b32.xlu0 %v941, 64
      %v955 = vpop.permute.xlu0 %954
      %956 = vrot.lane.b32.xlu0 %v942, 64
      %v957 = vpop.permute.xlu0 %956
      %958 = vrot.lane.b32.xlu0 %v943, 64
      %v959 = vpop.permute.xlu0 %958
      %vm968 = vcmask 650752
      %969 = vst.msk [vmem:[#allocation3] sm:$0xf] %vm968, %v945
      %970 = vst.msk [vmem:[#allocation3 + $0x8] sm:$0xf] %vm968, %v947
      %971 = vst.msk [vmem:[#allocation3 + $0x10] sm:$0xf] %vm968, %v949
      %972 = vst.msk [vmem:[#allocation3 + $0x18] sm:$0xf] %vm968, %v951
      %973 = vst.msk [vmem:[#allocation3 + $0x20] sm:$0xf] %vm968, %v953
      %974 = vst.msk [vmem:[#allocation3 + $0x28] sm:$0xf] %vm968, %v955
      %975 = vst.msk [vmem:[#allocation3 + $0x30] sm:$0xf] %vm968, %v957
      %976 = vst.msk [vmem:[#allocation3 + $0x38] sm:$0xf] %vm968, %v959
      %v977 = vld [vmem:[%s617 + $0x1] sm:$0xff]
      %v978 = vld [vmem:[%s617 + $0x11] sm:$0xff]
      %v979 = vld [vmem:[%s617 + $0x21] sm:$0xff]
      %v980 = vld [vmem:[%s617 + $0x31] sm:$0xff]
      %v981 = vld [vmem:[%s617 + $0x41] sm:$0xff]
      %v982 = vld [vmem:[%s617 + $0x51] sm:$0xff]
      %v983 = vld [vmem:[%s617 + $0x61] sm:$0xff]
      %v984 = vld [vmem:[%s617 + $0x71] sm:$0xff]
      %v985 = vpack.c.bf16 %v978, %v977
      %v986 = vpack.c.bf16 %v980, %v979
      %v987 = vpack.c.bf16 %v982, %v981
      %v988 = vpack.c.bf16 %v984, %v983
      %v993 = vunpack.c.l.b16 %v985
      %v994 = vunpack.c.h.b16 %v985
      %v995 = vunpack.c.l.b16 %v986
      %v996 = vunpack.c.h.b16 %v986
      %v997 = vunpack.c.l.b16 %v987
      %v998 = vunpack.c.h.b16 %v987
      %v999 = vunpack.c.l.b16 %v988
      %v1000 = vunpack.c.h.b16 %v988
      %v1001 = vpack.c.b16 %v993, %v993
      %v1002 = vpack.c.b16 %v994, %v994
      %v1003 = vpack.c.b16 %v995, %v995
      %v1004 = vpack.c.b16 %v996, %v996
      %v1005 = vpack.c.b16 %v997, %v997
      %v1006 = vpack.c.b16 %v998, %v998
      %v1007 = vpack.c.b16 %v999, %v999
      %v1008 = vpack.c.b16 %v1000, %v1000
      %1009 = vrot.lane.b32.xlu0 %v1001, 80
      %v1010 = vpop.permute.xlu0 %1009
      %1011 = vrot.lane.b32.xlu0 %v1002, 80
      %v1012 = vpop.permute.xlu0 %1011
      %1013 = vrot.lane.b32.xlu0 %v1003, 80
      %v1014 = vpop.permute.xlu0 %1013
      %1015 = vrot.lane.b32.xlu0 %v1004, 80
      %v1016 = vpop.permute.xlu0 %1015
      %1017 = vrot.lane.b32.xlu0 %v1005, 80
      %v1018 = vpop.permute.xlu0 %1017
      %1019 = vrot.lane.b32.xlu0 %v1006, 80
      %v1020 = vpop.permute.xlu0 %1019
      %1021 = vrot.lane.b32.xlu0 %v1007, 80
      %v1022 = vpop.permute.xlu0 %1021
      %1023 = vrot.lane.b32.xlu0 %v1008, 80
      %v1024 = vpop.permute.xlu0 %1023
      %vm1033 = vcmask 781952
      %1034 = vst.msk [vmem:[#allocation3] sm:$0xf] %vm1033, %v1010
      %1035 = vst.msk [vmem:[#allocation3 + $0x8] sm:$0xf] %vm1033, %v1012
      %1036 = vst.msk [vmem:[#allocation3 + $0x10] sm:$0xf] %vm1033, %v1014
      %1037 = vst.msk [vmem:[#allocation3 + $0x18] sm:$0xf] %vm1033, %v1016
      %1038 = vst.msk [vmem:[#allocation3 + $0x20] sm:$0xf] %vm1033, %v1018
      %1039 = vst.msk [vmem:[#allocation3 + $0x28] sm:$0xf] %vm1033, %v1020
      %1040 = vst.msk [vmem:[#allocation3 + $0x30] sm:$0xf] %vm1033, %v1022
      %1041 = vst.msk [vmem:[#allocation3 + $0x38] sm:$0xf] %vm1033, %v1024
      %v1042 = vld [vmem:[%s535] sm:$0xff]
      %v1043 = vld [vmem:[%s535 + $0x10] sm:$0xff]
      %v1044 = vld [vmem:[%s535 + $0x20] sm:$0xff]
      %v1045 = vld [vmem:[%s535 + $0x30] sm:$0xff]
      %v1046 = vld [vmem:[%s535 + $0x40] sm:$0xff]
      %v1047 = vld [vmem:[%s535 + $0x50] sm:$0xff]
      %v1048 = vld [vmem:[%s535 + $0x60] sm:$0xff]
      %v1049 = vld [vmem:[%s535 + $0x70] sm:$0xff]
      %v1050 = vpack.c.bf16 %v1043, %v1042
      %v1051 = vpack.c.bf16 %v1045, %v1044
      %v1052 = vpack.c.bf16 %v1047, %v1046
      %v1053 = vpack.c.bf16 %v1049, %v1048
      %v1058 = vunpack.c.l.b16 %v1050
      %v1059 = vunpack.c.h.b16 %v1050
      %v1060 = vunpack.c.l.b16 %v1051
      %v1061 = vunpack.c.h.b16 %v1051
      %v1062 = vunpack.c.l.b16 %v1052
      %v1063 = vunpack.c.h.b16 %v1052
      %v1064 = vunpack.c.l.b16 %v1053
      %v1065 = vunpack.c.h.b16 %v1053
      %v1066 = vpack.c.b16 %v1058, %v1058
      %v1067 = vpack.c.b16 %v1059, %v1059
      %v1068 = vpack.c.b16 %v1060, %v1060
      %v1069 = vpack.c.b16 %v1061, %v1061
      %v1070 = vpack.c.b16 %v1062, %v1062
      %v1071 = vpack.c.b16 %v1063, %v1063
      %v1072 = vpack.c.b16 %v1064, %v1064
      %v1073 = vpack.c.b16 %v1065, %v1065
      %1074 = vrot.lane.b32.xlu0 %v1066, 96
      %v1075 = vpop.permute.xlu0 %1074
      %1076 = vrot.lane.b32.xlu0 %v1067, 96
      %v1077 = vpop.permute.xlu0 %1076
      %1078 = vrot.lane.b32.xlu0 %v1068, 96
      %v1079 = vpop.permute.xlu0 %1078
      %1080 = vrot.lane.b32.xlu0 %v1069, 96
      %v1081 = vpop.permute.xlu0 %1080
      %1082 = vrot.lane.b32.xlu0 %v1070, 96
      %v1083 = vpop.permute.xlu0 %1082
      %1084 = vrot.lane.b32.xlu0 %v1071, 96
      %v1085 = vpop.permute.xlu0 %1084
      %1086 = vrot.lane.b32.xlu0 %v1072, 96
      %v1087 = vpop.permute.xlu0 %1086
      %1088 = vrot.lane.b32.xlu0 %v1073, 96
      %v1089 = vpop.permute.xlu0 %1088
      %vm1098 = vcmask 913152
      %1099 = vst.msk [vmem:[#allocation3] sm:$0xf] %vm1098, %v1075
      %1100 = vst.msk [vmem:[#allocation3 + $0x8] sm:$0xf] %vm1098, %v1077
      %1101 = vst.msk [vmem:[#allocation3 + $0x10] sm:$0xf] %vm1098, %v1079
      %1102 = vst.msk [vmem:[#allocation3 + $0x18] sm:$0xf] %vm1098, %v1081
      %1103 = vst.msk [vmem:[#allocation3 + $0x20] sm:$0xf] %vm1098, %v1083
      %1104 = vst.msk [vmem:[#allocation3 + $0x28] sm:$0xf] %vm1098, %v1085
      %1105 = vst.msk [vmem:[#allocation3 + $0x30] sm:$0xf] %vm1098, %v1087
      %1106 = vst.msk [vmem:[#allocation3 + $0x38] sm:$0xf] %vm1098, %v1089
      %v1107 = vld [vmem:[%s576] sm:$0xff]
      %v1108 = vld [vmem:[%s576 + $0x10] sm:$0xff]
      %v1109 = vld [vmem:[%s576 + $0x20] sm:$0xff]
      %v1110 = vld [vmem:[%s576 + $0x30] sm:$0xff]
      %v1111 = vld [vmem:[%s576 + $0x40] sm:$0xff]
      %v1112 = vld [vmem:[%s576 + $0x50] sm:$0xff]
      %v1113 = vld [vmem:[%s576 + $0x60] sm:$0xff]
      %v1114 = vld [vmem:[%s576 + $0x70] sm:$0xff]
      %v1115 = vpack.c.bf16 %v1108, %v1107
      %v1116 = vpack.c.bf16 %v1110, %v1109
      %v1117 = vpack.c.bf16 %v1112, %v1111
      %v1118 = vpack.c.bf16 %v1114, %v1113
      %v1123 = vunpack.c.l.b16 %v1115
      %v1124 = vunpack.c.h.b16 %v1115
      %v1125 = vunpack.c.l.b16 %v1116
      %v1126 = vunpack.c.h.b16 %v1116
      %v1127 = vunpack.c.l.b16 %v1117
      %v1128 = vunpack.c.h.b16 %v1117
      %v1129 = vunpack.c.l.b16 %v1118
      %v1130 = vunpack.c.h.b16 %v1118
      %v1131 = vpack.c.b16 %v1123, %v1123
      %v1132 = vpack.c.b16 %v1124, %v1124
      %v1133 = vpack.c.b16 %v1125, %v1125
      %v1134 = vpack.c.b16 %v1126, %v1126
      %v1135 = vpack.c.b16 %v1127, %v1127
      %v1136 = vpack.c.b16 %v1128, %v1128
      %v1137 = vpack.c.b16 %v1129, %v1129
      %v1138 = vpack.c.b16 %v1130, %v1130
      %1139 = vrot.lane.b32.xlu0 %v1131, 112
      %v1140 = vpop.permute.xlu0 %1139
      %1141 = vrot.lane.b32.xlu0 %v1132, 112
      %v1142 = vpop.permute.xlu0 %1141
      %1143 = vrot.lane.b32.xlu0 %v1133, 112
      %v1144 = vpop.permute.xlu0 %1143
      %1145 = vrot.lane.b32.xlu0 %v1134, 112
      %v1146 = vpop.permute.xlu0 %1145
      %1147 = vrot.lane.b32.xlu0 %v1135, 112
      %v1148 = vpop.permute.xlu0 %1147
      %1149 = vrot.lane.b32.xlu0 %v1136, 112
      %v1150 = vpop.permute.xlu0 %1149
      %1151 = vrot.lane.b32.xlu0 %v1137, 112
      %v1152 = vpop.permute.xlu0 %1151
      %1153 = vrot.lane.b32.xlu0 %v1138, 112
      %v1154 = vpop.permute.xlu0 %1153
      %vm1163 = vcmask 1044352
      %1164 = vst.msk [vmem:[#allocation3] sm:$0xf] %vm1163, %v1140
      %1165 = vst.msk [vmem:[#allocation3 + $0x8] sm:$0xf] %vm1163, %v1142
      %1166 = vst.msk [vmem:[#allocation3 + $0x10] sm:$0xf] %vm1163, %v1144
      %1167 = vst.msk [vmem:[#allocation3 + $0x18] sm:$0xf] %vm1163, %v1146
      %1168 = vst.msk [vmem:[#allocation3 + $0x20] sm:$0xf] %vm1163, %v1148
      %1169 = vst.msk [vmem:[#allocation3 + $0x28] sm:$0xf] %vm1163, %v1150
      %1170 = vst.msk [vmem:[#allocation3 + $0x30] sm:$0xf] %vm1163, %v1152
      %1171 = vst.msk [vmem:[#allocation3 + $0x38] sm:$0xf] %vm1163, %v1154
      %v1172 = vld [vmem:[%s535 + $0x1] sm:$0xff]
      %v1173 = vld [vmem:[%s535 + $0x11] sm:$0xff]
      %v1174 = vld [vmem:[%s535 + $0x21] sm:$0xff]
      %v1175 = vld [vmem:[%s535 + $0x31] sm:$0xff]
      %v1176 = vld [vmem:[%s535 + $0x41] sm:$0xff]
      %v1177 = vld [vmem:[%s535 + $0x51] sm:$0xff]
      %v1178 = vld [vmem:[%s535 + $0x61] sm:$0xff]
      %v1179 = vld [vmem:[%s535 + $0x71] sm:$0xff]
      %v1180 = vpack.c.bf16 %v1173, %v1172
      %v1181 = vpack.c.bf16 %v1175, %v1174
      %v1182 = vpack.c.bf16 %v1177, %v1176
      %v1183 = vpack.c.bf16 %v1179, %v1178
      %v1188 = vunpack.c.l.b16 %v1180
      %v1189 = vunpack.c.h.b16 %v1180
      %v1190 = vunpack.c.l.b16 %v1181
      %v1191 = vunpack.c.h.b16 %v1181
      %v1192 = vunpack.c.l.b16 %v1182
      %v1193 = vunpack.c.h.b16 %v1182
      %v1194 = vunpack.c.l.b16 %v1183
      %v1195 = vunpack.c.h.b16 %v1183
      %v1196 = vpack.c.b16 %v1188, %v1188
      %v1197 = vpack.c.b16 %v1189, %v1189
      %v1198 = vpack.c.b16 %v1190, %v1190
      %v1199 = vpack.c.b16 %v1191, %v1191
      %v1200 = vpack.c.b16 %v1192, %v1192
      %v1201 = vpack.c.b16 %v1193, %v1193
      %v1202 = vpack.c.b16 %v1194, %v1194
      %v1203 = vpack.c.b16 %v1195, %v1195
      %1212 = vst.msk [vmem:[#allocation3 + $0x4] sm:$0xf] %vm707, %v1196
      %1213 = vst.msk [vmem:[#allocation3 + $0xc] sm:$0xf] %vm707, %v1197
      %1214 = vst.msk [vmem:[#allocation3 + $0x14] sm:$0xf] %vm707, %v1198
      %1215 = vst.msk [vmem:[#allocation3 + $0x1c] sm:$0xf] %vm707, %v1199
      %1216 = vst.msk [vmem:[#allocation3 + $0x24] sm:$0xf] %vm707, %v1200
      %1217 = vst.msk [vmem:[#allocation3 + $0x2c] sm:$0xf] %vm707, %v1201
      %1218 = vst.msk [vmem:[#allocation3 + $0x34] sm:$0xf] %vm707, %v1202
      %1219 = vst.msk [vmem:[#allocation3 + $0x3c] sm:$0xf] %vm707, %v1203
      %v1220 = vld [vmem:[#allocation3] sm:$0xff]
      %v1221 = vld [vmem:[#allocation3 + $0x8] sm:$0xff]
      %v1222 = vld [vmem:[#allocation3 + $0x10] sm:$0xff]
      %v1223 = vld [vmem:[#allocation3 + $0x18] sm:$0xff]
      %v1224 = vld [vmem:[#allocation3 + $0x20] sm:$0xff]
      %v1225 = vld [vmem:[#allocation3 + $0x28] sm:$0xff]
      %v1226 = vld [vmem:[#allocation3 + $0x30] sm:$0xff]
      %v1227 = vld [vmem:[#allocation3 + $0x38] sm:$0xff]
      %v1228 = vld [vmem:[%s6] sm:$0xf]
      %v1229 = vld [vmem:[%s6 + $0x4] sm:$0xf]
      %v1230 = vld [vmem:[%s6 + $0x8] sm:$0xf]
      %v1231 = vld [vmem:[%s6 + $0xc] sm:$0xf]
      %v1232 = vld [vmem:[%s6 + $0x10] sm:$0xf]
      %v1233 = vld [vmem:[%s6 + $0x14] sm:$0xf]
      %v1234 = vld [vmem:[%s6 + $0x18] sm:$0xf]
      %v1235 = vld [vmem:[%s6 + $0x1c] sm:$0xf]
      %v1236 = vld [vmem:[%s6 + $0x20] sm:$0xf]
      %v1237 = vld [vmem:[%s6 + $0x24] sm:$0xf]
      %v1238 = vld [vmem:[%s6 + $0x28] sm:$0xf]
      %v1239 = vld [vmem:[%s6 + $0x2c] sm:$0xf]
      %v1240 = vld [vmem:[%s6 + $0x30] sm:$0xf]
      %v1241 = vld [vmem:[%s6 + $0x34] sm:$0xf]
      %v1242 = vld [vmem:[%s6 + $0x38] sm:$0xf]
      %v1243 = vld [vmem:[%s6 + $0x3c] sm:$0xf]
      %v1244 = vld [vmem:[%s6 + $0x40] sm:$0xf]
      %v1245 = vld [vmem:[%s6 + $0x44] sm:$0xf]
      %v1254 = vunpack.c.l.b16 %v1220
      %v1255 = vunpack.c.h.b16 %v1220
      %v1256 = vunpack.c.l.b16 %v1221
      %v1257 = vunpack.c.h.b16 %v1221
      %v1258 = vunpack.c.l.b16 %v1222
      %v1259 = vunpack.c.h.b16 %v1222
      %v1260 = vunpack.c.l.b16 %v1223
      %v1261 = vunpack.c.h.b16 %v1223
      %v1262 = vunpack.c.l.b16 %v1224
      %v1263 = vunpack.c.h.b16 %v1224
      %v1264 = vunpack.c.l.b16 %v1225
      %v1265 = vunpack.c.h.b16 %v1225
      %v1266 = vunpack.c.l.b16 %v1226
      %v1267 = vunpack.c.h.b16 %v1226
      %v1268 = vunpack.c.l.b16 %v1227
      %v1269 = vunpack.c.h.b16 %v1227
      %v1270 = vpack.c.b16 %v1256, %v1254
      %v1271 = vpack.c.b16 %v1257, %v1255
      %v1272 = vpack.c.b16 %v1260, %v1258
      %v1273 = vpack.c.b16 %v1261, %v1259
      %v1274 = vpack.c.b16 %v1264, %v1262
      %v1275 = vpack.c.b16 %v1265, %v1263
      %v1276 = vpack.c.b16 %v1268, %v1266
      %v1277 = vpack.c.b16 %v1269, %v1267
      %v1300 = vunpack.c.l.b16 %v1228
      %v1301 = vunpack.c.l.b16 %v1229
      %v1302 = vunpack.c.l.b16 %v1230
      %v1303 = vunpack.c.l.b16 %v1231
      %v1304 = vunpack.c.l.b16 %v1232
      %v1305 = vunpack.c.l.b16 %v1233
      %v1306 = vunpack.c.l.b16 %v1234
      %v1307 = vunpack.c.l.b16 %v1235
      %v1308 = vunpack.c.l.b16 %v1236
      %v1309 = vunpack.c.l.b16 %v1237
      %v1310 = vunpack.c.l.b16 %v1238
      %v1311 = vunpack.c.l.b16 %v1239
      %v1312 = vunpack.c.l.b16 %v1240
      %v1313 = vunpack.c.l.b16 %v1241
      %v1314 = vunpack.c.l.b16 %v1242
      %v1315 = vunpack.c.l.b16 %v1243
      %v1316 = vunpack.c.l.b16 %v1244
      %v1317 = vunpack.c.l.b16 %v1245
      %v1318 = vpack.c.b16 %v1301, %v1300
      %v1319 = vpack.c.b16 %v1303, %v1302
      %v1320 = vpack.c.b16 %v1305, %v1304
      %v1321 = vpack.c.b16 %v1307, %v1306
      %v1322 = vpack.c.b16 %v1309, %v1308
      %v1323 = vpack.c.b16 %v1311, %v1310
      %v1324 = vpack.c.b16 %v1313, %v1312
      %v1325 = vpack.c.b16 %v1315, %v1314
      %v1326 = vpack.c.b16 %v1317, %v1316
      %v1337 = vsel %vm409, %v1271, 0
      %v1340 = vsel %vm409, %v1273, 0
      %v1343 = vsel %vm409, %v1275, 0
      %v1346 = vsel %vm409, %v1277, 0
      %1348 = vmatprep.subr.bf16.mxu0 0
      %1349 = vmatpush1.bf16.msra.mxu0 %v1325
      %1350 = vmatprep.subr.bf16.mxu0 0
      %1351 = vmatpush1.bf16.msra.mxu0 %v1324
      %1352 = vmatprep.subr.bf16.mxu0 0
      %1353 = vmatpush1.bf16.msra.mxu0 %v1323
      %1354 = vmatprep.subr.bf16.mxu0 0
      %1355 = vmatpush1.bf16.msra.mxu0 %v1322
      %1356 = vmatprep.subr.bf16.mxu0 0
      %1357 = vmatpush1.bf16.msra.mxu0 %v1321
      %1358 = vmatprep.subr.bf16.mxu0 0
      %1359 = vmatpush1.bf16.msra.mxu0 %v1320
      %1360 = vmatprep.subr.bf16.mxu0 0
      %1361 = vmatpush1.bf16.msra.mxu0 %v1319
      %1362 = vmatprep.subr.bf16.mxu0 0
      %1363 = vmatpush1.bf16.msra.mxu0 %v1318
      %1364 = vmatprep.subr.bf16.mxu0 0
      %1365 = vmatpush2.bf16.msra.mxu0 0
      %1366 = vmatprep.subr.bf16.mxu0 0
      %1367 = vmatpush2.bf16.msra.mxu0 0
      %1368 = vmatprep.subr.bf16.mxu0 0
      %1369 = vmatpush2.bf16.msra.mxu0 0
      %1370 = vmatprep.subr.bf16.mxu0 0
      %1371 = vmatpush2.bf16.msra.mxu0 0
      %1372 = vmatprep.subr.bf16.mxu0 0
      %1373 = vmatpush2.bf16.msra.mxu0 0
      %1374 = vmatprep.subr.bf16.mxu0 0
      %1375 = vmatpush2.bf16.msra.mxu0 0
      %1376 = vmatprep.subr.bf16.mxu0 0
      %1377 = vmatpush2.bf16.msra.mxu0 0
      %1378 = vmatprep.subr.bf16.mxu0 0
      %1379 = vmatpush2.bf16.msra.mxu0 %v1326
      %1380 = vmatprep.mubr.bf16.mxu0 %v1337
      %1381 = vmatmul.mubr.bf16.gmra.mxu0 %v1270
      %v1382 = vpop.f32.mrf.mxu0
      %v1383 = vadd.f32 0.0, %v1382
      %v1384 = vpop.f32.mrf.mxu0
      %v1385 = vpop.f32.mrf.mxu0
      %v1386 = vadd.f32 0.0, %v1385
      %v1387 = vpop.f32.mrf.mxu0
      %1388 = vmatprep.mubr.bf16.mxu0 %v1340
      %1389 = vmatmul.mubr.bf16.gmra.mxu0 %v1272
      %v1390 = vpop.f32.mrf.mxu0
      %v1391 = vadd.f32 0.0, %v1390
      %v1392 = vpop.f32.mrf.mxu0
      %v1393 = vpop.f32.mrf.mxu0
      %v1394 = vadd.f32 0.0, %v1393
      %v1395 = vpop.f32.mrf.mxu0
      %1396 = vmatprep.mubr.bf16.mxu0 %v1343
      %1397 = vmatmul.mubr.bf16.gmra.mxu0 %v1274
      %v1398 = vpop.f32.mrf.mxu0
      %v1399 = vadd.f32 0.0, %v1398
      %v1400 = vpop.f32.mrf.mxu0
      %v1401 = vpop.f32.mrf.mxu0
      %v1402 = vadd.f32 0.0, %v1401
      %v1403 = vpop.f32.mrf.mxu0
      %1404 = vmatprep.mubr.bf16.mxu0 %v1346
      %1405 = vmatmul.mubr.bf16.gmra.mxu0 %v1276
      %v1406 = vpop.f32.mrf.mxu0
      %v1407 = vadd.f32 0.0, %v1406
      %v1408 = vpop.f32.mrf.mxu0
      %v1409 = vpop.f32.mrf.mxu0
      %v1410 = vadd.f32 0.0, %v1409
      %v1411 = vpop.f32.mrf.mxu0
      %1412 = vdwg.mxu0
      %v1413 = vpack.c.bf16 %v1383, %v1383
      %v1414 = vpack.c.bf16 %v1386, %v1386
      %v1415 = vpack.c.bf16 %v1391, %v1391
      %v1416 = vpack.c.bf16 %v1394, %v1394
      %v1417 = vpack.c.bf16 %v1399, %v1399
      %v1418 = vpack.c.bf16 %v1402, %v1402
      %v1419 = vpack.c.bf16 %v1407, %v1407
      %v1420 = vpack.c.bf16 %v1410, %v1410
      %vm1421 = vcmask 257024
      %1422 = vst.msk [vmem:[%s400] sm:$0xf] %vm1421, %v1413
      %1423 = vst.msk [vmem:[%s400 + $0x4] sm:$0xf] %vm1421, %v1414
      %1424 = vst.msk [vmem:[%s400 + $0x8] sm:$0xf] %vm1421, %v1415
      %1425 = vst.msk [vmem:[%s400 + $0xc] sm:$0xf] %vm1421, %v1416
      %1426 = vst.msk [vmem:[%s400 + $0x10] sm:$0xf] %vm1421, %v1417
      %1427 = vst.msk [vmem:[%s400 + $0x14] sm:$0xf] %vm1421, %v1418
      %1428 = vst.msk [vmem:[%s400 + $0x18] sm:$0xf] %vm1421, %v1419
      %1429 = vst.msk [vmem:[%s400 + $0x1c] sm:$0xf] %vm1421, %v1420
      %v1430 = vld [vmem:[#allocation3] sm:$0xf]
      %v1431 = vld [vmem:[#allocation3 + $0x8] sm:$0xf]
      %v1432 = vld [vmem:[#allocation3 + $0x10] sm:$0xf]
      %v1433 = vld [vmem:[#allocation3 + $0x18] sm:$0xf]
      %v1434 = vld [vmem:[#allocation3 + $0x20] sm:$0xf]
      %v1435 = vld [vmem:[#allocation3 + $0x28] sm:$0xf]
      %v1436 = vld [vmem:[#allocation3 + $0x30] sm:$0xf]
      %v1437 = vld [vmem:[#allocation3 + $0x38] sm:$0xf]
      %v1438 = vld [vmem:[%s7] sm:$0xf]
      %v1439 = vld [vmem:[%s7 + $0x4] sm:$0xf]
      %v1448 = vunpack.c.l.b16 %v1430
      %v1449 = vunpack.c.l.b16 %v1431
      %v1450 = vunpack.c.l.b16 %v1432
      %v1451 = vunpack.c.l.b16 %v1433
      %v1452 = vunpack.c.l.b16 %v1434
      %v1453 = vunpack.c.l.b16 %v1435
      %v1454 = vunpack.c.l.b16 %v1436
      %v1455 = vunpack.c.l.b16 %v1437
      %v1456 = vpack.c.b16 %v1449, %v1448
      %v1457 = vpack.c.b16 %v1451, %v1450
      %v1458 = vpack.c.b16 %v1453, %v1452
      %v1459 = vpack.c.b16 %v1455, %v1454
      %1460 = vrot.lane.b32.xlu0 %v1456, 64
      %v1461 = vpop.permute.xlu0 %1460
      %1462 = vrot.lane.b32.xlu0 %v1457, 64
      %v1463 = vpop.permute.xlu0 %1462
      %1464 = vrot.lane.b32.xlu0 %v1458, 64
      %v1465 = vpop.permute.xlu0 %1464
      %1466 = vrot.lane.b32.xlu0 %v1459, 64
      %v1467 = vpop.permute.xlu0 %1466
      %v1470 = vunpack.c.l.b16 %v1438
      %v1471 = vunpack.c.l.b16 %v1439
      %v1472 = vpack.c.b16 %v1471, %v1470
      %v1475 = vsel %vm409, %v1461, 0
      %v1478 = vsel %vm409, %v1463, 0
      %v1481 = vsel %vm409, %v1465, 0
      %v1484 = vsel %vm409, %v1467, 0
      %1486 = vmatprep.subr.bf16.mxu0 0
      %1487 = vmatpush1.bf16.msra.mxu0 0
      %1488 = vmatprep.subr.bf16.mxu0 0
      %1489 = vmatpush1.bf16.msra.mxu0 0
      %1490 = vmatprep.subr.bf16.mxu0 0
      %1491 = vmatpush1.bf16.msra.mxu0 0
      %1492 = vmatprep.subr.bf16.mxu0 0
      %1493 = vmatpush1.bf16.msra.mxu0 0
      %1494 = vmatprep.subr.bf16.mxu0 0
      %1495 = vmatpush1.bf16.msra.mxu0 0
      %1496 = vmatprep.subr.bf16.mxu0 0
      %1497 = vmatpush1.bf16.msra.mxu0 0
      %1498 = vmatprep.subr.bf16.mxu0 0
      %1499 = vmatpush1.bf16.msra.mxu0 0
      %1500 = vmatprep.subr.bf16.mxu0 0
      %1501 = vmatpush1.bf16.msra.mxu0 %v1472
      %1502 = vmatprep.subr.bf16.mxu0 0
      %1503 = vmatpush2.bf16.msra.mxu0 0
      %1504 = vmatprep.subr.bf16.mxu0 0
      %1505 = vmatpush2.bf16.msra.mxu0 0
      %1506 = vmatprep.subr.bf16.mxu0 0
      %1507 = vmatpush2.bf16.msra.mxu0 0
      %1508 = vmatprep.subr.bf16.mxu0 0
      %1509 = vmatpush2.bf16.msra.mxu0 0
      %1510 = vmatprep.subr.bf16.mxu0 0
      %1511 = vmatpush2.bf16.msra.mxu0 0
      %1512 = vmatprep.subr.bf16.mxu0 0
      %1513 = vmatpush2.bf16.msra.mxu0 0
      %1514 = vmatprep.subr.bf16.mxu0 0
      %1515 = vmatpush2.bf16.msra.mxu0 0
      %1516 = vmatprep.subr.bf16.mxu0 0
      %1517 = vmatpush2.bf16.msra.mxu0 0
      %1518 = vmatprep.mubr.bf16.mxu0 0
      %1519 = vmatmul.mubr.bf16.gmra.mxu0 %v1475
      %v1520 = vpop.f32.mrf.mxu0
      %v1521 = vadd.f32 0.0, %v1520
      %v1522 = vpop.f32.mrf.mxu0
      %v1523 = vpop.f32.mrf.mxu0
      %v1524 = vadd.f32 0.0, %v1523
      %v1525 = vpop.f32.mrf.mxu0
      %1526 = vmatprep.mubr.bf16.mxu0 0
      %1527 = vmatmul.mubr.bf16.gmra.mxu0 %v1478
      %v1528 = vpop.f32.mrf.mxu0
      %v1529 = vadd.f32 0.0, %v1528
      %v1530 = vpop.f32.mrf.mxu0
      %v1531 = vpop.f32.mrf.mxu0
      %v1532 = vadd.f32 0.0, %v1531
      %v1533 = vpop.f32.mrf.mxu0
      %1534 = vmatprep.mubr.bf16.mxu0 0
      %1535 = vmatmul.mubr.bf16.gmra.mxu0 %v1481
      %v1536 = vpop.f32.mrf.mxu0
      %v1537 = vadd.f32 0.0, %v1536
      %v1538 = vpop.f32.mrf.mxu0
      %v1539 = vpop.f32.mrf.mxu0
      %v1540 = vadd.f32 0.0, %v1539
      %v1541 = vpop.f32.mrf.mxu0
      %1542 = vmatprep.mubr.bf16.mxu0 0
      %1543 = vmatmul.mubr.bf16.gmra.mxu0 %v1484
      %v1544 = vpop.f32.mrf.mxu0
      %v1545 = vadd.f32 0.0, %v1544
      %v1546 = vpop.f32.mrf.mxu0
      %v1547 = vpop.f32.mrf.mxu0
      %v1548 = vadd.f32 0.0, %v1547
      %v1549 = vpop.f32.mrf.mxu0
      %1550 = vdwg.mxu0
      %vm1551 = vcmask 261120
      %1552 = vst.msk [vmem:[%s405] sm:$0xff] %vm1551, %v1521
      %1553 = vst.msk [vmem:[%s405 + $0x8] sm:$0xff] %vm1551, %v1524
      %1554 = vst.msk [vmem:[%s405 + $0x10] sm:$0xff] %vm1551, %v1529
      %1555 = vst.msk [vmem:[%s405 + $0x18] sm:$0xff] %vm1551, %v1532
      %1556 = vst.msk [vmem:[%s405 + $0x20] sm:$0xff] %vm1551, %v1537
      %1557 = vst.msk [vmem:[%s405 + $0x28] sm:$0xff] %vm1551, %v1540
      %1558 = vst.msk [vmem:[%s405 + $0x30] sm:$0xff] %vm1551, %v1545
      %1559 = vst.msk [vmem:[%s405 + $0x38] sm:$0xff] %vm1551, %v1548
      %p1560 = scmp.lt.s32.totalorder %s21, 1
      %s1561 = scalar_select %p1560, %s21, 1
      %s1562 = smul.addr %s1561, 8
      %s1563 = smul.addr %s1562, 4
      %s1564 = scalar_lea.vmem %s8, %s1563
      %p1565 = scmp.lt.s32.totalorder %s21, 1
      %s1566 = scalar_select %p1565, %s21, 1
      %s1567 = smul.addr %s1566, 8
      %s1568 = smul.addr %s1567, 8
      %s1569 = scalar_lea.vmem %s9, %s1568
      // Predicated region
      $region53: #{preact_block_forward.5} parent=51 // pred_check
        %p1570 = pneg %p227
      $region54: #{preact_block_forward.5} parent=51 // pred_check_branch
        %1572 = sbr.rel (%p1570) target = $region56
      $region55: #{preact_block_forward.5} parent=51 // pred_region
        _
      $region56: #{preact_block_forward.5} parent=51 // pred_fallthru
        _
      // Predicated region
      $region57: #{preact_block_forward.5} parent=51 // pred_check
        %p1573 = pneg %p253
      $region58: #{preact_block_forward.5} parent=51 // pred_check_branch
        %1575 = sbr.rel (%p1573) target = $region60
      $region59: #{preact_block_forward.5} parent=51 // pred_region
        _
      $region60: #{preact_block_forward.5} parent=51 // pred_fallthru
        _
    $region52: #{preact_block_forward.5} parent=5 // pred_fallthru
      _
    %p1576 = scmp.le.s32.totalorder 2, %s16
    // Predicated region
    $region61: #{preact_block_forward.5} parent=5 // pred_check
      %p1577 = pneg %p1576
    $region62: #{preact_block_forward.5} parent=5 // pred_check_branch
      %1579 = sbr.rel (%p1577) target = $region64
    $region63: #{preact_block_forward.5} parent=5 // pred_region
      %s1580 = ssub.s32 %s16, 2
      // Predicated region
      $region65: #{preact_block_forward.5} parent=63 // pred_check
        %p1581 = pneg %p233
      $region66: #{preact_block_forward.5} parent=63 // pred_check_branch
        %1583 = sbr.rel (%p1581) target = $region68
      $region67: #{preact_block_forward.5} parent=63 // pred_region
        %p1584 = scmp.lt.s32.totalorder %s22, 1
        %s1585 = scalar_select %p1584, %s22, 1
        %s1586 = smul.addr %s1585, 8
        %s1587 = smul.addr %s1586, 4
        %s1588 = scalar_lea.vmem %s8, %s1587
      $region68: #{preact_block_forward.5} parent=63 // pred_fallthru
        _
      // Predicated region
      $region69: #{preact_block_forward.5} parent=63 // pred_check
        %p1589 = pneg %p259
      $region70: #{preact_block_forward.5} parent=63 // pred_check_branch
        %1591 = sbr.rel (%p1589) target = $region72
      $region71: #{preact_block_forward.5} parent=63 // pred_region
        %p1592 = scmp.lt.s32.totalorder %s22, 1
        %s1593 = scalar_select %p1592, %s22, 1
        %s1594 = smul.addr %s1593, 8
        %s1595 = smul.addr %s1594, 8
        %s1596 = scalar_lea.vmem %s9, %s1595
      $region72: #{preact_block_forward.5} parent=63 // pred_fallthru
        _
    $region64: #{preact_block_forward.5} parent=5 // pred_fallthru
      _
  $region6: #{preact_block_forward.5} parent=0 // loop_footer
    %s20 = sadd.s32 1, %s16
  $region7: #{preact_block_forward.5} parent=0 // loop_footer_branch
    %15 = sbr.rel target = $region3
  $region8: #{preact_block_forward.5} parent=0 // loop_exit
    _

</llo_original>
